<compile_context>
chip_gen: v7x
topology: tpu7x:2x2x1
jax: 0.10.0
libtpu: 0.0.40
codegen_flags: <defaults>
</compile_context>

<pallas_src>
import functools

import jax
import jax.numpy as jnp
from jax.experimental import pallas as pl
from jax.experimental.pallas import tpu as pltpu

_H = 32          # GNN hidden dim
_EMB = 2 * _H    # 64 (mean || max)


def _round_up(x, m):
    return ((x + m - 1) // m) * m


# ----------------------------------------------------------------------------- #
# Fused kernel: 2-layer GCN (tiled over A_hat) + mean/max readout + MLP head
# grid = (phase, row_tile, col_tile); col_tile is the reduction axis.
# ----------------------------------------------------------------------------- #
def _fused_kernel(a_ref, xw1_ref, gb1_ref, gw2_ref, gb2_ref, mask_ref, cnt_ref,
                  w1_ref, b1_ref, w2_ref, b2_ref, w3_ref, b3_ref,
                  out_ref,
                  acc_ref, hw2_ref, sum_ref, max_ref,
                  *, tm, tk):
    phase = pl.program_id(0)
    i = pl.program_id(1)
    k = pl.program_id(2)
    ni = pl.num_programs(1)
    nk = pl.num_programs(2)
    neg = jnp.float32(-1e30)

    # one-time init of the readout accumulators (very first grid step)
    @pl.when((phase == 0) & (i == 0) & (k == 0))
    def _():
        sum_ref[...] = jnp.zeros_like(sum_ref)
        max_ref[...] = jnp.full_like(max_ref, neg)

    # zero the per-row-tile f32 accumulator at the start of every k-reduction
    @pl.when(k == 0)
    def _():
        acc_ref[...] = jnp.zeros_like(acc_ref)

    a_tile = a_ref[...]                                   # (tm, tk) bf16

    # phase 0: acc += A[i,k] @ (X W1)[k]
    @pl.when(phase == 0)
    def _():
        acc_ref[...] += jnp.dot(a_tile, xw1_ref[...],
                                preferred_element_type=jnp.float32)

    # phase 1: acc += A[i,k] @ (H1 W2)[k]   (RHS streamed from VMEM scratch)
    @pl.when(phase == 1)
    def _():
        off = pl.multiple_of(k * tk, tk)
        rhs = hw2_ref[pl.ds(off, tk), :]                  # (tk, H) bf16
        acc_ref[...] += jnp.dot(a_tile, rhs,
                                preferred_element_type=jnp.float32)

    # phase 0, end of reduction: H1 = relu(acc + b1); stash (H1 @ W2) for phase 1
    @pl.when((phase == 0) & (k == nk - 1))
    def _():
        h1 = jnp.maximum(acc_ref[...] + gb1_ref[...], 0.0)          # (tm, H) f32
        hw2 = jnp.dot(h1, gw2_ref[...], preferred_element_type=jnp.float32)
        off = pl.multiple_of(i * tm, tm)
        hw2_ref[pl.ds(off, tm), :] = hw2.astype(hw2_ref.dtype)

    # phase 1, end of reduction: H2 row-tile ready -> accumulate graph readouts
    @pl.when((phase == 1) & (k == nk - 1))
    def _():
        h2 = acc_ref[...] + gb2_ref[...]                  # (tm, H) f32
        m = mask_ref[...]                                 # (G, tm) one-hot membership
        # mean pool: per-graph sums via a single MXU matmul
        sum_ref[...] += jnp.dot(m, h2, preferred_element_type=jnp.float32)
        # max pool: single vectorized masked max over the tile (no per-graph loop)
        masked = jnp.where(m[:, :, None] > 0.5, h2[None, :, :], neg)  # (G, tm, H)
        max_ref[...] = jnp.maximum(max_ref[...], jnp.max(masked, axis=1))

    # very last grid step: finish readout, round, run the fused MLP head in VMEM
    @pl.when((phase == 1) & (i == ni - 1) & (k == nk - 1))
    def _():
        mean = sum_ref[...] / cnt_ref[...]                # cnt pre-guarded >= 1
        emb = jnp.concatenate([mean, max_ref[...]], axis=1)           # (G, 64)
        emb = jnp.round(emb * 1000.0) / 1000.0            # torch.round(., decimals=3)
        h = jnp.dot(emb, w1_ref[...], preferred_element_type=jnp.float32) + b1_ref[...]
        h = jnp.maximum(h, 0.0)
        h = jnp.dot(h, w2_ref[...], preferred_element_type=jnp.float32) + b2_ref[...]
        h = jnp.maximum(h, 0.0)
        v = jnp.dot(h, w3_ref[...], preferred_element_type=jnp.float32) + b3_ref[...]
        out_ref[...] = jnp.broadcast_to(v, out_ref.shape)  # lane-dense (G,128) slab


def fused_gcn_mlp(a_hat, xw1, gb1, gw2, gb2, mask, cnt,
                  w1, b1, w2, b2, w3, b3, *, tile):
    n_pad = a_hat.shape[0]
    g = mask.shape[0]
    h = xw1.shape[1]
    r = n_pad // tile
    c = n_pad // tile
    grid = (2, r, c)                                      # (phase, row tile, col tile)

    const = lambda p, i, k: (0, 0)
    in_specs = [
        pl.BlockSpec((tile, tile), lambda p, i, k: (i, k)),   # A_hat tile (bf16)
        pl.BlockSpec((tile, h), lambda p, i, k: (k, 0)),      # (X W1) col tile (bf16)
        pl.BlockSpec(gb1.shape, const),
        pl.BlockSpec(gw2.shape, const),
        pl.BlockSpec(gb2.shape, const),
        pl.BlockSpec((g, tile), lambda p, i, k: (0, i)),      # graph membership tile
        pl.BlockSpec(cnt.shape, const),
        pl.BlockSpec(w1.shape, const),                        # MLP weights: DMA'd once
        pl.BlockSpec(b1.shape, const),
        pl.BlockSpec(w2.shape, const),
        pl.BlockSpec(b2.shape, const),
        pl.BlockSpec(w3.shape, const),
        pl.BlockSpec(b3.shape, const),
    ]

    # VMEM budget: double-buffered A/xw1/mask tiles + resident MLP weights + scratch.
    mlp_bytes = 4 * (64 * 1024 + 1024 + 1024 * 256 + 256 + 256 + 1)
    est = (2 * tile * tile * 2 + 2 * tile * h * 2 + 2 * g * tile * 4
           + mlp_bytes + tile * h * 4 + n_pad * h * 2
           + 2 * g * h * 4 + 2 * g * 128 * 4)
    vmem_limit = int(min(96 * 2 ** 20, max(32 * 2 ** 20, 2 * est)))

    kernel = functools.partial(_fused_kernel, tm=tile, tk=tile)

    out = pl.pallas_call(
        kernel,
        out_shape=jax.ShapeDtypeStruct((g, 128), jnp.float32),
        grid_spec=pltpu.PrefetchScalarGridSpec(
            num_scalar_prefetch=0,
            grid=grid,
            in_specs=in_specs,
            out_specs=pl.BlockSpec((g, 128), const),
            scratch_shapes=[
                pltpu.VMEM((tile, h), jnp.float32),      # row-tile accumulator
                pltpu.VMEM((n_pad, h), jnp.bfloat16),    # H1 @ W2 (phase-1 RHS)
                pltpu.VMEM((g, h), jnp.float32),         # mean-pool running sum
                pltpu.VMEM((g, h), jnp.float32),         # max-pool running max
            ],
        ),
        compiler_params=pltpu.CompilerParams(
            dimension_semantics=("arbitrary", "arbitrary", "arbitrary"),
            vmem_limit_bytes=vmem_limit,
        ),
    )(a_hat, xw1, gb1, gw2, gb2, mask, cnt, w1, b1, w2, b2, w3, b3)
    return out[:, :1]                                      # (G, 1)


# ----------------------------------------------------------------------------- #
# Parameter init (deterministic; shapes implied by the module __init__)
# ----------------------------------------------------------------------------- #
def init_params(key):
    ks = jax.random.split(key, 16)

    def uniform(k, shape, bound):
        return jax.random.uniform(k, shape, jnp.float32, -bound, bound)

    node_enc_outdim, hid = 3, _H
    din = node_enc_outdim + 1                              # 4

    return {
        # NodeEncoder embedding (xavier_uniform over (3, 3))
        "node_emb": uniform(ks[0], (3, node_enc_outdim),
                            (6.0 / (3 + node_enc_outdim)) ** 0.5),
        # GCNConv layers (glorot weights, zero bias)
        "gw1": uniform(ks[1], (din, hid), (6.0 / (din + hid)) ** 0.5),
        "gb1": jnp.zeros((1, hid), jnp.float32),
        "gw2": uniform(ks[2], (hid, hid), (6.0 / (2 * hid)) ** 0.5),
        "gb2": jnp.zeros((1, hid), jnp.float32),
        # MLP head (stored (in, out) so forward is x @ W + b)
        "w1": uniform(ks[3], (_EMB, 1024), (1.0 / _EMB) ** 0.5),
        "b1": uniform(ks[4], (1, 1024), (1.0 / _EMB) ** 0.5),
        "w2": uniform(ks[5], (1024, 256), (1.0 / 1024) ** 0.5),
        "b2": uniform(ks[6], (1, 256), (1.0 / 1024) ** 0.5),
        "w3": uniform(ks[7], (256, 1), (1.0 / 256) ** 0.5),
        "b3": uniform(ks[8], (1, 1), (1.0 / 256) ** 0.5),
    }


# ----------------------------------------------------------------------------- #
# Full forward (glue in plain JAX; all hot compute in one fused Pallas kernel)
# ----------------------------------------------------------------------------- #
def predict_value_forward(node_x, edge_index, batch_ids, num_graphs, params):
    n = node_x.shape[0]
    hid = params["gw2"].shape[0]                           # 32

    # --- NodeEncoder folded into the first GCN feature matmul: X W1 ---
    node_type = node_x[:, 0].astype(jnp.int32)
    num_inv = node_x[:, 1:2].astype(jnp.float32)
    table = jnp.dot(params["node_emb"], params["gw1"][:3, :])        # (3, H)
    xw1 = table[node_type] + num_inv * params["gw1"][3:4, :]         # (N, H)

    # --- dense normalized adjacency for adj.t():  Â = D^-1/2 (A^T + I) D^-1/2 ---
    a = jnp.zeros((n, n), jnp.float32).at[edge_index[1], edge_index[0]].set(1.0)
    a = a + jnp.eye(n, dtype=jnp.float32)
    dinv = jax.lax.rsqrt(jnp.sum(a, axis=1))
    a_hat = a * dinv[:, None] * dinv[None, :]

    # --- graph membership one-hot + guarded counts (no NaN on empty graphs) ---
    mask = (batch_ids[None, :] == jnp.arange(num_graphs)[:, None]).astype(jnp.float32)
    cnt = jnp.maximum(jnp.sum(mask, axis=1, keepdims=True), 1.0)

    # --- pad node dim to a tile multiple; adjacency + features in bf16 ---
    tile = min(512, _round_up(n, 128))
    n_pad = _round_up(n, tile)
    a_p = jnp.zeros((n_pad, n_pad), jnp.bfloat16).at[:n, :n].set(a_hat.astype(jnp.bfloat16))
    x_p = jnp.zeros((n_pad, hid), jnp.bfloat16).at[:n, :].set(xw1.astype(jnp.bfloat16))
    m_p = jnp.zeros((num_graphs, n_pad), jnp.float32).at[:, :n].set(mask)

    return fused_gcn_mlp(a_p, x_p, params["gb1"], params["gw2"], params["gb2"],
                         m_p, cnt,
                         params["w1"], params["b1"], params["w2"], params["b2"],
                         params["w3"], params["b3"], tile=tile)


if __name__ == "__main__":
    key = jax.random.PRNGKey(0)
    pkey, fkey1, fkey2 = jax.random.split(key, 3)
    params = init_params(pkey)

    # Two small AIG-style graphs, 8 nodes each (N = 16 total).
    num_graphs = 2
    num_nodes = 16
    node_type = jax.random.randint(fkey1, (num_nodes,), 0, 3)
    num_inv = jax.random.randint(fkey2, (num_nodes,), 0, 3)
    node_x = jnp.stack([node_type, num_inv], axis=1).astype(jnp.float32)     # (16, 2)

    base_src = jnp.array([0, 1, 2, 3, 4, 5, 6], dtype=jnp.int32)
    base_dst = jnp.array([2, 2, 4, 4, 6, 6, 7], dtype=jnp.int32)
    src = jnp.concatenate([base_src, base_src + 8])
    dst = jnp.concatenate([base_dst, base_dst + 8])
    edge_index = jnp.stack([src, dst], axis=0)                               # (2, 14)
    batch_ids = jnp.concatenate([jnp.zeros(8, jnp.int32), jnp.ones(8, jnp.int32)])

    out = predict_value_forward(node_x, edge_index, batch_ids, num_graphs, params)
    out = jax.block_until_ready(out)
    assert out.shape == (num_graphs, 1) and out.dtype == jnp.float32
    assert bool(jnp.all(jnp.isfinite(out)))
    print("KERNEL_OK")
</pallas_src>

<mosaic_0001>
module attributes {stable_mosaic.version = 11 : i64} {
  func.func @_fused_kernel(%arg0: i32, %arg1: i32, %arg2: i32, %arg3: memref<128x128xbf16, #tpu.memory_space<vmem>>, %arg4: memref<128x32xbf16, #tpu.memory_space<vmem>>, %arg5: memref<1x32xf32, #tpu.memory_space<vmem>>, %arg6: memref<32x32xf32, #tpu.memory_space<vmem>>, %arg7: memref<1x32xf32, #tpu.memory_space<vmem>>, %arg8: memref<2x128xf32, #tpu.memory_space<vmem>>, %arg9: memref<2x1xf32, #tpu.memory_space<vmem>>, %arg10: memref<64x1024xf32, #tpu.memory_space<vmem>>, %arg11: memref<1x1024xf32, #tpu.memory_space<vmem>>, %arg12: memref<1024x256xf32, #tpu.memory_space<vmem>>, %arg13: memref<1x256xf32, #tpu.memory_space<vmem>>, %arg14: memref<256x1xf32, #tpu.memory_space<vmem>>, %arg15: memref<1x1xf32, #tpu.memory_space<vmem>>, %arg16: memref<2x128xf32, #tpu.memory_space<vmem>>, %arg17: memref<128x32xf32, #tpu.memory_space<vmem>>, %arg18: memref<128x32xbf16, #tpu.memory_space<vmem>>, %arg19: memref<2x32xf32, #tpu.memory_space<vmem>>, %arg20: memref<2x32xf32, #tpu.memory_space<vmem>>) attributes {dimension_semantics = [#tpu.dimension_semantics<arbitrary>, #tpu.dimension_semantics<arbitrary>, #tpu.dimension_semantics<arbitrary>], iteration_bounds = array<i64: 2, 1, 1>, scalar_prefetch = 0 : i64, scratch_operands = 4 : i64, tpu.core_type = #tpu.core_type<tc>, window_params = [{transform_indices = @transform_0, window_bounds = array<i64: 128, 128>}, {transform_indices = @transform_1, window_bounds = array<i64: 128, 32>}, {pipeline_mode = #tpu.pipeline_mode<synchronous>, transform_indices = @transform_2, window_bounds = array<i64: 1, 32>}, {pipeline_mode = #tpu.pipeline_mode<synchronous>, transform_indices = @transform_3, window_bounds = array<i64: 32, 32>}, {pipeline_mode = #tpu.pipeline_mode<synchronous>, transform_indices = @transform_4, window_bounds = array<i64: 1, 32>}, {transform_indices = @transform_5, window_bounds = array<i64: 2, 128>}, {pipeline_mode = #tpu.pipeline_mode<synchronous>, transform_indices = @transform_6, window_bounds = array<i64: 2, 1>}, {pipeline_mode = #tpu.pipeline_mode<synchronous>, transform_indices = @transform_7, window_bounds = array<i64: 64, 1024>}, {pipeline_mode = #tpu.pipeline_mode<synchronous>, transform_indices = @transform_8, window_bounds = array<i64: 1, 1024>}, {pipeline_mode = #tpu.pipeline_mode<synchronous>, transform_indices = @transform_9, window_bounds = array<i64: 1024, 256>}, {pipeline_mode = #tpu.pipeline_mode<synchronous>, transform_indices = @transform_10, window_bounds = array<i64: 1, 256>}, {pipeline_mode = #tpu.pipeline_mode<synchronous>, transform_indices = @transform_11, window_bounds = array<i64: 256, 1>}, {pipeline_mode = #tpu.pipeline_mode<synchronous>, transform_indices = @transform_12, window_bounds = array<i64: 1, 1>}, {pipeline_mode = #tpu.pipeline_mode<synchronous>, transform_indices = @transform_13, window_bounds = array<i64: 2, 128>}]} {
    %c0_i32 = arith.constant 0 : i32
    %0 = arith.cmpi eq, %arg0, %c0_i32 : i32
    %c0_i32_0 = arith.constant 0 : i32
    %1 = arith.cmpi eq, %arg1, %c0_i32_0 : i32
    %2 = arith.andi %0, %1 : i1
    %c0_i32_1 = arith.constant 0 : i32
    %3 = arith.cmpi eq, %arg2, %c0_i32_1 : i32
    %4 = arith.andi %2, %3 : i1
    %5 = arith.extui %4 : i1 to i32
    %cst = arith.constant -1.000000e+30 : f32
    %c0_i32_2 = arith.constant 0 : i32
    %6 = arith.cmpi ne, %5, %c0_i32_2 : i32
    scf.if %6 {
      %cst_20 = arith.constant 0.000000e+00 : f32
      %34 = vector.broadcast %cst_20 : f32 to vector<2x32xf32>
      %c0_21 = arith.constant 0 : index
      %c0_22 = arith.constant 0 : index
      %35 = vector.load %arg19[%c0_21, %c0_22] : memref<2x32xf32, #tpu.memory_space<vmem>>, vector<2x32xf32>
      tpu.vector_store %arg19[%c0_21, %c0_22], %34 {strides = array<i32>} : memref<2x32xf32, #tpu.memory_space<vmem>>, vector<2x32xf32>,
      %36 = vector.broadcast %cst : f32 to vector<2x32xf32>
      %c0_23 = arith.constant 0 : index
      %c0_24 = arith.constant 0 : index
      %37 = vector.load %arg20[%c0_23, %c0_24] : memref<2x32xf32, #tpu.memory_space<vmem>>, vector<2x32xf32>
      tpu.vector_store %arg20[%c0_23, %c0_24], %36 {strides = array<i32>} : memref<2x32xf32, #tpu.memory_space<vmem>>, vector<2x32xf32>,
    } else {
    }
    %c0_i32_3 = arith.constant 0 : i32
    %7 = arith.cmpi eq, %arg2, %c0_i32_3 : i32
    %8 = arith.extui %7 : i1 to i32
    %c0_i32_4 = arith.constant 0 : i32
    %9 = arith.cmpi ne, %8, %c0_i32_4 : i32
    scf.if %9 {
      %cst_20 = arith.constant 0.000000e+00 : f32
      %34 = vector.broadcast %cst_20 : f32 to vector<128x32xf32>
      %c0_21 = arith.constant 0 : index
      %c0_22 = arith.constant 0 : index
      %35 = vector.load %arg17[%c0_21, %c0_22] : memref<128x32xf32, #tpu.memory_space<vmem>>, vector<128x32xf32>
      tpu.vector_store %arg17[%c0_21, %c0_22], %34 {strides = array<i32>} : memref<128x32xf32, #tpu.memory_space<vmem>>, vector<128x32xf32>,
    } else {
    }
    %c0 = arith.constant 0 : index
    %c0_5 = arith.constant 0 : index
    %10 = vector.load %arg3[%c0, %c0_5] : memref<128x128xbf16, #tpu.memory_space<vmem>>, vector<128x128xbf16>
    %c0_i32_6 = arith.constant 0 : i32
    %11 = arith.cmpi eq, %arg0, %c0_i32_6 : i32
    %12 = arith.extui %11 : i1 to i32
    %c0_i32_7 = arith.constant 0 : i32
    %13 = arith.cmpi ne, %12, %c0_i32_7 : i32
    scf.if %13 {
      %c0_20 = arith.constant 0 : index
      %c0_21 = arith.constant 0 : index
      %34 = vector.load %arg17[%c0_20, %c0_21] : memref<128x32xf32, #tpu.memory_space<vmem>>, vector<128x32xf32>
      %c0_22 = arith.constant 0 : index
      %c0_23 = arith.constant 0 : index
      %35 = vector.load %arg4[%c0_22, %c0_23] : memref<128x32xbf16, #tpu.memory_space<vmem>>, vector<128x32xbf16>
      %cst_24 = arith.constant dense<0.000000e+00> : vector<128x32xf32>
      %36 = tpu.matmul %10, %35, %cst_24 {dimension_numbers = #tpu.dot_dimension_numbers<[1], [0], [0], [1], [0, 0, 1, 1], [], []>} : vector<128x128xbf16>, vector<128x32xbf16>, vector<128x32xf32> -> vector<128x32xf32>
      %37 = arith.addf %34, %36 : vector<128x32xf32>
      %c0_25 = arith.constant 0 : index
      %c0_26 = arith.constant 0 : index
      %38 = vector.load %arg17[%c0_25, %c0_26] : memref<128x32xf32, #tpu.memory_space<vmem>>, vector<128x32xf32>
      tpu.vector_store %arg17[%c0_25, %c0_26], %37 {strides = array<i32>} : memref<128x32xf32, #tpu.memory_space<vmem>>, vector<128x32xf32>,
    } else {
    }
    %c1_i32 = arith.constant 1 : i32
    %14 = arith.cmpi eq, %arg0, %c1_i32 : i32
    %15 = arith.extui %14 : i1 to i32
    %c0_i32_8 = arith.constant 0 : i32
    %16 = arith.cmpi ne, %15, %c0_i32_8 : i32
    scf.if %16 {
      %c128_i32 = arith.constant 128 : i32
      %34 = arith.muli %arg2, %c128_i32 : i32
      %35 = tpu.assume_multiple %34, 128 : i32
      %36 = arith.index_cast %35 : i32 to index
      %c0_20 = arith.constant 0 : index
      %37 = vector.load %arg18[%36, %c0_20] : memref<128x32xbf16, #tpu.memory_space<vmem>>, vector<128x32xbf16>
      %c0_21 = arith.constant 0 : index
      %c0_22 = arith.constant 0 : index
      %38 = vector.load %arg17[%c0_21, %c0_22] : memref<128x32xf32, #tpu.memory_space<vmem>>, vector<128x32xf32>
      %cst_23 = arith.constant dense<0.000000e+00> : vector<128x32xf32>
      %39 = tpu.matmul %10, %37, %cst_23 {dimension_numbers = #tpu.dot_dimension_numbers<[1], [0], [0], [1], [0, 0, 1, 1], [], []>} : vector<128x128xbf16>, vector<128x32xbf16>, vector<128x32xf32> -> vector<128x32xf32>
      %40 = arith.addf %38, %39 : vector<128x32xf32>
      %c0_24 = arith.constant 0 : index
      %c0_25 = arith.constant 0 : index
      %41 = vector.load %arg17[%c0_24, %c0_25] : memref<128x32xf32, #tpu.memory_space<vmem>>, vector<128x32xf32>
      tpu.vector_store %arg17[%c0_24, %c0_25], %40 {strides = array<i32>} : memref<128x32xf32, #tpu.memory_space<vmem>>, vector<128x32xf32>,
    } else {
    }
    %c0_i32_9 = arith.constant 0 : i32
    %17 = arith.cmpi eq, %arg0, %c0_i32_9 : i32
    %c0_i32_10 = arith.constant 0 : i32
    %18 = arith.cmpi eq, %arg2, %c0_i32_10 : i32
    %19 = arith.andi %17, %18 : i1
    %20 = arith.extui %19 : i1 to i32
    %c0_i32_11 = arith.constant 0 : i32
    %21 = arith.cmpi ne, %20, %c0_i32_11 : i32
    scf.if %21 {
      %c0_20 = arith.constant 0 : index
      %c0_21 = arith.constant 0 : index
      %34 = vector.load %arg17[%c0_20, %c0_21] : memref<128x32xf32, #tpu.memory_space<vmem>>, vector<128x32xf32>
      %c0_22 = arith.constant 0 : index
      %c0_23 = arith.constant 0 : index
      %35 = vector.load %arg5[%c0_22, %c0_23] : memref<1x32xf32, #tpu.memory_space<vmem>>, vector<1x32xf32>
      %36 = vector.broadcast %35 : vector<1x32xf32> to vector<128x32xf32>
      %37 = arith.addf %34, %36 : vector<128x32xf32>
      %cst_24 = arith.constant 0.000000e+00 : f32
      %38 = vector.broadcast %cst_24 : f32 to vector<128x32xf32>
      %39 = arith.maximumf %37, %38 : vector<128x32xf32>
      %c0_25 = arith.constant 0 : index
      %c0_26 = arith.constant 0 : index
      %40 = vector.load %arg6[%c0_25, %c0_26] : memref<32x32xf32, #tpu.memory_space<vmem>>, vector<32x32xf32>
      %cst_27 = arith.constant dense<0.000000e+00> : vector<128x32xf32>
      %41 = tpu.matmul %39, %40, %cst_27 {dimension_numbers = #tpu.dot_dimension_numbers<[1], [0], [0], [1], [0, 0, 1, 1], [], []>} : vector<128x32xf32>, vector<32x32xf32>, vector<128x32xf32> -> vector<128x32xf32>
      %c128_i32 = arith.constant 128 : i32
      %42 = arith.muli %arg1, %c128_i32 : i32
      %43 = tpu.assume_multiple %42, 128 : i32
      %44 = arith.truncf %41 : vector<128x32xf32> to vector<128x32xbf16>
      %45 = arith.index_cast %43 : i32 to index
      %c0_28 = arith.constant 0 : index
      %46 = vector.load %arg18[%45, %c0_28] : memref<128x32xbf16, #tpu.memory_space<vmem>>, vector<128x32xbf16>
      tpu.vector_store %arg18[%45, %c0_28], %44 {strides = array<i32>} : memref<128x32xbf16, #tpu.memory_space<vmem>>, vector<128x32xbf16>,
    } else {
    }
    %c1_i32_12 = arith.constant 1 : i32
    %22 = arith.cmpi eq, %arg0, %c1_i32_12 : i32
    %c0_i32_13 = arith.constant 0 : i32
    %23 = arith.cmpi eq, %arg2, %c0_i32_13 : i32
    %24 = arith.andi %22, %23 : i1
    %25 = arith.extui %24 : i1 to i32
    %cst_14 = arith.constant -1.000000e+30 : f32
    %c0_i32_15 = arith.constant 0 : i32
    %26 = arith.cmpi ne, %25, %c0_i32_15 : i32
    scf.if %26 {
      %c0_20 = arith.constant 0 : index
      %c0_21 = arith.constant 0 : index
      %34 = vector.load %arg17[%c0_20, %c0_21] : memref<128x32xf32, #tpu.memory_space<vmem>>, vector<128x32xf32>
      %c0_22 = arith.constant 0 : index
      %c0_23 = arith.constant 0 : index
      %35 = vector.load %arg7[%c0_22, %c0_23] : memref<1x32xf32, #tpu.memory_space<vmem>>, vector<1x32xf32>
      %36 = vector.broadcast %35 : vector<1x32xf32> to vector<128x32xf32>
      %37 = arith.addf %34, %36 : vector<128x32xf32>
      %c0_24 = arith.constant 0 : index
      %c0_25 = arith.constant 0 : index
      %38 = vector.load %arg8[%c0_24, %c0_25] : memref<2x128xf32, #tpu.memory_space<vmem>>, vector<2x128xf32>
      %c0_26 = arith.constant 0 : index
      %c0_27 = arith.constant 0 : index
      %39 = vector.load %arg19[%c0_26, %c0_27] : memref<2x32xf32, #tpu.memory_space<vmem>>, vector<2x32xf32>
      %cst_28 = arith.constant dense<0.000000e+00> : vector<2x32xf32>
      %40 = tpu.matmul %38, %37, %cst_28 {dimension_numbers = #tpu.dot_dimension_numbers<[1], [0], [0], [1], [0, 0, 1, 1], [], []>} : vector<2x128xf32>, vector<128x32xf32>, vector<2x32xf32> -> vector<2x32xf32>
      %41 = arith.addf %39, %40 : vector<2x32xf32>
      %c0_29 = arith.constant 0 : index
      %c0_30 = arith.constant 0 : index
      %42 = vector.load %arg19[%c0_29, %c0_30] : memref<2x32xf32, #tpu.memory_space<vmem>>, vector<2x32xf32>
      tpu.vector_store %arg19[%c0_29, %c0_30], %41 {strides = array<i32>} : memref<2x32xf32, #tpu.memory_space<vmem>>, vector<2x32xf32>,
      %43 = vector.shape_cast %38 : vector<2x128xf32> to vector<2x128x1xf32>
      %cst_31 = arith.constant 5.000000e-01 : f32
      %44 = vector.broadcast %cst_31 : f32 to vector<2x128x1xf32>
      %45 = arith.cmpf ogt, %43, %44 : vector<2x128x1xf32>
      %46 = vector.shape_cast %37 : vector<128x32xf32> to vector<1x128x32xf32>
      %47 = vector.shape_cast %45 : vector<2x128x1xi1> to vector<2x128x1xi1>
      %48 = vector.broadcast %47 : vector<2x128x1xi1> to vector<2x128x32xi1>
      %49 = vector.shape_cast %46 : vector<1x128x32xf32> to vector<1x128x32xf32>
      %50 = vector.broadcast %49 : vector<1x128x32xf32> to vector<2x128x32xf32>
      %51 = vector.broadcast %cst_14 : f32 to vector<2x128x32xf32>
      %52 = arith.select %48, %50, %51 : vector<2x128x32xi1>, vector<2x128x32xf32>
      %c0_32 = arith.constant 0 : index
      %c0_33 = arith.constant 0 : index
      %53 = vector.load %arg20[%c0_32, %c0_33] : memref<2x32xf32, #tpu.memory_space<vmem>>, vector<2x32xf32>
      %cst_34 = arith.constant dense<0xFF800000> : vector<2x32xf32>
      %54 = vector.multi_reduction <maximumf>, %52, %cst_34 [1] : vector<2x128x32xf32> to vector<2x32xf32>
      %55 = arith.maximumf %53, %54 : vector<2x32xf32>
      %c0_35 = arith.constant 0 : index
      %c0_36 = arith.constant 0 : index
      %56 = vector.load %arg20[%c0_35, %c0_36] : memref<2x32xf32, #tpu.memory_space<vmem>>, vector<2x32xf32>
      tpu.vector_store %arg20[%c0_35, %c0_36], %55 {strides = array<i32>} : memref<2x32xf32, #tpu.memory_space<vmem>>, vector<2x32xf32>,
    } else {
    }
    %c1_i32_16 = arith.constant 1 : i32
    %27 = arith.cmpi eq, %arg0, %c1_i32_16 : i32
    %c0_i32_17 = arith.constant 0 : i32
    %28 = arith.cmpi eq, %arg1, %c0_i32_17 : i32
    %29 = arith.andi %27, %28 : i1
    %c0_i32_18 = arith.constant 0 : i32
    %30 = arith.cmpi eq, %arg2, %c0_i32_18 : i32
    %31 = arith.andi %29, %30 : i1
    %32 = arith.extui %31 : i1 to i32
    %c0_i32_19 = arith.constant 0 : i32
    %33 = arith.cmpi ne, %32, %c0_i32_19 : i32
    scf.if %33 {
      %c0_20 = arith.constant 0 : index
      %c0_21 = arith.constant 0 : index
      %34 = vector.load %arg19[%c0_20, %c0_21] : memref<2x32xf32, #tpu.memory_space<vmem>>, vector<2x32xf32>
      %c0_22 = arith.constant 0 : index
      %c0_23 = arith.constant 0 : index
      %35 = vector.load %arg9[%c0_22, %c0_23] : memref<2x1xf32, #tpu.memory_space<vmem>>, vector<2x1xf32>
      %36 = vector.broadcast %35 : vector<2x1xf32> to vector<2x32xf32>
      %37 = arith.divf %34, %36 : vector<2x32xf32>
      %c0_24 = arith.constant 0 : index
      %c0_25 = arith.constant 0 : index
      %38 = vector.load %arg20[%c0_24, %c0_25] : memref<2x32xf32, #tpu.memory_space<vmem>>, vector<2x32xf32>
      %39 = tpu.concatenate %37, %38 in 1 : vector<2x32xf32>, vector<2x32xf32> -> vector<2x64xf32>
      %cst_26 = arith.constant 1.000000e+03 : f32
      %40 = vector.broadcast %cst_26 : f32 to vector<2x64xf32>
      %41 = arith.mulf %39, %40 : vector<2x64xf32>
      %42 = math.roundeven %41 : vector<2x64xf32>
      %cst_27 = arith.constant 1.000000e+03 : f32
      %43 = vector.broadcast %cst_27 : f32 to vector<2x64xf32>
      %44 = arith.divf %42, %43 : vector<2x64xf32>
      %c0_28 = arith.constant 0 : index
      %c0_29 = arith.constant 0 : index
      %45 = vector.load %arg10[%c0_28, %c0_29] : memref<64x1024xf32, #tpu.memory_space<vmem>>, vector<64x1024xf32>
      %cst_30 = arith.constant dense<0.000000e+00> : vector<2x1024xf32>
      %46 = tpu.matmul %44, %45, %cst_30 {dimension_numbers = #tpu.dot_dimension_numbers<[1], [0], [0], [1], [0, 0, 1, 1], [], []>} : vector<2x64xf32>, vector<64x1024xf32>, vector<2x1024xf32> -> vector<2x1024xf32>
      %c0_31 = arith.constant 0 : index
      %c0_32 = arith.constant 0 : index
      %47 = vector.load %arg11[%c0_31, %c0_32] : memref<1x1024xf32, #tpu.memory_space<vmem>>, vector<1x1024xf32>
      %48 = vector.broadcast %47 : vector<1x1024xf32> to vector<2x1024xf32>
      %49 = arith.addf %46, %48 : vector<2x1024xf32>
      %cst_33 = arith.constant 0.000000e+00 : f32
      %50 = vector.broadcast %cst_33 : f32 to vector<2x1024xf32>
      %51 = arith.maximumf %49, %50 : vector<2x1024xf32>
      %c0_34 = arith.constant 0 : index
      %c0_35 = arith.constant 0 : index
      %52 = vector.load %arg12[%c0_34, %c0_35] : memref<1024x256xf32, #tpu.memory_space<vmem>>, vector<1024x256xf32>
      %cst_36 = arith.constant dense<0.000000e+00> : vector<2x256xf32>
      %53 = tpu.matmul %51, %52, %cst_36 {dimension_numbers = #tpu.dot_dimension_numbers<[1], [0], [0], [1], [0, 0, 1, 1], [], []>} : vector<2x1024xf32>, vector<1024x256xf32>, vector<2x256xf32> -> vector<2x256xf32>
      %c0_37 = arith.constant 0 : index
      %c0_38 = arith.constant 0 : index
      %54 = vector.load %arg13[%c0_37, %c0_38] : memref<1x256xf32, #tpu.memory_space<vmem>>, vector<1x256xf32>
      %55 = vector.broadcast %54 : vector<1x256xf32> to vector<2x256xf32>
      %56 = arith.addf %53, %55 : vector<2x256xf32>
      %cst_39 = arith.constant 0.000000e+00 : f32
      %57 = vector.broadcast %cst_39 : f32 to vector<2x256xf32>
      %58 = arith.maximumf %56, %57 : vector<2x256xf32>
      %c0_40 = arith.constant 0 : index
      %c0_41 = arith.constant 0 : index
      %59 = vector.load %arg14[%c0_40, %c0_41] : memref<256x1xf32, #tpu.memory_space<vmem>>, vector<256x1xf32>
      %cst_42 = arith.constant dense<0.000000e+00> : vector<2x1xf32>
      %60 = tpu.matmul %58, %59, %cst_42 {dimension_numbers = #tpu.dot_dimension_numbers<[1], [0], [0], [1], [0, 0, 1, 1], [], []>} : vector<2x256xf32>, vector<256x1xf32>, vector<2x1xf32> -> vector<2x1xf32>
      %c0_43 = arith.constant 0 : index
      %c0_44 = arith.constant 0 : index
      %61 = vector.load %arg15[%c0_43, %c0_44] : memref<1x1xf32, #tpu.memory_space<vmem>>, vector<1x1xf32>
      %62 = vector.broadcast %61 : vector<1x1xf32> to vector<2x1xf32>
      %63 = arith.addf %60, %62 : vector<2x1xf32>
      %64 = vector.shape_cast %63 : vector<2x1xf32> to vector<2x1xf32>
      %65 = vector.broadcast %64 : vector<2x1xf32> to vector<2x128xf32>
      %c0_45 = arith.constant 0 : index
      %c0_46 = arith.constant 0 : index
      %66 = vector.load %arg16[%c0_45, %c0_46] : memref<2x128xf32, #tpu.memory_space<vmem>>, vector<2x128xf32>
      tpu.vector_store %arg16[%c0_45, %c0_46], %65 {strides = array<i32>} : memref<2x128xf32, #tpu.memory_space<vmem>>, vector<2x128xf32>,
    } else {
    }
    return
  }
  func.func @transform_0(%arg0: i32, %arg1: i32, %arg2: i32) -> (i32, i32) {
    %c0_i32 = arith.constant 0 : i32
    return %arg1, %arg2 : i32, i32
  }
  func.func @transform_1(%arg0: i32, %arg1: i32, %arg2: i32) -> (i32, i32) {
    %c0_i32 = arith.constant 0 : i32
    %c0_i32_0 = arith.constant 0 : i32
    return %arg2, %c0_i32 : i32, i32
  }
  func.func @transform_2(%arg0: i32, %arg1: i32, %arg2: i32) -> (i32, i32) {
    %c0_i32 = arith.constant 0 : i32
    %c0_i32_0 = arith.constant 0 : i32
    %c0_i32_1 = arith.constant 0 : i32
    return %c0_i32, %c0_i32_0 : i32, i32
  }
  func.func @transform_3(%arg0: i32, %arg1: i32, %arg2: i32) -> (i32, i32) {
    %c0_i32 = arith.constant 0 : i32
    %c0_i32_0 = arith.constant 0 : i32
    %c0_i32_1 = arith.constant 0 : i32
    return %c0_i32, %c0_i32_0 : i32, i32
  }
  func.func @transform_4(%arg0: i32, %arg1: i32, %arg2: i32) -> (i32, i32) {
    %c0_i32 = arith.constant 0 : i32
    %c0_i32_0 = arith.constant 0 : i32
    %c0_i32_1 = arith.constant 0 : i32
    return %c0_i32, %c0_i32_0 : i32, i32
  }
  func.func @transform_5(%arg0: i32, %arg1: i32, %arg2: i32) -> (i32, i32) {
    %c0_i32 = arith.constant 0 : i32
    %c0_i32_0 = arith.constant 0 : i32
    return %c0_i32, %arg1 : i32, i32
  }
  func.func @transform_6(%arg0: i32, %arg1: i32, %arg2: i32) -> (i32, i32) {
    %c0_i32 = arith.constant 0 : i32
    %c0_i32_0 = arith.constant 0 : i32
    %c0_i32_1 = arith.constant 0 : i32
    return %c0_i32, %c0_i32_0 : i32, i32
  }
  func.func @transform_7(%arg0: i32, %arg1: i32, %arg2: i32) -> (i32, i32) {
    %c0_i32 = arith.constant 0 : i32
    %c0_i32_0 = arith.constant 0 : i32
    %c0_i32_1 = arith.constant 0 : i32
    return %c0_i32, %c0_i32_0 : i32, i32
  }
  func.func @transform_8(%arg0: i32, %arg1: i32, %arg2: i32) -> (i32, i32) {
    %c0_i32 = arith.constant 0 : i32
    %c0_i32_0 = arith.constant 0 : i32
    %c0_i32_1 = arith.constant 0 : i32
    return %c0_i32, %c0_i32_0 : i32, i32
  }
  func.func @transform_9(%arg0: i32, %arg1: i32, %arg2: i32) -> (i32, i32) {
    %c0_i32 = arith.constant 0 : i32
    %c0_i32_0 = arith.constant 0 : i32
    %c0_i32_1 = arith.constant 0 : i32
    return %c0_i32, %c0_i32_0 : i32, i32
  }
  func.func @transform_10(%arg0: i32, %arg1: i32, %arg2: i32) -> (i32, i32) {
    %c0_i32 = arith.constant 0 : i32
    %c0_i32_0 = arith.constant 0 : i32
    %c0_i32_1 = arith.constant 0 : i32
    return %c0_i32, %c0_i32_0 : i32, i32
  }
  func.func @transform_11(%arg0: i32, %arg1: i32, %arg2: i32) -> (i32, i32) {
    %c0_i32 = arith.constant 0 : i32
    %c0_i32_0 = arith.constant 0 : i32
    %c0_i32_1 = arith.constant 0 : i32
    return %c0_i32, %c0_i32_0 : i32, i32
  }
  func.func @transform_12(%arg0: i32, %arg1: i32, %arg2: i32) -> (i32, i32) {
    %c0_i32 = arith.constant 0 : i32
    %c0_i32_0 = arith.constant 0 : i32
    %c0_i32_1 = arith.constant 0 : i32
    return %c0_i32, %c0_i32_0 : i32, i32
  }
  func.func @transform_13(%arg0: i32, %arg1: i32, %arg2: i32) -> (i32, i32) {
    %c0_i32 = arith.constant 0 : i32
    %c0_i32_0 = arith.constant 0 : i32
    %c0_i32_1 = arith.constant 0 : i32
    return %c0_i32, %c0_i32_0 : i32, i32
  }
}

</mosaic_0001>

<llo_original>
// kernel: tpu_custom_call.1
$region0: #{tpu_custom_call.1}
  #allocation0 [shape = 'u32[]', space=smem, size = 0x4, offset = 0x4, fixed_abs, tag = 'smem constant byte address 0x4 - core index']
  #allocation1 [shape = 'u32[144,128]{1,0:T(1,128)}', space=vmem, size = 0x12000, scoped, tag = 'internal scratch']
  #allocation2 [shape = 'f32[128,32]{1,0:T(8,128)}', space=vmem, size = 0x10000, scoped, tag = 'scratch operand']
  #allocation3 [shape = 'bf16[128,32]{1,0:T(16,128)(2,1)}', space=vmem, size = 0x8000, scoped, tag = 'scratch operand']
  #allocation4 [shape = 'f32[2,32]{1,0:T(2,128)}', space=vmem, size = 0x400, scoped, tag = 'scratch operand']
  #allocation5 [shape = 'f32[2,32]{1,0:T(2,128)}', space=vmem, size = 0x400, scoped, tag = 'scratch operand']
  #allocation6 [shape = 'f32[1,1]{1,0:T(1,128)S(1)}', space=vmem, size = 0x200, scoped, tag = 'scoped memory for tpu_custom_call.1']
  %s0 = inlined_call_operand.vmem [shape: bf16[128,128], index: 0, kind: input, shape index: {}]
  %s1 = inlined_call_operand.vmem [shape: bf16[128,32], index: 1, kind: input, shape index: {}]
  %s2 = inlined_call_operand.vmem [shape: f32[1,32], index: 2, kind: input, shape index: {}]
  %s3 = inlined_call_operand.vmem [shape: f32[32,32], index: 3, kind: input, shape index: {}]
  %s4 = inlined_call_operand.vmem [shape: f32[1,32], index: 4, kind: input, shape index: {}]
  %s5 = inlined_call_operand.vmem [shape: f32[2,128], index: 5, kind: input, shape index: {}]
  %s6 = inlined_call_operand.vmem [shape: f32[2,1], index: 6, kind: input, shape index: {}]
  %s7 = inlined_call_operand.hbm [shape: f32[64,1024], index: 7, kind: input, shape index: {}]
  %s8 = inlined_call_operand.vmem [shape: f32[1,1024], index: 8, kind: input, shape index: {}]
  %s9 = inlined_call_operand.hbm [shape: f32[1024,256], index: 9, kind: input, shape index: {}]
  %s10 = inlined_call_operand.vmem [shape: f32[1,256], index: 10, kind: input, shape index: {}]
  %s11 = inlined_call_operand.vmem [shape: f32[256,1], index: 11, kind: input, shape index: {}]
  %s12 = inlined_call_operand.<no memory space> [shape: f32[1,1], index: 12, kind: input, shape index: {}]
  %s13 = inlined_call_operand.hbm [shape: f32[2,128], index: 13, kind: output, shape index: {}]
  %s14 = sld [smem:[#allocation0]]
  $region121: #{tpu_custom_call.1} parent=0
    _
  %s16 = ssub.s32 1, %s14
  %s17 = scalar_select 0, %s16, %s14
  %v18 = vstv %s12
  %19 = vst [vmem:[#allocation6] sm:$0x1] %v18
  $region1: #{tpu_custom_call.1} parent=0
    #allocation7 [shape = 'u8[262144]{0}', space=vmem, size = 0x40000, scoped, tag = 'input window, operand 7, single buffered']
    #allocation8 [shape = 's32[2]{0}', space=sflag, size = 0x8, scoped, tag = 'scoped memory for tpu_custom_call.1']
    #allocation9 [shape = 's32[2]{0}', space=sflag, size = 0x8, scoped, tag = 'scoped memory for tpu_custom_call.1']
    #allocation10 [shape = 'u8[1048576]{0}', space=vmem, size = 0x100000, scoped, tag = 'input window, operand 9, single buffered']
    #allocation11 [shape = 's32[1]{0}', space=sflag, size = 0x4, scoped, tag = 'scoped memory for tpu_custom_call.1']
    #allocation12 [shape = 'u8[1024]{0}', space=vmem, size = 0x400, scoped, tag = 'output window, operand 0, single buffered']
    %20 = vsyncpa [#allocation8], 0
    %21 = vsyncpa [#allocation11], 0
    %22 = vsyncpa [#allocation9], 0
    loop: start=0, step=1, limit=4
    $region2: #{tpu_custom_call.1} parent=1 // loop_pre_header
      _
    $region3: #{tpu_custom_call.1} parent=1 // loop_header
      %s24 = sphi 0, %s28
      %p25 = scmp.ge.s32.totalorder %s24, 4
      %s31 = sphi 0, %s50
      %s32 = sphi 0, %s46
      %s33 = sphi 0, %s42
      %s34 = sphi 0, %s31
      %s35 = sphi 0, %s32
      %s36 = sphi 0, %s33
      %s37 = sphi 0, %s34
      %s38 = sphi 0, %s35
      %s39 = sphi 0, %s36
      %s55 = sphi 0, %s57
      %s58 = sphi 0, %s55
      %s59 = sphi 0, %s58
      %s75 = sphi 0, %s59
      %s81 = sphi 0, %s83
      %s84 = sphi 0, %s81
      %s85 = sphi 0, %s84
      %s101 = sphi 0, %s85
      %s105 = sphi 0, %s105
      %s107 = sphi 0, %s105
      %s108 = sphi 0, %s107
      %s122 = sphi 0, %s108
      %s126 = sphi 0, %s126
      %s128 = sphi 0, %s126
      %s129 = sphi 0, %s128
      %s143 = sphi 0, %s129
      %s147 = sphi 0, %s147
      %s149 = sphi 0, %s147
      %s150 = sphi 0, %s149
      %s164 = sphi 0, %s150
      %s170 = sphi 0, %s172
      %s173 = sphi 0, %s170
      %s174 = sphi 0, %s173
      %s190 = sphi 0, %s174
      %s194 = sphi 0, %s194
      %s196 = sphi 0, %s194
      %s197 = sphi 0, %s196
      %s211 = sphi 0, %s197
      %s215 = sphi 0, %s215
      %s217 = sphi 0, %s215
      %s218 = sphi 0, %s217
      %s232 = sphi 0, %s218
      %s236 = sphi 0, %s236
      %s238 = sphi 0, %s236
      %s239 = sphi 0, %s238
      %s253 = sphi 0, %s239
      %s257 = sphi 0, %s257
      %s259 = sphi 0, %s257
      %s260 = sphi 0, %s259
      %s274 = sphi 0, %s260
      %s278 = sphi 0, %s278
      %s280 = sphi 0, %s278
      %s281 = sphi 0, %s280
      %s295 = sphi 0, %s281
      %s299 = sphi 0, %s299
      %s301 = sphi 0, %s299
      %s302 = sphi 0, %s301
      %s316 = sphi 0, %s302
      %s320 = sphi 0, %s320
      %s322 = sphi 0, %s320
      %s323 = sphi 0, %s322
      %s337 = sphi 0, %s323
      %s341 = sphi 0, %s341
      %s343 = sphi 0, %s341
      %s344 = sphi 0, %s343
      %s358 = sphi 0, %s344
    $region4: #{tpu_custom_call.1} parent=1 // loop_header_branch
      %27 = sbr.rel (%p25) target = $region8
    $region5: #{tpu_custom_call.1} parent=1 // loop_body
      %s29 = ssub.s32 %s24, 1
      %s30 = ssub.s32 %s24, 2
      %s40 = sadd.s32 1, %s33
      %p41 = scmp.ge.s32.totalorder %s40, 1
      %s42 = scalar_select %p41, 0, %s40
      %s43 = sadd.s32 1, %s32
      %s44 = scalar_select %p41, %s43, %s32
      %p45 = scmp.ge.s32.totalorder %s44, 1
      %s46 = scalar_select %p45, 0, %s44
      %s47 = sadd.s32 1, %s31
      %s48 = scalar_select %p45, %s47, %s31
      %p49 = scmp.ge.s32.totalorder %s48, 2
      %s50 = scalar_select %p49, 0, %s48
      %s51 = ssub.s32 %s32, %s46
      %s52 = ssub.s32 %s33, %s42
      %s53 = sor.u32 %s51, %s52
      %p54 = scmp.eq.s32.totalorder %s53, 0
      %s56 = sadd.s32 %s55, 1
      %s57 = scalar_select %p54, %s55, %s56
      %p60 = pneg %p54
      %p61 = scmp.eq.s32.totalorder %s24, 1
      %p62 = por %p60, %p61
      %p63 = scmp.ne.s32.totalorder %s55, %s58
      %p64 = scmp.eq.s32.totalorder %s24, 0
      %p65 = por %p63, %p64
      %p66 = scmp.ne.s32.totalorder %s55, %s58
      %p67 = scmp.eq.s32.totalorder %s29, 1
      %p68 = por %p66, %p67
      %p69 = scmp.ne.s32.totalorder %s58, %s59
      %p70 = scmp.eq.s32.totalorder %s29, 0
      %p71 = por %p69, %p70
      %p72 = scmp.ne.s32.totalorder %s58, %s59
      %p73 = scmp.eq.s32.totalorder %s30, 1
      %p74 = por %p72, %p73
      %p76 = scmp.ne.s32.totalorder %s59, %s75
      %p77 = scmp.eq.s32.totalorder %s30, 0
      %p78 = por %p76, %p77
      %s79 = ssub.s32 %s33, %s42
      %p80 = scmp.eq.s32.totalorder %s79, 0
      %s82 = sadd.s32 %s81, 1
      %s83 = scalar_select %p80, %s81, %s82
      %p86 = pneg %p80
      %p87 = scmp.eq.s32.totalorder %s24, 1
      %p88 = por %p86, %p87
      %p89 = scmp.ne.s32.totalorder %s81, %s84
      %p90 = scmp.eq.s32.totalorder %s24, 0
      %p91 = por %p89, %p90
      %p92 = scmp.ne.s32.totalorder %s81, %s84
      %p93 = scmp.eq.s32.totalorder %s29, 1
      %p94 = por %p92, %p93
      %p95 = scmp.ne.s32.totalorder %s84, %s85
      %p96 = scmp.eq.s32.totalorder %s29, 0
      %p97 = por %p95, %p96
      %p98 = scmp.ne.s32.totalorder %s84, %s85
      %p99 = scmp.eq.s32.totalorder %s30, 1
      %p100 = por %p98, %p99
      %p102 = scmp.ne.s32.totalorder %s85, %s101
      %p103 = scmp.eq.s32.totalorder %s30, 0
      %p104 = por %p102, %p103
      %s106 = sadd.s32 %s105, 1
      %p109 = scmp.eq.s32.totalorder %s24, 1
      %p110 = scmp.ne.s32.totalorder %s105, %s107
      %p111 = scmp.eq.s32.totalorder %s24, 0
      %p112 = por %p110, %p111
      %p113 = scmp.ne.s32.totalorder %s105, %s107
      %p114 = scmp.eq.s32.totalorder %s29, 1
      %p115 = por %p113, %p114
      %p116 = scmp.ne.s32.totalorder %s107, %s108
      %p117 = scmp.eq.s32.totalorder %s29, 0
      %p118 = por %p116, %p117
      %p119 = scmp.ne.s32.totalorder %s107, %s108
      %p120 = scmp.eq.s32.totalorder %s30, 1
      %p121 = por %p119, %p120
      %p123 = scmp.ne.s32.totalorder %s108, %s122
      %p124 = scmp.eq.s32.totalorder %s30, 0
      %p125 = por %p123, %p124
      %s127 = sadd.s32 %s126, 1
      %p130 = scmp.eq.s32.totalorder %s24, 1
      %p131 = scmp.ne.s32.totalorder %s126, %s128
      %p132 = scmp.eq.s32.totalorder %s24, 0
      %p133 = por %p131, %p132
      %p134 = scmp.ne.s32.totalorder %s126, %s128
      %p135 = scmp.eq.s32.totalorder %s29, 1
      %p136 = por %p134, %p135
      %p137 = scmp.ne.s32.totalorder %s128, %s129
      %p138 = scmp.eq.s32.totalorder %s29, 0
      %p139 = por %p137, %p138
      %p140 = scmp.ne.s32.totalorder %s128, %s129
      %p141 = scmp.eq.s32.totalorder %s30, 1
      %p142 = por %p140, %p141
      %p144 = scmp.ne.s32.totalorder %s129, %s143
      %p145 = scmp.eq.s32.totalorder %s30, 0
      %p146 = por %p144, %p145
      %s148 = sadd.s32 %s147, 1
      %p151 = scmp.eq.s32.totalorder %s24, 1
      %p152 = scmp.ne.s32.totalorder %s147, %s149
      %p153 = scmp.eq.s32.totalorder %s24, 0
      %p154 = por %p152, %p153
      %p155 = scmp.ne.s32.totalorder %s147, %s149
      %p156 = scmp.eq.s32.totalorder %s29, 1
      %p157 = por %p155, %p156
      %p158 = scmp.ne.s32.totalorder %s149, %s150
      %p159 = scmp.eq.s32.totalorder %s29, 0
      %p160 = por %p158, %p159
      %p161 = scmp.ne.s32.totalorder %s149, %s150
      %p162 = scmp.eq.s32.totalorder %s30, 1
      %p163 = por %p161, %p162
      %p165 = scmp.ne.s32.totalorder %s150, %s164
      %p166 = scmp.eq.s32.totalorder %s30, 0
      %p167 = por %p165, %p166
      %s168 = ssub.s32 %s32, %s46
      %p169 = scmp.eq.s32.totalorder %s168, 0
      %s171 = sadd.s32 %s170, 1
      %s172 = scalar_select %p169, %s170, %s171
      %p175 = pneg %p169
      %p176 = scmp.eq.s32.totalorder %s24, 1
      %p177 = por %p175, %p176
      %p178 = scmp.ne.s32.totalorder %s170, %s173
      %p179 = scmp.eq.s32.totalorder %s24, 0
      %p180 = por %p178, %p179
      %p181 = scmp.ne.s32.totalorder %s170, %s173
      %p182 = scmp.eq.s32.totalorder %s29, 1
      %p183 = por %p181, %p182
      %p184 = scmp.ne.s32.totalorder %s173, %s174
      %p185 = scmp.eq.s32.totalorder %s29, 0
      %p186 = por %p184, %p185
      %p187 = scmp.ne.s32.totalorder %s173, %s174
      %p188 = scmp.eq.s32.totalorder %s30, 1
      %p189 = por %p187, %p188
      %p191 = scmp.ne.s32.totalorder %s174, %s190
      %p192 = scmp.eq.s32.totalorder %s30, 0
      %p193 = por %p191, %p192
      %s195 = sadd.s32 %s194, 1
      %p198 = scmp.eq.s32.totalorder %s24, 1
      %p199 = scmp.ne.s32.totalorder %s194, %s196
      %p200 = scmp.eq.s32.totalorder %s24, 0
      %p201 = por %p199, %p200
      %p202 = scmp.ne.s32.totalorder %s194, %s196
      %p203 = scmp.eq.s32.totalorder %s29, 1
      %p204 = por %p202, %p203
      %p205 = scmp.ne.s32.totalorder %s196, %s197
      %p206 = scmp.eq.s32.totalorder %s29, 0
      %p207 = por %p205, %p206
      %p208 = scmp.ne.s32.totalorder %s196, %s197
      %p209 = scmp.eq.s32.totalorder %s30, 1
      %p210 = por %p208, %p209
      %p212 = scmp.ne.s32.totalorder %s197, %s211
      %p213 = scmp.eq.s32.totalorder %s30, 0
      %p214 = por %p212, %p213
      %s216 = sadd.s32 %s215, 1
      %p219 = scmp.eq.s32.totalorder %s24, 1
      %p220 = scmp.ne.s32.totalorder %s215, %s217
      %p221 = scmp.eq.s32.totalorder %s24, 0
      %p222 = por %p220, %p221
      %p223 = scmp.ne.s32.totalorder %s215, %s217
      %p224 = scmp.eq.s32.totalorder %s29, 1
      %p225 = por %p223, %p224
      %p226 = scmp.ne.s32.totalorder %s217, %s218
      %p227 = scmp.eq.s32.totalorder %s29, 0
      %p228 = por %p226, %p227
      %p229 = scmp.ne.s32.totalorder %s217, %s218
      %p230 = scmp.eq.s32.totalorder %s30, 1
      %p231 = por %p229, %p230
      %p233 = scmp.ne.s32.totalorder %s218, %s232
      %p234 = scmp.eq.s32.totalorder %s30, 0
      %p235 = por %p233, %p234
      %s237 = sadd.s32 %s236, 1
      %p240 = scmp.eq.s32.totalorder %s24, 1
      %p241 = scmp.ne.s32.totalorder %s236, %s238
      %p242 = scmp.eq.s32.totalorder %s24, 0
      %p243 = por %p241, %p242
      %p244 = scmp.ne.s32.totalorder %s236, %s238
      %p245 = scmp.eq.s32.totalorder %s29, 1
      %p246 = por %p244, %p245
      %p247 = scmp.ne.s32.totalorder %s238, %s239
      %p248 = scmp.eq.s32.totalorder %s29, 0
      %p249 = por %p247, %p248
      %p250 = scmp.ne.s32.totalorder %s238, %s239
      %p251 = scmp.eq.s32.totalorder %s30, 1
      %p252 = por %p250, %p251
      %p254 = scmp.ne.s32.totalorder %s239, %s253
      %p255 = scmp.eq.s32.totalorder %s30, 0
      %p256 = por %p254, %p255
      %s258 = sadd.s32 %s257, 1
      %p261 = scmp.eq.s32.totalorder %s24, 1
      %p262 = scmp.ne.s32.totalorder %s257, %s259
      %p263 = scmp.eq.s32.totalorder %s24, 0
      %p264 = por %p262, %p263
      %p265 = scmp.ne.s32.totalorder %s257, %s259
      %p266 = scmp.eq.s32.totalorder %s29, 1
      %p267 = por %p265, %p266
      %p268 = scmp.ne.s32.totalorder %s259, %s260
      %p269 = scmp.eq.s32.totalorder %s29, 0
      %p270 = por %p268, %p269
      %p271 = scmp.ne.s32.totalorder %s259, %s260
      %p272 = scmp.eq.s32.totalorder %s30, 1
      %p273 = por %p271, %p272
      %p275 = scmp.ne.s32.totalorder %s260, %s274
      %p276 = scmp.eq.s32.totalorder %s30, 0
      %p277 = por %p275, %p276
      %s279 = sadd.s32 %s278, 1
      %p282 = scmp.eq.s32.totalorder %s24, 1
      %p283 = scmp.ne.s32.totalorder %s278, %s280
      %p284 = scmp.eq.s32.totalorder %s24, 0
      %p285 = por %p283, %p284
      %p286 = scmp.ne.s32.totalorder %s278, %s280
      %p287 = scmp.eq.s32.totalorder %s29, 1
      %p288 = por %p286, %p287
      %p289 = scmp.ne.s32.totalorder %s280, %s281
      %p290 = scmp.eq.s32.totalorder %s29, 0
      %p291 = por %p289, %p290
      %p292 = scmp.ne.s32.totalorder %s280, %s281
      %p293 = scmp.eq.s32.totalorder %s30, 1
      %p294 = por %p292, %p293
      %p296 = scmp.ne.s32.totalorder %s281, %s295
      %p297 = scmp.eq.s32.totalorder %s30, 0
      %p298 = por %p296, %p297
      %s300 = sadd.s32 %s299, 1
      %p303 = scmp.eq.s32.totalorder %s24, 1
      %p304 = scmp.ne.s32.totalorder %s299, %s301
      %p305 = scmp.eq.s32.totalorder %s24, 0
      %p306 = por %p304, %p305
      %p307 = scmp.ne.s32.totalorder %s299, %s301
      %p308 = scmp.eq.s32.totalorder %s29, 1
      %p309 = por %p307, %p308
      %p310 = scmp.ne.s32.totalorder %s301, %s302
      %p311 = scmp.eq.s32.totalorder %s29, 0
      %p312 = por %p310, %p311
      %p313 = scmp.ne.s32.totalorder %s301, %s302
      %p314 = scmp.eq.s32.totalorder %s30, 1
      %p315 = por %p313, %p314
      %p317 = scmp.ne.s32.totalorder %s302, %s316
      %p318 = scmp.eq.s32.totalorder %s30, 0
      %p319 = por %p317, %p318
      %s321 = sadd.s32 %s320, 1
      %p324 = scmp.eq.s32.totalorder %s24, 1
      %p325 = scmp.ne.s32.totalorder %s320, %s322
      %p326 = scmp.eq.s32.totalorder %s24, 0
      %p327 = por %p325, %p326
      %p328 = scmp.ne.s32.totalorder %s320, %s322
      %p329 = scmp.eq.s32.totalorder %s29, 1
      %p330 = por %p328, %p329
      %p331 = scmp.ne.s32.totalorder %s322, %s323
      %p332 = scmp.eq.s32.totalorder %s29, 0
      %p333 = por %p331, %p332
      %p334 = scmp.ne.s32.totalorder %s322, %s323
      %p335 = scmp.eq.s32.totalorder %s30, 1
      %p336 = por %p334, %p335
      %p338 = scmp.ne.s32.totalorder %s323, %s337
      %p339 = scmp.eq.s32.totalorder %s30, 0
      %p340 = por %p338, %p339
      %s342 = sadd.s32 %s341, 1
      %p345 = scmp.eq.s32.totalorder %s24, 1
      %p346 = scmp.ne.s32.totalorder %s341, %s343
      %p347 = scmp.eq.s32.totalorder %s24, 0
      %p348 = por %p346, %p347
      %p349 = scmp.ne.s32.totalorder %s341, %s343
      %p350 = scmp.eq.s32.totalorder %s29, 1
      %p351 = por %p349, %p350
      %p352 = scmp.ne.s32.totalorder %s343, %s344
      %p353 = scmp.eq.s32.totalorder %s29, 0
      %p354 = por %p352, %p353
      %p355 = scmp.ne.s32.totalorder %s343, %s344
      %p356 = scmp.eq.s32.totalorder %s30, 1
      %p357 = por %p355, %p356
      %p359 = scmp.ne.s32.totalorder %s344, %s358
      %p360 = scmp.eq.s32.totalorder %s30, 0
      %p361 = por %p359, %p360
      %p362 = scmp.le.s32.totalorder 1, %s24
      %p363 = scmp.lt.s32.totalorder %s24, 3
      %p364 = pnand %p362, %p363
      %p365 = pneg %p364
      // Predicated region
      $region9: #{tpu_custom_call.1} parent=5 // pred_check
        _
      $region10: #{tpu_custom_call.1} parent=5 // pred_check_branch
        %367 = sbr.rel (%p364) target = $region12
      $region11: #{tpu_custom_call.1} parent=5 // pred_region
        %s368 = ssub.s32 %s24, 1
        // Predicated region
        $region13: #{tpu_custom_call.1} parent=11 // pred_check
          %p369 = pneg %p71
        $region14: #{tpu_custom_call.1} parent=11 // pred_check_branch
          %371 = sbr.rel (%p369) target = $region16
        $region15: #{tpu_custom_call.1} parent=11 // pred_region
          %s372 = smul.u32 16, %s35
          %p373 = scmp.lt.s32.totalorder %s372, 15
          %s374 = scalar_select %p373, %s372, 15
          %p375 = scmp.lt.s32.totalorder %s36, 0
          %s376 = scalar_select %p375, %s36, 0
          %s377 = sadd.s32 %s376, %s374
          %s378 = smul.addr %s377, 4
          %s379 = scalar_lea.vmem %s0, %s378
          %s380 = smul.u32 16, %s35
        $region16: #{tpu_custom_call.1} parent=11 // pred_fallthru
          _
        // Predicated region
        $region17: #{tpu_custom_call.1} parent=11 // pred_check
          %p381 = pneg %p97
        $region18: #{tpu_custom_call.1} parent=11 // pred_check_branch
          %383 = sbr.rel (%p381) target = $region20
        $region19: #{tpu_custom_call.1} parent=11 // pred_region
          %s384 = smul.u32 16, %s36
          %p385 = scmp.lt.s32.totalorder %s384, 15
          %s386 = scalar_select %p385, %s384, 15
          %s387 = smul.addr %s386, 4
          %s388 = scalar_lea.vmem %s1, %s387
          %s389 = smul.u32 16, %s36
        $region20: #{tpu_custom_call.1} parent=11 // pred_fallthru
          _
        // Predicated region
        $region21: #{tpu_custom_call.1} parent=11 // pred_check
          %p390 = pneg %p118
        $region22: #{tpu_custom_call.1} parent=11 // pred_check_branch
          %392 = sbr.rel (%p390) target = $region24
        $region23: #{tpu_custom_call.1} parent=11 // pred_region
          _
        $region24: #{tpu_custom_call.1} parent=11 // pred_fallthru
          _
        // Predicated region
        $region25: #{tpu_custom_call.1} parent=11 // pred_check
          %p393 = pneg %p139
        $region26: #{tpu_custom_call.1} parent=11 // pred_check_branch
          %395 = sbr.rel (%p393) target = $region28
        $region27: #{tpu_custom_call.1} parent=11 // pred_region
          _
        $region28: #{tpu_custom_call.1} parent=11 // pred_fallthru
          _
        // Predicated region
        $region29: #{tpu_custom_call.1} parent=11 // pred_check
          %p396 = pneg %p160
        $region30: #{tpu_custom_call.1} parent=11 // pred_check_branch
          %398 = sbr.rel (%p396) target = $region32
        $region31: #{tpu_custom_call.1} parent=11 // pred_region
          _
        $region32: #{tpu_custom_call.1} parent=11 // pred_fallthru
          _
        // Predicated region
        $region33: #{tpu_custom_call.1} parent=11 // pred_check
          %p399 = pneg %p186
        $region34: #{tpu_custom_call.1} parent=11 // pred_check_branch
          %401 = sbr.rel (%p399) target = $region36
        $region35: #{tpu_custom_call.1} parent=11 // pred_region
          %p402 = scmp.lt.s32.totalorder %s35, 0
          %s403 = scalar_select %p402, %s35, 0
          %s404 = smul.addr %s403, 2
          %s405 = scalar_lea.vmem %s5, %s404
        $region36: #{tpu_custom_call.1} parent=11 // pred_fallthru
          _
        // Predicated region
        $region37: #{tpu_custom_call.1} parent=11 // pred_check
          %p406 = pneg %p207
        $region38: #{tpu_custom_call.1} parent=11 // pred_check_branch
          %408 = sbr.rel (%p406) target = $region40
        $region39: #{tpu_custom_call.1} parent=11 // pred_region
          _
        $region40: #{tpu_custom_call.1} parent=11 // pred_fallthru
          _
        // Predicated region
        $region41: #{tpu_custom_call.1} parent=11 // pred_check
          %p409 = pneg %p228
        $region42: #{tpu_custom_call.1} parent=11 // pred_check_branch
          %411 = sbr.rel (%p409) target = $region44
        $region43: #{tpu_custom_call.1} parent=11 // pred_region
          %s413 = ssub.s32 8192, 8192
          %414 = vsyncadd [#allocation8], %s413
          %s415 = sshll.u32 [#allocation7], 4
          %s416 = int_to_ptr.vmem [resolvable:$true] %s415
          %421 = dma.hbm_to_vmem [thread:$0]  %s7, 8192, %s416, [#allocation8], 1024, 1024, 64
        $region44: #{tpu_custom_call.1} parent=11 // pred_fallthru
          _
        // Predicated region
        $region45: #{tpu_custom_call.1} parent=11 // pred_check
          %p422 = pneg %p249
        $region46: #{tpu_custom_call.1} parent=11 // pred_check_branch
          %424 = sbr.rel (%p422) target = $region48
        $region47: #{tpu_custom_call.1} parent=11 // pred_region
          _
        $region48: #{tpu_custom_call.1} parent=11 // pred_fallthru
          _
        // Predicated region
        $region49: #{tpu_custom_call.1} parent=11 // pred_check
          %p425 = pneg %p270
        $region50: #{tpu_custom_call.1} parent=11 // pred_check_branch
          %427 = sbr.rel (%p425) target = $region52
        $region51: #{tpu_custom_call.1} parent=11 // pred_region
          %s429 = ssub.s32 32768, 32768
          %430 = vsyncadd [#allocation11], %s429
          %s431 = sshll.u32 [#allocation10], 4
          %s432 = int_to_ptr.vmem [resolvable:$true] %s431
          %437 = dma.hbm_to_vmem [thread:$0]  %s9, 32768, %s432, [#allocation11], 256, 256, 16
        $region52: #{tpu_custom_call.1} parent=11 // pred_fallthru
          _
        // Predicated region
        $region53: #{tpu_custom_call.1} parent=11 // pred_check
          %p438 = pneg %p291
        $region54: #{tpu_custom_call.1} parent=11 // pred_check_branch
          %440 = sbr.rel (%p438) target = $region56
        $region55: #{tpu_custom_call.1} parent=11 // pred_region
          _
        $region56: #{tpu_custom_call.1} parent=11 // pred_fallthru
          _
        // Predicated region
        $region57: #{tpu_custom_call.1} parent=11 // pred_check
          %p441 = pneg %p312
        $region58: #{tpu_custom_call.1} parent=11 // pred_check_branch
          %443 = sbr.rel (%p441) target = $region60
        $region59: #{tpu_custom_call.1} parent=11 // pred_region
          _
        $region60: #{tpu_custom_call.1} parent=11 // pred_fallthru
          _
        // Predicated region
        $region61: #{tpu_custom_call.1} parent=11 // pred_check
          %p444 = pneg %p333
        $region62: #{tpu_custom_call.1} parent=11 // pred_check_branch
          %446 = sbr.rel (%p444) target = $region64
        $region63: #{tpu_custom_call.1} parent=11 // pred_region
          _
        $region64: #{tpu_custom_call.1} parent=11 // pred_fallthru
          _
      $region12: #{tpu_custom_call.1} parent=5 // pred_fallthru
        _
      %p447 = scmp.lt.s32.totalorder %s24, 2
      // Predicated region
      $region65: #{tpu_custom_call.1} parent=5 // pred_check
        %p448 = pneg %p447
      $region66: #{tpu_custom_call.1} parent=5 // pred_check_branch
        %450 = sbr.rel (%p448) target = $region68
      $region67: #{tpu_custom_call.1} parent=5 // pred_region
        _
      $region68: #{tpu_custom_call.1} parent=5 // pred_fallthru
        _
      %p451 = scmp.le.s32.totalorder 1, %s24
      %p452 = scmp.lt.s32.totalorder %s24, 3
      %p453 = pnand %p451, %p452
      %p454 = pneg %p453
      // Predicated region
      $region69: #{tpu_custom_call.1} parent=5 // pred_check
        _
      $region70: #{tpu_custom_call.1} parent=5 // pred_check_branch
        %456 = sbr.rel (%p453) target = $region72
      $region71: #{tpu_custom_call.1} parent=5 // pred_region
        %s457 = ssub.s32 %s24, 1
        // Predicated region
        $region73: #{tpu_custom_call.1} parent=71 // pred_check
          %p458 = pneg %p228
        $region74: #{tpu_custom_call.1} parent=71 // pred_check_branch
          %460 = sbr.rel (%p458) target = $region76
        $region75: #{tpu_custom_call.1} parent=71 // pred_region
          %461 = dma.done [#allocation8], 8192
        $region76: #{tpu_custom_call.1} parent=71 // pred_fallthru
          _
        // Predicated region
        $region77: #{tpu_custom_call.1} parent=71 // pred_check
          %p462 = pneg %p270
        $region78: #{tpu_custom_call.1} parent=71 // pred_check_branch
          %464 = sbr.rel (%p462) target = $region80
        $region79: #{tpu_custom_call.1} parent=71 // pred_region
          %465 = dma.done [#allocation11], 32768
        $region80: #{tpu_custom_call.1} parent=71 // pred_fallthru
          _
        %s466 = smul.u32 16, %s35
        %p467 = scmp.lt.s32.totalorder %s466, 15
        %s468 = scalar_select %p467, %s466, 15
        %p469 = scmp.lt.s32.totalorder %s36, 0
        %s470 = scalar_select %p469, %s36, 0
        %s471 = sadd.s32 %s470, %s468
        %s472 = smul.addr %s471, 4
        %s473 = scalar_lea.vmem %s0, %s472
        %p474 = pneg %p71
        %p475 = pneg %p68
        %s476 = smul.u32 16, %s36
        %p477 = scmp.lt.s32.totalorder %s476, 15
        %s478 = scalar_select %p477, %s476, 15
        %s479 = smul.addr %s478, 4
        %s480 = scalar_lea.vmem %s1, %s479
        %p481 = pneg %p97
        %p482 = pneg %p94
        %p483 = pneg %p118
        %p484 = pneg %p115
        %p485 = pneg %p139
        %p486 = pneg %p136
        %p487 = pneg %p160
        %p488 = pneg %p157
        %p489 = scmp.lt.s32.totalorder %s35, 0
        %s490 = scalar_select %p489, %s35, 0
        %s491 = smul.addr %s490, 2
        %s492 = scalar_lea.vmem %s5, %s491
        %p493 = pneg %p186
        %p494 = pneg %p183
        %p495 = pneg %p207
        %p496 = pneg %p204
        %p497 = pneg %p228
        %p498 = pneg %p225
        %p499 = pneg %p249
        %p500 = pneg %p246
        %p501 = pneg %p270
        %p502 = pneg %p267
        %p503 = pneg %p291
        %p504 = pneg %p288
        %p505 = pneg %p312
        %p506 = pneg %p309
        %p507 = pneg %p333
        %p508 = pneg %p330
        %p509 = pneg %p354
        %p510 = pneg %p351
        %s511 = smul.u32 16, %s35
        %p512 = scmp.lt.s32.totalorder %s511, 15
        %s513 = scalar_select %p512, %s511, 15
        %p514 = scmp.lt.s32.totalorder %s36, 0
        %s515 = scalar_select %p514, %s36, 0
        %s516 = sadd.s32 %s515, %s513
        %s517 = smul.addr %s516, 4
        %s518 = scalar_lea.vmem %s0, %s517
        %s519 = smul.u32 16, %s35
        %s520 = smul.u32 16, %s36
        %p521 = scmp.lt.s32.totalorder %s520, 15
        %s522 = scalar_select %p521, %s520, 15
        %s523 = smul.addr %s522, 4
        %s524 = scalar_lea.vmem %s1, %s523
        %s525 = smul.u32 16, %s36
        %p526 = scmp.lt.s32.totalorder %s35, 0
        %s527 = scalar_select %p526, %s35, 0
        %s528 = smul.addr %s527, 2
        %s529 = scalar_lea.vmem %s5, %s528
        %p531 = scmp.eq.s32.totalorder %s34, 0
        %p532 = scmp.eq.s32.totalorder %s35, 0
        %p533 = pnand %p531, %p532
        %p534 = pneg %p533
        %p535 = scmp.eq.s32.totalorder %s36, 0
        %p536 = pnand %p534, %p535
        %p537 = pneg %p536
        // Predicated region
        $region81: #{tpu_custom_call.1} parent=71 // pred_check
          _
        $region82: #{tpu_custom_call.1} parent=71 // pred_check_branch
          %539 = sbr.rel (%p536) target = $region84
        $region83: #{tpu_custom_call.1} parent=71 // pred_region
          %vm540 = vcmask 254976
          %541 = vst.msk [vmem:[#allocation4] sm:$0x3] %vm540, 0.0
          %542 = vst.msk [vmem:[#allocation5] sm:$0x3] %vm540, -1e+30
        $region84: #{tpu_custom_call.1} parent=71 // pred_fallthru
          _
        // Predicated region
        $region85: #{tpu_custom_call.1} parent=71 // pred_check
          %p543 = pneg %p535
        $region86: #{tpu_custom_call.1} parent=71 // pred_check_branch
          %545 = sbr.rel (%p543) target = $region88
        $region87: #{tpu_custom_call.1} parent=71 // pred_region
          %vm546 = vcmask 261120
          %547 = vst.msk [vmem:[#allocation2] sm:$0xff] %vm546, 0.0
          %548 = vst.msk [vmem:[#allocation2 + $0x8] sm:$0xff] %vm546, 0.0
          %549 = vst.msk [vmem:[#allocation2 + $0x10] sm:$0xff] %vm546, 0.0
          %550 = vst.msk [vmem:[#allocation2 + $0x18] sm:$0xff] %vm546, 0.0
          %551 = vst.msk [vmem:[#allocation2 + $0x20] sm:$0xff] %vm546, 0.0
          %552 = vst.msk [vmem:[#allocation2 + $0x28] sm:$0xff] %vm546, 0.0
          %553 = vst.msk [vmem:[#allocation2 + $0x30] sm:$0xff] %vm546, 0.0
          %554 = vst.msk [vmem:[#allocation2 + $0x38] sm:$0xff] %vm546, 0.0
          %555 = vst.msk [vmem:[#allocation2 + $0x40] sm:$0xff] %vm546, 0.0
          %556 = vst.msk [vmem:[#allocation2 + $0x48] sm:$0xff] %vm546, 0.0
          %557 = vst.msk [vmem:[#allocation2 + $0x50] sm:$0xff] %vm546, 0.0
          %558 = vst.msk [vmem:[#allocation2 + $0x58] sm:$0xff] %vm546, 0.0
          %559 = vst.msk [vmem:[#allocation2 + $0x60] sm:$0xff] %vm546, 0.0
          %560 = vst.msk [vmem:[#allocation2 + $0x68] sm:$0xff] %vm546, 0.0
          %561 = vst.msk [vmem:[#allocation2 + $0x70] sm:$0xff] %vm546, 0.0
          %562 = vst.msk [vmem:[#allocation2 + $0x78] sm:$0xff] %vm546, 0.0
        $region88: #{tpu_custom_call.1} parent=71 // pred_fallthru
          _
        %v563 = vld [vmem:[%s518] sm:$0xf]
        %v564 = vld [vmem:[%s518 + $0x4] sm:$0xf]
        %v565 = vld [vmem:[%s518 + $0x8] sm:$0xf]
        %v566 = vld [vmem:[%s518 + $0xc] sm:$0xf]
        %v567 = vld [vmem:[%s518 + $0x10] sm:$0xf]
        %v568 = vld [vmem:[%s518 + $0x14] sm:$0xf]
        %v569 = vld [vmem:[%s518 + $0x18] sm:$0xf]
        %v570 = vld [vmem:[%s518 + $0x1c] sm:$0xf]
        %v571 = vld [vmem:[%s518 + $0x20] sm:$0xf]
        %v572 = vld [vmem:[%s518 + $0x24] sm:$0xf]
        %v573 = vld [vmem:[%s518 + $0x28] sm:$0xf]
        %v574 = vld [vmem:[%s518 + $0x2c] sm:$0xf]
        %v575 = vld [vmem:[%s518 + $0x30] sm:$0xf]
        %v576 = vld [vmem:[%s518 + $0x34] sm:$0xf]
        %v577 = vld [vmem:[%s518 + $0x38] sm:$0xf]
        %v578 = vld [vmem:[%s518 + $0x3c] sm:$0xf]
        // Predicated region
        $region89: #{tpu_custom_call.1} parent=71 // pred_check
          %p579 = pneg %p531
        $region90: #{tpu_custom_call.1} parent=71 // pred_check_branch
          %581 = sbr.rel (%p579) target = $region92
        $region91: #{tpu_custom_call.1} parent=71 // pred_region
          %v582 = vld [vmem:[#allocation2] sm:$0xff]
          %v583 = vld [vmem:[#allocation2 + $0x8] sm:$0xff]
          %v584 = vld [vmem:[#allocation2 + $0x10] sm:$0xff]
          %v585 = vld [vmem:[#allocation2 + $0x18] sm:$0xff]
          %v586 = vld [vmem:[#allocation2 + $0x20] sm:$0xff]
          %v587 = vld [vmem:[#allocation2 + $0x28] sm:$0xff]
          %v588 = vld [vmem:[#allocation2 + $0x30] sm:$0xff]
          %v589 = vld [vmem:[#allocation2 + $0x38] sm:$0xff]
          %v590 = vld [vmem:[#allocation2 + $0x40] sm:$0xff]
          %v591 = vld [vmem:[#allocation2 + $0x48] sm:$0xff]
          %v592 = vld [vmem:[#allocation2 + $0x50] sm:$0xff]
          %v593 = vld [vmem:[#allocation2 + $0x58] sm:$0xff]
          %v594 = vld [vmem:[#allocation2 + $0x60] sm:$0xff]
          %v595 = vld [vmem:[#allocation2 + $0x68] sm:$0xff]
          %v596 = vld [vmem:[#allocation2 + $0x70] sm:$0xff]
          %v597 = vld [vmem:[#allocation2 + $0x78] sm:$0xff]
          %v598 = vld [vmem:[%s524] sm:$0xf]
          %v599 = vld [vmem:[%s524 + $0x4] sm:$0xf]
          %v600 = vld [vmem:[%s524 + $0x8] sm:$0xf]
          %v601 = vld [vmem:[%s524 + $0xc] sm:$0xf]
          %v602 = vld [vmem:[%s524 + $0x10] sm:$0xf]
          %v603 = vld [vmem:[%s524 + $0x14] sm:$0xf]
          %v604 = vld [vmem:[%s524 + $0x18] sm:$0xf]
          %v605 = vld [vmem:[%s524 + $0x1c] sm:$0xf]
          %v606 = vld [vmem:[%s524 + $0x20] sm:$0xf]
          %v607 = vld [vmem:[%s524 + $0x24] sm:$0xf]
          %v608 = vld [vmem:[%s524 + $0x28] sm:$0xf]
          %v609 = vld [vmem:[%s524 + $0x2c] sm:$0xf]
          %v610 = vld [vmem:[%s524 + $0x30] sm:$0xf]
          %v611 = vld [vmem:[%s524 + $0x34] sm:$0xf]
          %v612 = vld [vmem:[%s524 + $0x38] sm:$0xf]
          %v613 = vld [vmem:[%s524 + $0x3c] sm:$0xf]
          %v630 = vunpack.c.l.b16 %v563
          %v631 = vunpack.c.l.b16 %v564
          %v632 = vunpack.c.l.b16 %v565
          %v633 = vunpack.c.l.b16 %v566
          %v634 = vunpack.c.l.b16 %v567
          %v635 = vunpack.c.l.b16 %v568
          %v636 = vunpack.c.l.b16 %v569
          %v637 = vunpack.c.l.b16 %v570
          %v638 = vunpack.c.l.b16 %v571
          %v639 = vunpack.c.l.b16 %v572
          %v640 = vunpack.c.l.b16 %v573
          %v641 = vunpack.c.l.b16 %v574
          %v642 = vunpack.c.l.b16 %v575
          %v643 = vunpack.c.l.b16 %v576
          %v644 = vunpack.c.l.b16 %v577
          %v645 = vunpack.c.l.b16 %v578
          %v646 = vpack.c.b16 %v631, %v630
          %v647 = vpack.c.b16 %v633, %v632
          %v648 = vpack.c.b16 %v635, %v634
          %v649 = vpack.c.b16 %v637, %v636
          %v650 = vpack.c.b16 %v639, %v638
          %v651 = vpack.c.b16 %v641, %v640
          %v652 = vpack.c.b16 %v643, %v642
          %v653 = vpack.c.b16 %v645, %v644
          %v678 = vunpack.c.l.b16 %v598
          %v679 = vunpack.c.l.b16 %v599
          %v680 = vunpack.c.l.b16 %v600
          %v681 = vunpack.c.l.b16 %v601
          %v682 = vunpack.c.l.b16 %v602
          %v683 = vunpack.c.l.b16 %v603
          %v684 = vunpack.c.l.b16 %v604
          %v685 = vunpack.c.l.b16 %v605
          %v686 = vunpack.c.l.b16 %v606
          %v687 = vunpack.c.l.b16 %v607
          %v688 = vunpack.c.l.b16 %v608
          %v689 = vunpack.c.l.b16 %v609
          %v690 = vunpack.c.l.b16 %v610
          %v691 = vunpack.c.l.b16 %v611
          %v692 = vunpack.c.l.b16 %v612
          %v693 = vunpack.c.l.b16 %v613
          %v694 = vpack.c.b16 %v679, %v678
          %v695 = vpack.c.b16 %v681, %v680
          %v696 = vpack.c.b16 %v683, %v682
          %v697 = vpack.c.b16 %v685, %v684
          %v698 = vpack.c.b16 %v687, %v686
          %v699 = vpack.c.b16 %v689, %v688
          %v700 = vpack.c.b16 %v691, %v690
          %v701 = vpack.c.b16 %v693, %v692
          %710 = vmatprep.subr.bf16.mxu0 0
          %711 = vmatpush1.bf16.msra.mxu0 %v694
          %712 = vmatprep.subr.bf16.mxu0 0
          %713 = vmatpush1.bf16.msra.mxu0 %v695
          %714 = vmatprep.subr.bf16.mxu0 0
          %715 = vmatpush1.bf16.msra.mxu0 %v696
          %716 = vmatprep.subr.bf16.mxu0 0
          %717 = vmatpush1.bf16.msra.mxu0 %v697
          %718 = vmatprep.subr.bf16.mxu0 0
          %719 = vmatpush1.bf16.msra.mxu0 %v698
          %720 = vmatprep.subr.bf16.mxu0 0
          %721 = vmatpush1.bf16.msra.mxu0 %v699
          %722 = vmatprep.subr.bf16.mxu0 0
          %723 = vmatpush1.bf16.msra.mxu0 %v700
          %724 = vmatprep.subr.bf16.mxu0 0
          %725 = vmatpush1.bf16.msra.mxu0 %v701
          %726 = vmatprep.subr.bf16.mxu0 0
          %727 = vmatpush1.bf16.msra.mxu0 0
          %728 = vmatprep.subr.bf16.mxu0 0
          %729 = vmatpush1.bf16.msra.mxu0 0
          %730 = vmatprep.subr.bf16.mxu0 0
          %731 = vmatpush1.bf16.msra.mxu0 0
          %732 = vmatprep.subr.bf16.mxu0 0
          %733 = vmatpush1.bf16.msra.mxu0 0
          %734 = vmatprep.subr.bf16.mxu0 0
          %735 = vmatpush1.bf16.msra.mxu0 0
          %736 = vmatprep.subr.bf16.mxu0 0
          %737 = vmatpush1.bf16.msra.mxu0 0
          %738 = vmatprep.subr.bf16.mxu0 0
          %739 = vmatpush1.bf16.msra.mxu0 0
          %740 = vmatprep.subr.bf16.mxu0 0
          %741 = vmatpush1.bf16.msra.mxu0 0
          %742 = vmatprep.mubr.bf16.mxu0 0
          %743 = vmatmul.mubr.bf16.gmra.mrb[0].mxu0 %v646
          %v744 = vpop.f32.mrb[0].mxu0
          %v745 = vadd.f32 0.0, %v744
          %v746 = vpop.f32.mrb[0].mxu0
          %v747 = vpop.f32.mrb[0].mxu0
          %v748 = vadd.f32 0.0, %v747
          %v749 = vpop.f32.mrb[0].mxu0
          %750 = vmatprep.mubr.bf16.mxu0 0
          %751 = vmatmul.mubr.bf16.gmra.mrb[0].mxu0 %v647
          %v752 = vpop.f32.mrb[0].mxu0
          %v753 = vadd.f32 0.0, %v752
          %v754 = vpop.f32.mrb[0].mxu0
          %v755 = vpop.f32.mrb[0].mxu0
          %v756 = vadd.f32 0.0, %v755
          %v757 = vpop.f32.mrb[0].mxu0
          %758 = vmatprep.mubr.bf16.mxu0 0
          %759 = vmatmul.mubr.bf16.gmra.mrb[0].mxu0 %v648
          %v760 = vpop.f32.mrb[0].mxu0
          %v761 = vadd.f32 0.0, %v760
          %v762 = vpop.f32.mrb[0].mxu0
          %v763 = vpop.f32.mrb[0].mxu0
          %v764 = vadd.f32 0.0, %v763
          %v765 = vpop.f32.mrb[0].mxu0
          %766 = vmatprep.mubr.bf16.mxu0 0
          %767 = vmatmul.mubr.bf16.gmra.mrb[0].mxu0 %v649
          %v768 = vpop.f32.mrb[0].mxu0
          %v769 = vadd.f32 0.0, %v768
          %v770 = vpop.f32.mrb[0].mxu0
          %v771 = vpop.f32.mrb[0].mxu0
          %v772 = vadd.f32 0.0, %v771
          %v773 = vpop.f32.mrb[0].mxu0
          %774 = vmatprep.mubr.bf16.mxu0 0
          %775 = vmatmul.mubr.bf16.gmra.mrb[0].mxu0 %v650
          %v776 = vpop.f32.mrb[0].mxu0
          %v777 = vadd.f32 0.0, %v776
          %v778 = vpop.f32.mrb[0].mxu0
          %v779 = vpop.f32.mrb[0].mxu0
          %v780 = vadd.f32 0.0, %v779
          %v781 = vpop.f32.mrb[0].mxu0
          %782 = vmatprep.mubr.bf16.mxu0 0
          %783 = vmatmul.mubr.bf16.gmra.mrb[0].mxu0 %v651
          %v784 = vpop.f32.mrb[0].mxu0
          %v785 = vadd.f32 0.0, %v784
          %v786 = vpop.f32.mrb[0].mxu0
          %v787 = vpop.f32.mrb[0].mxu0
          %v788 = vadd.f32 0.0, %v787
          %v789 = vpop.f32.mrb[0].mxu0
          %790 = vmatprep.mubr.bf16.mxu0 0
          %791 = vmatmul.mubr.bf16.gmra.mrb[0].mxu0 %v652
          %v792 = vpop.f32.mrb[0].mxu0
          %v793 = vadd.f32 0.0, %v792
          %v794 = vpop.f32.mrb[0].mxu0
          %v795 = vpop.f32.mrb[0].mxu0
          %v796 = vadd.f32 0.0, %v795
          %v797 = vpop.f32.mrb[0].mxu0
          %798 = vmatprep.mubr.bf16.mxu0 0
          %799 = vmatmul.mubr.bf16.gmra.mrb[0].mxu0 %v653
          %v800 = vpop.f32.mrb[0].mxu0
          %v801 = vadd.f32 0.0, %v800
          %v802 = vpop.f32.mrb[0].mxu0
          %v803 = vpop.f32.mrb[0].mxu0
          %v804 = vadd.f32 0.0, %v803
          %v805 = vpop.f32.mrb[0].mxu0
          %806 = vdwg.mxu0
          %v807 = vadd.f32 %v582, %v745
          %v808 = vadd.f32 %v583, %v748
          %v809 = vadd.f32 %v584, %v753
          %v810 = vadd.f32 %v585, %v756
          %v811 = vadd.f32 %v586, %v761
          %v812 = vadd.f32 %v587, %v764
          %v813 = vadd.f32 %v588, %v769
          %v814 = vadd.f32 %v589, %v772
          %v815 = vadd.f32 %v590, %v777
          %v816 = vadd.f32 %v591, %v780
          %v817 = vadd.f32 %v592, %v785
          %v818 = vadd.f32 %v593, %v788
          %v819 = vadd.f32 %v594, %v793
          %v820 = vadd.f32 %v595, %v796
          %v821 = vadd.f32 %v596, %v801
          %v822 = vadd.f32 %v597, %v804
          %vm823 = vcmask 261120
          %824 = vst.msk [vmem:[#allocation2] sm:$0xff] %vm823, %v807
          %825 = vst.msk [vmem:[#allocation2 + $0x8] sm:$0xff] %vm823, %v808
          %826 = vst.msk [vmem:[#allocation2 + $0x10] sm:$0xff] %vm823, %v809
          %827 = vst.msk [vmem:[#allocation2 + $0x18] sm:$0xff] %vm823, %v810
          %828 = vst.msk [vmem:[#allocation2 + $0x20] sm:$0xff] %vm823, %v811
          %829 = vst.msk [vmem:[#allocation2 + $0x28] sm:$0xff] %vm823, %v812
          %830 = vst.msk [vmem:[#allocation2 + $0x30] sm:$0xff] %vm823, %v813
          %831 = vst.msk [vmem:[#allocation2 + $0x38] sm:$0xff] %vm823, %v814
          %832 = vst.msk [vmem:[#allocation2 + $0x40] sm:$0xff] %vm823, %v815
          %833 = vst.msk [vmem:[#allocation2 + $0x48] sm:$0xff] %vm823, %v816
          %834 = vst.msk [vmem:[#allocation2 + $0x50] sm:$0xff] %vm823, %v817
          %835 = vst.msk [vmem:[#allocation2 + $0x58] sm:$0xff] %vm823, %v818
          %836 = vst.msk [vmem:[#allocation2 + $0x60] sm:$0xff] %vm823, %v819
          %837 = vst.msk [vmem:[#allocation2 + $0x68] sm:$0xff] %vm823, %v820
          %838 = vst.msk [vmem:[#allocation2 + $0x70] sm:$0xff] %vm823, %v821
          %839 = vst.msk [vmem:[#allocation2 + $0x78] sm:$0xff] %vm823, %v822
        $region92: #{tpu_custom_call.1} parent=71 // pred_fallthru
          _
        %p840 = scmp.eq.s32.totalorder %s34, 1
        // Predicated region
        $region93: #{tpu_custom_call.1} parent=71 // pred_check
          %p841 = pneg %p840
        $region94: #{tpu_custom_call.1} parent=71 // pred_check_branch
          %843 = sbr.rel (%p841) target = $region96
        $region95: #{tpu_custom_call.1} parent=71 // pred_region
          %s844 = smul.u32 %s36, 128
          %s845 = sshra.s32 %s844, 4
          %s846 = sand.u32 %s844, 15
          %s847 = smul.addr %s845, 8
          %s848 = scalar_lea.vmem [#allocation3], %s847
          %v849 = vld [vmem:[%s848] sm:$0xff]
          %v850 = vld [vmem:[%s848 + $0x8] sm:$0xff]
          %v851 = vld [vmem:[%s848 + $0x10] sm:$0xff]
          %v852 = vld [vmem:[%s848 + $0x18] sm:$0xff]
          %v853 = vld [vmem:[%s848 + $0x20] sm:$0xff]
          %v854 = vld [vmem:[%s848 + $0x28] sm:$0xff]
          %v855 = vld [vmem:[%s848 + $0x30] sm:$0xff]
          %v856 = vld [vmem:[%s848 + $0x38] sm:$0xff]
          %v857 = vld [vmem:[#allocation2] sm:$0xff]
          %v858 = vld [vmem:[#allocation2 + $0x8] sm:$0xff]
          %v859 = vld [vmem:[#allocation2 + $0x10] sm:$0xff]
          %v860 = vld [vmem:[#allocation2 + $0x18] sm:$0xff]
          %v861 = vld [vmem:[#allocation2 + $0x20] sm:$0xff]
          %v862 = vld [vmem:[#allocation2 + $0x28] sm:$0xff]
          %v863 = vld [vmem:[#allocation2 + $0x30] sm:$0xff]
          %v864 = vld [vmem:[#allocation2 + $0x38] sm:$0xff]
          %v865 = vld [vmem:[#allocation2 + $0x40] sm:$0xff]
          %v866 = vld [vmem:[#allocation2 + $0x48] sm:$0xff]
          %v867 = vld [vmem:[#allocation2 + $0x50] sm:$0xff]
          %v868 = vld [vmem:[#allocation2 + $0x58] sm:$0xff]
          %v869 = vld [vmem:[#allocation2 + $0x60] sm:$0xff]
          %v870 = vld [vmem:[#allocation2 + $0x68] sm:$0xff]
          %v871 = vld [vmem:[#allocation2 + $0x70] sm:$0xff]
          %v872 = vld [vmem:[#allocation2 + $0x78] sm:$0xff]
          %v889 = vunpack.c.l.b16 %v563
          %v890 = vunpack.c.l.b16 %v564
          %v891 = vunpack.c.l.b16 %v565
          %v892 = vunpack.c.l.b16 %v566
          %v893 = vunpack.c.l.b16 %v567
          %v894 = vunpack.c.l.b16 %v568
          %v895 = vunpack.c.l.b16 %v569
          %v896 = vunpack.c.l.b16 %v570
          %v897 = vunpack.c.l.b16 %v571
          %v898 = vunpack.c.l.b16 %v572
          %v899 = vunpack.c.l.b16 %v573
          %v900 = vunpack.c.l.b16 %v574
          %v901 = vunpack.c.l.b16 %v575
          %v902 = vunpack.c.l.b16 %v576
          %v903 = vunpack.c.l.b16 %v577
          %v904 = vunpack.c.l.b16 %v578
          %v905 = vpack.c.b16 %v890, %v889
          %v906 = vpack.c.b16 %v892, %v891
          %v907 = vpack.c.b16 %v894, %v893
          %v908 = vpack.c.b16 %v896, %v895
          %v909 = vpack.c.b16 %v898, %v897
          %v910 = vpack.c.b16 %v900, %v899
          %v911 = vpack.c.b16 %v902, %v901
          %v912 = vpack.c.b16 %v904, %v903
          %921 = vmatprep.subr.bf16.mxu0 0
          %922 = vmatpush1.bf16.msra.mxu0 %v849
          %923 = vmatprep.subr.bf16.mxu0 0
          %924 = vmatpush1.bf16.msra.mxu0 %v850
          %925 = vmatprep.subr.bf16.mxu0 0
          %926 = vmatpush1.bf16.msra.mxu0 %v851
          %927 = vmatprep.subr.bf16.mxu0 0
          %928 = vmatpush1.bf16.msra.mxu0 %v852
          %929 = vmatprep.subr.bf16.mxu0 0
          %930 = vmatpush1.bf16.msra.mxu0 %v853
          %931 = vmatprep.subr.bf16.mxu0 0
          %932 = vmatpush1.bf16.msra.mxu0 %v854
          %933 = vmatprep.subr.bf16.mxu0 0
          %934 = vmatpush1.bf16.msra.mxu0 %v855
          %935 = vmatprep.subr.bf16.mxu0 0
          %936 = vmatpush1.bf16.msra.mxu0 %v856
          %937 = vmatprep.subr.bf16.mxu0 0
          %938 = vmatpush1.bf16.msra.mxu0 0
          %939 = vmatprep.subr.bf16.mxu0 0
          %940 = vmatpush1.bf16.msra.mxu0 0
          %941 = vmatprep.subr.bf16.mxu0 0
          %942 = vmatpush1.bf16.msra.mxu0 0
          %943 = vmatprep.subr.bf16.mxu0 0
          %944 = vmatpush1.bf16.msra.mxu0 0
          %945 = vmatprep.subr.bf16.mxu0 0
          %946 = vmatpush1.bf16.msra.mxu0 0
          %947 = vmatprep.subr.bf16.mxu0 0
          %948 = vmatpush1.bf16.msra.mxu0 0
          %949 = vmatprep.subr.bf16.mxu0 0
          %950 = vmatpush1.bf16.msra.mxu0 0
          %951 = vmatprep.subr.bf16.mxu0 0
          %952 = vmatpush1.bf16.msra.mxu0 0
          %953 = vmatprep.mubr.bf16.mxu0 0
          %954 = vmatmul.mubr.bf16.gmra.mrb[0].mxu0 %v905
          %v955 = vpop.f32.mrb[0].mxu0
          %v956 = vadd.f32 0.0, %v955
          %v957 = vpop.f32.mrb[0].mxu0
          %v958 = vpop.f32.mrb[0].mxu0
          %v959 = vadd.f32 0.0, %v958
          %v960 = vpop.f32.mrb[0].mxu0
          %961 = vmatprep.mubr.bf16.mxu0 0
          %962 = vmatmul.mubr.bf16.gmra.mrb[0].mxu0 %v906
          %v963 = vpop.f32.mrb[0].mxu0
          %v964 = vadd.f32 0.0, %v963
          %v965 = vpop.f32.mrb[0].mxu0
          %v966 = vpop.f32.mrb[0].mxu0
          %v967 = vadd.f32 0.0, %v966
          %v968 = vpop.f32.mrb[0].mxu0
          %969 = vmatprep.mubr.bf16.mxu0 0
          %970 = vmatmul.mubr.bf16.gmra.mrb[0].mxu0 %v907
          %v971 = vpop.f32.mrb[0].mxu0
          %v972 = vadd.f32 0.0, %v971
          %v973 = vpop.f32.mrb[0].mxu0
          %v974 = vpop.f32.mrb[0].mxu0
          %v975 = vadd.f32 0.0, %v974
          %v976 = vpop.f32.mrb[0].mxu0
          %977 = vmatprep.mubr.bf16.mxu0 0
          %978 = vmatmul.mubr.bf16.gmra.mrb[0].mxu0 %v908
          %v979 = vpop.f32.mrb[0].mxu0
          %v980 = vadd.f32 0.0, %v979
          %v981 = vpop.f32.mrb[0].mxu0
          %v982 = vpop.f32.mrb[0].mxu0
          %v983 = vadd.f32 0.0, %v982
          %v984 = vpop.f32.mrb[0].mxu0
          %985 = vmatprep.mubr.bf16.mxu0 0
          %986 = vmatmul.mubr.bf16.gmra.mrb[0].mxu0 %v909
          %v987 = vpop.f32.mrb[0].mxu0
          %v988 = vadd.f32 0.0, %v987
          %v989 = vpop.f32.mrb[0].mxu0
          %v990 = vpop.f32.mrb[0].mxu0
          %v991 = vadd.f32 0.0, %v990
          %v992 = vpop.f32.mrb[0].mxu0
          %993 = vmatprep.mubr.bf16.mxu0 0
          %994 = vmatmul.mubr.bf16.gmra.mrb[0].mxu0 %v910
          %v995 = vpop.f32.mrb[0].mxu0
          %v996 = vadd.f32 0.0, %v995
          %v997 = vpop.f32.mrb[0].mxu0
          %v998 = vpop.f32.mrb[0].mxu0
          %v999 = vadd.f32 0.0, %v998
          %v1000 = vpop.f32.mrb[0].mxu0
          %1001 = vmatprep.mubr.bf16.mxu0 0
          %1002 = vmatmul.mubr.bf16.gmra.mrb[0].mxu0 %v911
          %v1003 = vpop.f32.mrb[0].mxu0
          %v1004 = vadd.f32 0.0, %v1003
          %v1005 = vpop.f32.mrb[0].mxu0
          %v1006 = vpop.f32.mrb[0].mxu0
          %v1007 = vadd.f32 0.0, %v1006
          %v1008 = vpop.f32.mrb[0].mxu0
          %1009 = vmatprep.mubr.bf16.mxu0 0
          %1010 = vmatmul.mubr.bf16.gmra.mrb[0].mxu0 %v912
          %v1011 = vpop.f32.mrb[0].mxu0
          %v1012 = vadd.f32 0.0, %v1011
          %v1013 = vpop.f32.mrb[0].mxu0
          %v1014 = vpop.f32.mrb[0].mxu0
          %v1015 = vadd.f32 0.0, %v1014
          %v1016 = vpop.f32.mrb[0].mxu0
          %1017 = vdwg.mxu0
          %v1018 = vadd.f32 %v857, %v956
          %v1019 = vadd.f32 %v858, %v959
          %v1020 = vadd.f32 %v859, %v964
          %v1021 = vadd.f32 %v860, %v967
          %v1022 = vadd.f32 %v861, %v972
          %v1023 = vadd.f32 %v862, %v975
          %v1024 = vadd.f32 %v863, %v980
          %v1025 = vadd.f32 %v864, %v983
          %v1026 = vadd.f32 %v865, %v988
          %v1027 = vadd.f32 %v866, %v991
          %v1028 = vadd.f32 %v867, %v996
          %v1029 = vadd.f32 %v868, %v999
          %v1030 = vadd.f32 %v869, %v1004
          %v1031 = vadd.f32 %v870, %v1007
          %v1032 = vadd.f32 %v871, %v1012
          %v1033 = vadd.f32 %v872, %v1015
          %vm1034 = vcmask 261120
          %1035 = vst.msk [vmem:[#allocation2] sm:$0xff] %vm1034, %v1018
          %1036 = vst.msk [vmem:[#allocation2 + $0x8] sm:$0xff] %vm1034, %v1019
          %1037 = vst.msk [vmem:[#allocation2 + $0x10] sm:$0xff] %vm1034, %v1020
          %1038 = vst.msk [vmem:[#allocation2 + $0x18] sm:$0xff] %vm1034, %v1021
          %1039 = vst.msk [vmem:[#allocation2 + $0x20] sm:$0xff] %vm1034, %v1022
          %1040 = vst.msk [vmem:[#allocation2 + $0x28] sm:$0xff] %vm1034, %v1023
          %1041 = vst.msk [vmem:[#allocation2 + $0x30] sm:$0xff] %vm1034, %v1024
          %1042 = vst.msk [vmem:[#allocation2 + $0x38] sm:$0xff] %vm1034, %v1025
          %1043 = vst.msk [vmem:[#allocation2 + $0x40] sm:$0xff] %vm1034, %v1026
          %1044 = vst.msk [vmem:[#allocation2 + $0x48] sm:$0xff] %vm1034, %v1027
          %1045 = vst.msk [vmem:[#allocation2 + $0x50] sm:$0xff] %vm1034, %v1028
          %1046 = vst.msk [vmem:[#allocation2 + $0x58] sm:$0xff] %vm1034, %v1029
          %1047 = vst.msk [vmem:[#allocation2 + $0x60] sm:$0xff] %vm1034, %v1030
          %1048 = vst.msk [vmem:[#allocation2 + $0x68] sm:$0xff] %vm1034, %v1031
          %1049 = vst.msk [vmem:[#allocation2 + $0x70] sm:$0xff] %vm1034, %v1032
          %1050 = vst.msk [vmem:[#allocation2 + $0x78] sm:$0xff] %vm1034, %v1033
        $region96: #{tpu_custom_call.1} parent=71 // pred_fallthru
          _
        %p1051 = pnand %p531, %p535
        %p1052 = pneg %p1051
        // Predicated region
        $region97: #{tpu_custom_call.1} parent=71 // pred_check
          _
        $region98: #{tpu_custom_call.1} parent=71 // pred_check_branch
          %1054 = sbr.rel (%p1051) target = $region100
        $region99: #{tpu_custom_call.1} parent=71 // pred_region
          %v1055 = vld [vmem:[#allocation2] sm:$0xff]
          %v1056 = vld [vmem:[#allocation2 + $0x8] sm:$0xff]
          %v1057 = vld [vmem:[#allocation2 + $0x10] sm:$0xff]
          %v1058 = vld [vmem:[#allocation2 + $0x18] sm:$0xff]
          %v1059 = vld [vmem:[#allocation2 + $0x20] sm:$0xff]
          %v1060 = vld [vmem:[#allocation2 + $0x28] sm:$0xff]
          %v1061 = vld [vmem:[#allocation2 + $0x30] sm:$0xff]
          %v1062 = vld [vmem:[#allocation2 + $0x38] sm:$0xff]
          %v1063 = vld [vmem:[#allocation2 + $0x40] sm:$0xff]
          %v1064 = vld [vmem:[#allocation2 + $0x48] sm:$0xff]
          %v1065 = vld [vmem:[#allocation2 + $0x50] sm:$0xff]
          %v1066 = vld [vmem:[#allocation2 + $0x58] sm:$0xff]
          %v1067 = vld [vmem:[#allocation2 + $0x60] sm:$0xff]
          %v1068 = vld [vmem:[#allocation2 + $0x68] sm:$0xff]
          %v1069 = vld [vmem:[#allocation2 + $0x70] sm:$0xff]
          %v1070 = vld [vmem:[#allocation2 + $0x78] sm:$0xff]
          %v1071 = vld [vmem:[%s2] sm:$0x1]
          %v1073 = vlaneseq
          %v1074 = vshrl.u32 %v1073, 7
          %v1075 = vsub.s32 0, %v1074
          %v1076 = vrot.slane %v1071, %v1075
          %v1078 = vadd.f32 %v1055, %v1076
          %v1079 = vadd.f32 %v1056, %v1076
          %v1080 = vadd.f32 %v1057, %v1076
          %v1081 = vadd.f32 %v1058, %v1076
          %v1082 = vadd.f32 %v1059, %v1076
          %v1083 = vadd.f32 %v1060, %v1076
          %v1084 = vadd.f32 %v1061, %v1076
          %v1085 = vadd.f32 %v1062, %v1076
          %v1086 = vadd.f32 %v1063, %v1076
          %v1087 = vadd.f32 %v1064, %v1076
          %v1088 = vadd.f32 %v1065, %v1076
          %v1089 = vadd.f32 %v1066, %v1076
          %v1090 = vadd.f32 %v1067, %v1076
          %v1091 = vadd.f32 %v1068, %v1076
          %v1092 = vadd.f32 %v1069, %v1076
          %v1093 = vadd.f32 %v1070, %v1076
          %v1094 = vmax.f32 %v1078, 0.0
          %v1095 = vmax.f32 %v1079, 0.0
          %v1096 = vmax.f32 %v1080, 0.0
          %v1097 = vmax.f32 %v1081, 0.0
          %v1098 = vmax.f32 %v1082, 0.0
          %v1099 = vmax.f32 %v1083, 0.0
          %v1100 = vmax.f32 %v1084, 0.0
          %v1101 = vmax.f32 %v1085, 0.0
          %v1102 = vmax.f32 %v1086, 0.0
          %v1103 = vmax.f32 %v1087, 0.0
          %v1104 = vmax.f32 %v1088, 0.0
          %v1105 = vmax.f32 %v1089, 0.0
          %v1106 = vmax.f32 %v1090, 0.0
          %v1107 = vmax.f32 %v1091, 0.0
          %v1108 = vmax.f32 %v1092, 0.0
          %v1109 = vmax.f32 %v1093, 0.0
          %v1110 = vld [vmem:[%s3] sm:$0xff]
          %v1111 = vld [vmem:[%s3 + $0x8] sm:$0xff]
          %v1112 = vld [vmem:[%s3 + $0x10] sm:$0xff]
          %v1113 = vld [vmem:[%s3 + $0x18] sm:$0xff]
          %vm1114 = vcmask 261120
          %v1116 = vsel %vm1114, %v1094, 0
          %v1119 = vsel %vm1114, %v1095, 0
          %v1122 = vsel %vm1114, %v1096, 0
          %v1125 = vsel %vm1114, %v1097, 0
          %v1128 = vsel %vm1114, %v1098, 0
          %v1131 = vsel %vm1114, %v1099, 0
          %v1134 = vsel %vm1114, %v1100, 0
          %v1137 = vsel %vm1114, %v1101, 0
          %v1140 = vsel %vm1114, %v1102, 0
          %v1143 = vsel %vm1114, %v1103, 0
          %v1146 = vsel %vm1114, %v1104, 0
          %v1149 = vsel %vm1114, %v1105, 0
          %v1152 = vsel %vm1114, %v1106, 0
          %v1155 = vsel %vm1114, %v1107, 0
          %v1158 = vsel %vm1114, %v1108, 0
          %v1161 = vsel %vm1114, %v1109, 0
          %1163 = vmatprep.subr.mxu0 0.0
          %1164 = vmatpush1.msra.mxu0 %v1110
          %1165 = vmatprep.subr.mxu0 0.0
          %1166 = vmatpush1.msra.mxu0 %v1111
          %1167 = vmatprep.subr.mxu0 0.0
          %1168 = vmatpush1.msra.mxu0 %v1112
          %1169 = vmatprep.subr.mxu0 0.0
          %1170 = vmatpush1.msra.mxu0 %v1113
          %1171 = vmatprep.subr.mxu0 0.0
          %1172 = vmatpush1.msra.mxu0 0.0
          %1173 = vmatprep.subr.mxu0 0.0
          %1174 = vmatpush1.msra.mxu0 0.0
          %1175 = vmatprep.subr.mxu0 0.0
          %1176 = vmatpush1.msra.mxu0 0.0
          %1177 = vmatprep.subr.mxu0 0.0
          %1178 = vmatpush1.msra.mxu0 0.0
          %1179 = vmatprep.subr.mxu0 0.0
          %1180 = vmatpush1.msra.mxu0 0.0
          %1181 = vmatprep.subr.mxu0 0.0
          %1182 = vmatpush1.msra.mxu0 0.0
          %1183 = vmatprep.subr.mxu0 0.0
          %1184 = vmatpush1.msra.mxu0 0.0
          %1185 = vmatprep.subr.mxu0 0.0
          %1186 = vmatpush1.msra.mxu0 0.0
          %1187 = vmatprep.subr.mxu0 0.0
          %1188 = vmatpush1.msra.mxu0 0.0
          %1189 = vmatprep.subr.mxu0 0.0
          %1190 = vmatpush1.msra.mxu0 0.0
          %1191 = vmatprep.subr.mxu0 0.0
          %1192 = vmatpush1.msra.mxu0 0.0
          %1193 = vmatprep.subr.mxu0 0.0
          %1194 = vmatpush1.msra.mxu0 0.0
          %1195 = vmatprep.subr.mxu0 0.0
          %1196 = vmatpush1.msra.mxu0 0.0
          %1197 = vmatprep.subr.mxu0 0.0
          %1198 = vmatpush1.msra.mxu0 0.0
          %1199 = vmatprep.subr.mxu0 0.0
          %1200 = vmatpush1.msra.mxu0 0.0
          %1201 = vmatprep.subr.mxu0 0.0
          %1202 = vmatpush1.msra.mxu0 0.0
          %1203 = vmatprep.subr.mxu0 0.0
          %1204 = vmatpush1.msra.mxu0 0.0
          %1205 = vmatprep.subr.mxu0 0.0
          %1206 = vmatpush1.msra.mxu0 0.0
          %1207 = vmatprep.subr.mxu0 0.0
          %1208 = vmatpush1.msra.mxu0 0.0
          %1209 = vmatprep.subr.mxu0 0.0
          %1210 = vmatpush1.msra.mxu0 0.0
          %1211 = vmatprep.subr.mxu0 0.0
          %1212 = vmatpush1.msra.mxu0 0.0
          %1213 = vmatprep.subr.mxu0 0.0
          %1214 = vmatpush1.msra.mxu0 0.0
          %1215 = vmatprep.subr.mxu0 0.0
          %1216 = vmatpush1.msra.mxu0 0.0
          %1217 = vmatprep.subr.mxu0 0.0
          %1218 = vmatpush1.msra.mxu0 0.0
          %1219 = vmatprep.subr.mxu0 0.0
          %1220 = vmatpush1.msra.mxu0 0.0
          %1221 = vmatprep.subr.mxu0 0.0
          %1222 = vmatpush1.msra.mxu0 0.0
          %1223 = vmatprep.subr.mxu0 0.0
          %1224 = vmatpush1.msra.mxu0 0.0
          %1225 = vmatprep.subr.mxu0 0.0
          %1226 = vmatpush1.msra.mxu0 0.0
          %1227 = vmatprep.mubr.f32.mxu0 0.0
          %1228 = vmatmul.mubr.f32.gmra.mrb[0].mxu0 %v1116
          %v1229 = vpop.f32.mrb[0].mxu0
          %v1230 = vadd.f32 0.0, %v1229
          %v1231 = vpop.f32.mrb[0].mxu0
          %1232 = vmatprep.mubr.f32.mxu0 0.0
          %1233 = vmatmul.mubr.f32.gmra.mrb[0].mxu0 %v1119
          %v1234 = vpop.f32.mrb[0].mxu0
          %v1235 = vadd.f32 0.0, %v1234
          %v1236 = vpop.f32.mrb[0].mxu0
          %1237 = vmatprep.mubr.f32.mxu0 0.0
          %1238 = vmatmul.mubr.f32.gmra.mrb[0].mxu0 %v1122
          %v1239 = vpop.f32.mrb[0].mxu0
          %v1240 = vadd.f32 0.0, %v1239
          %v1241 = vpop.f32.mrb[0].mxu0
          %1242 = vmatprep.mubr.f32.mxu0 0.0
          %1243 = vmatmul.mubr.f32.gmra.mrb[0].mxu0 %v1125
          %v1244 = vpop.f32.mrb[0].mxu0
          %v1245 = vadd.f32 0.0, %v1244
          %v1246 = vpop.f32.mrb[0].mxu0
          %1247 = vmatprep.mubr.f32.mxu0 0.0
          %1248 = vmatmul.mubr.f32.gmra.mrb[0].mxu0 %v1128
          %v1249 = vpop.f32.mrb[0].mxu0
          %v1250 = vadd.f32 0.0, %v1249
          %v1251 = vpop.f32.mrb[0].mxu0
          %1252 = vmatprep.mubr.f32.mxu0 0.0
          %1253 = vmatmul.mubr.f32.gmra.mrb[0].mxu0 %v1131
          %v1254 = vpop.f32.mrb[0].mxu0
          %v1255 = vadd.f32 0.0, %v1254
          %v1256 = vpop.f32.mrb[0].mxu0
          %1257 = vmatprep.mubr.f32.mxu0 0.0
          %1258 = vmatmul.mubr.f32.gmra.mrb[0].mxu0 %v1134
          %v1259 = vpop.f32.mrb[0].mxu0
          %v1260 = vadd.f32 0.0, %v1259
          %v1261 = vpop.f32.mrb[0].mxu0
          %1262 = vmatprep.mubr.f32.mxu0 0.0
          %1263 = vmatmul.mubr.f32.gmra.mrb[0].mxu0 %v1137
          %v1264 = vpop.f32.mrb[0].mxu0
          %v1265 = vadd.f32 0.0, %v1264
          %v1266 = vpop.f32.mrb[0].mxu0
          %1267 = vmatprep.mubr.f32.mxu0 0.0
          %1268 = vmatmul.mubr.f32.gmra.mrb[0].mxu0 %v1140
          %v1269 = vpop.f32.mrb[0].mxu0
          %v1270 = vadd.f32 0.0, %v1269
          %v1271 = vpop.f32.mrb[0].mxu0
          %1272 = vmatprep.mubr.f32.mxu0 0.0
          %1273 = vmatmul.mubr.f32.gmra.mrb[0].mxu0 %v1143
          %v1274 = vpop.f32.mrb[0].mxu0
          %v1275 = vadd.f32 0.0, %v1274
          %v1276 = vpop.f32.mrb[0].mxu0
          %1277 = vmatprep.mubr.f32.mxu0 0.0
          %1278 = vmatmul.mubr.f32.gmra.mrb[0].mxu0 %v1146
          %v1279 = vpop.f32.mrb[0].mxu0
          %v1280 = vadd.f32 0.0, %v1279
          %v1281 = vpop.f32.mrb[0].mxu0
          %1282 = vmatprep.mubr.f32.mxu0 0.0
          %1283 = vmatmul.mubr.f32.gmra.mrb[0].mxu0 %v1149
          %v1284 = vpop.f32.mrb[0].mxu0
          %v1285 = vadd.f32 0.0, %v1284
          %v1286 = vpop.f32.mrb[0].mxu0
          %1287 = vmatprep.mubr.f32.mxu0 0.0
          %1288 = vmatmul.mubr.f32.gmra.mrb[0].mxu0 %v1152
          %v1289 = vpop.f32.mrb[0].mxu0
          %v1290 = vadd.f32 0.0, %v1289
          %v1291 = vpop.f32.mrb[0].mxu0
          %1292 = vmatprep.mubr.f32.mxu0 0.0
          %1293 = vmatmul.mubr.f32.gmra.mrb[0].mxu0 %v1155
          %v1294 = vpop.f32.mrb[0].mxu0
          %v1295 = vadd.f32 0.0, %v1294
          %v1296 = vpop.f32.mrb[0].mxu0
          %1297 = vmatprep.mubr.f32.mxu0 0.0
          %1298 = vmatmul.mubr.f32.gmra.mrb[0].mxu0 %v1158
          %v1299 = vpop.f32.mrb[0].mxu0
          %v1300 = vadd.f32 0.0, %v1299
          %v1301 = vpop.f32.mrb[0].mxu0
          %1302 = vmatprep.mubr.f32.mxu0 0.0
          %1303 = vmatmul.mubr.f32.gmra.mrb[0].mxu0 %v1161
          %v1304 = vpop.f32.mrb[0].mxu0
          %v1305 = vadd.f32 0.0, %v1304
          %v1306 = vpop.f32.mrb[0].mxu0
          %1307 = vdwg.mxu0
          %s1308 = smul.u32 %s35, 128
          %v1309 = vpack.c.bf16 %v1235, %v1230
          %v1310 = vpack.c.bf16 %v1245, %v1240
          %v1311 = vpack.c.bf16 %v1255, %v1250
          %v1312 = vpack.c.bf16 %v1265, %v1260
          %v1313 = vpack.c.bf16 %v1275, %v1270
          %v1314 = vpack.c.bf16 %v1285, %v1280
          %v1315 = vpack.c.bf16 %v1295, %v1290
          %v1316 = vpack.c.bf16 %v1305, %v1300
          %s1317 = sshra.s32 %s1308, 4
          %s1318 = sand.u32 %s1308, 15
          %s1319 = smul.addr %s1317, 8
          %s1320 = scalar_lea.vmem [#allocation3], %s1319
          %1321 = vst.msk [vmem:[%s1320] sm:$0xff] %vm1114, %v1309
          %1322 = vst.msk [vmem:[%s1320 + $0x8] sm:$0xff] %vm1114, %v1310
          %1323 = vst.msk [vmem:[%s1320 + $0x10] sm:$0xff] %vm1114, %v1311
          %1324 = vst.msk [vmem:[%s1320 + $0x18] sm:$0xff] %vm1114, %v1312
          %1325 = vst.msk [vmem:[%s1320 + $0x20] sm:$0xff] %vm1114, %v1313
          %1326 = vst.msk [vmem:[%s1320 + $0x28] sm:$0xff] %vm1114, %v1314
          %1327 = vst.msk [vmem:[%s1320 + $0x30] sm:$0xff] %vm1114, %v1315
          %1328 = vst.msk [vmem:[%s1320 + $0x38] sm:$0xff] %vm1114, %v1316
        $region100: #{tpu_custom_call.1} parent=71 // pred_fallthru
          _
        %p1329 = pnand %p840, %p535
        %p1330 = pneg %p1329
        // Predicated region
        $region101: #{tpu_custom_call.1} parent=71 // pred_check
          _
        $region102: #{tpu_custom_call.1} parent=71 // pred_check_branch
          %1332 = sbr.rel (%p1329) target = $region104
        $region103: #{tpu_custom_call.1} parent=71 // pred_region
          %v1333 = vld [vmem:[#allocation2] sm:$0xff]
          %v1334 = vld [vmem:[#allocation2 + $0x8] sm:$0xff]
          %v1335 = vld [vmem:[#allocation2 + $0x10] sm:$0xff]
          %v1336 = vld [vmem:[#allocation2 + $0x18] sm:$0xff]
          %v1337 = vld [vmem:[#allocation2 + $0x20] sm:$0xff]
          %v1338 = vld [vmem:[#allocation2 + $0x28] sm:$0xff]
          %v1339 = vld [vmem:[#allocation2 + $0x30] sm:$0xff]
          %v1340 = vld [vmem:[#allocation2 + $0x38] sm:$0xff]
          %v1341 = vld [vmem:[#allocation2 + $0x40] sm:$0xff]
          %v1342 = vld [vmem:[#allocation2 + $0x48] sm:$0xff]
          %v1343 = vld [vmem:[#allocation2 + $0x50] sm:$0xff]
          %v1344 = vld [vmem:[#allocation2 + $0x58] sm:$0xff]
          %v1345 = vld [vmem:[#allocation2 + $0x60] sm:$0xff]
          %v1346 = vld [vmem:[#allocation2 + $0x68] sm:$0xff]
          %v1347 = vld [vmem:[#allocation2 + $0x70] sm:$0xff]
          %v1348 = vld [vmem:[#allocation2 + $0x78] sm:$0xff]
          %v1349 = vld [vmem:[%s4] sm:$0x1]
          %v1351 = vlaneseq
          %v1352 = vshrl.u32 %v1351, 7
          %v1353 = vsub.s32 0, %v1352
          %v1354 = vrot.slane %v1349, %v1353
          %v1356 = vadd.f32 %v1333, %v1354
          %v1357 = vadd.f32 %v1334, %v1354
          %v1358 = vadd.f32 %v1335, %v1354
          %v1359 = vadd.f32 %v1336, %v1354
          %v1360 = vadd.f32 %v1337, %v1354
          %v1361 = vadd.f32 %v1338, %v1354
          %v1362 = vadd.f32 %v1339, %v1354
          %v1363 = vadd.f32 %v1340, %v1354
          %v1364 = vadd.f32 %v1341, %v1354
          %v1365 = vadd.f32 %v1342, %v1354
          %v1366 = vadd.f32 %v1343, %v1354
          %v1367 = vadd.f32 %v1344, %v1354
          %v1368 = vadd.f32 %v1345, %v1354
          %v1369 = vadd.f32 %v1346, %v1354
          %v1370 = vadd.f32 %v1347, %v1354
          %v1371 = vadd.f32 %v1348, %v1354
          %v1372 = vld [vmem:[%s529] sm:$0x3]
          %v1373 = vld [vmem:[#allocation4] sm:$0x3]
          %1374 = vmatprep.subr.mxu0 0.0
          %1375 = vmatpush1.msra.mxu0 %v1356
          %1376 = vmatprep.subr.mxu0 0.0
          %1377 = vmatpush1.msra.mxu0 %v1357
          %1378 = vmatprep.subr.mxu0 0.0
          %1379 = vmatpush1.msra.mxu0 %v1358
          %1380 = vmatprep.subr.mxu0 0.0
          %1381 = vmatpush1.msra.mxu0 %v1359
          %1382 = vmatprep.subr.mxu0 0.0
          %1383 = vmatpush1.msra.mxu0 %v1360
          %1384 = vmatprep.subr.mxu0 0.0
          %1385 = vmatpush1.msra.mxu0 %v1361
          %1386 = vmatprep.subr.mxu0 0.0
          %1387 = vmatpush1.msra.mxu0 %v1362
          %1388 = vmatprep.subr.mxu0 0.0
          %1389 = vmatpush1.msra.mxu0 %v1363
          %1390 = vmatprep.subr.mxu0 0.0
          %1391 = vmatpush1.msra.mxu0 %v1364
          %1392 = vmatprep.subr.mxu0 0.0
          %1393 = vmatpush1.msra.mxu0 %v1365
          %1394 = vmatprep.subr.mxu0 0.0
          %1395 = vmatpush1.msra.mxu0 %v1366
          %1396 = vmatprep.subr.mxu0 0.0
          %1397 = vmatpush1.msra.mxu0 %v1367
          %1398 = vmatprep.subr.mxu0 0.0
          %1399 = vmatpush1.msra.mxu0 %v1368
          %1400 = vmatprep.subr.mxu0 0.0
          %1401 = vmatpush1.msra.mxu0 %v1369
          %1402 = vmatprep.subr.mxu0 0.0
          %1403 = vmatpush1.msra.mxu0 %v1370
          %1404 = vmatprep.subr.mxu0 0.0
          %1405 = vmatpush1.msra.mxu0 %v1371
          %1406 = vmatprep.subr.mxu0 0.0
          %1407 = vmatpush1.msra.mxu0 0.0
          %1408 = vmatprep.subr.mxu0 0.0
          %1409 = vmatpush1.msra.mxu0 0.0
          %1410 = vmatprep.subr.mxu0 0.0
          %1411 = vmatpush1.msra.mxu0 0.0
          %1412 = vmatprep.subr.mxu0 0.0
          %1413 = vmatpush1.msra.mxu0 0.0
          %1414 = vmatprep.subr.mxu0 0.0
          %1415 = vmatpush1.msra.mxu0 0.0
          %1416 = vmatprep.subr.mxu0 0.0
          %1417 = vmatpush1.msra.mxu0 0.0
          %1418 = vmatprep.subr.mxu0 0.0
          %1419 = vmatpush1.msra.mxu0 0.0
          %1420 = vmatprep.subr.mxu0 0.0
          %1421 = vmatpush1.msra.mxu0 0.0
          %1422 = vmatprep.subr.mxu0 0.0
          %1423 = vmatpush1.msra.mxu0 0.0
          %1424 = vmatprep.subr.mxu0 0.0
          %1425 = vmatpush1.msra.mxu0 0.0
          %1426 = vmatprep.subr.mxu0 0.0
          %1427 = vmatpush1.msra.mxu0 0.0
          %1428 = vmatprep.subr.mxu0 0.0
          %1429 = vmatpush1.msra.mxu0 0.0
          %1430 = vmatprep.subr.mxu0 0.0
          %1431 = vmatpush1.msra.mxu0 0.0
          %1432 = vmatprep.subr.mxu0 0.0
          %1433 = vmatpush1.msra.mxu0 0.0
          %1434 = vmatprep.subr.mxu0 0.0
          %1435 = vmatpush1.msra.mxu0 0.0
          %1436 = vmatprep.subr.mxu0 0.0
          %1437 = vmatpush1.msra.mxu0 0.0
          %1438 = vmatprep.mubr.f32.mxu0 0.0
          %1439 = vmatmul.mubr.f32.gmra.mrb[0].mxu0 %v1372
          %v1440 = vpop.f32.mrb[0].mxu0
          %v1441 = vadd.f32 0.0, %v1440
          %v1442 = vpop.f32.mrb[0].mxu0
          %1443 = vdwg.mxu0
          %v1444 = vadd.f32 %v1373, %v1441
          %vm1445 = vcmask 254976
          %1446 = vst.msk [vmem:[#allocation4] sm:$0x3] %vm1445, %v1444
          %v1447 = vlaneseq
          %v1448 = vshrl.u32 %v1447, 7
          %v1449 = vsub.s32 0, %v1448
          %v1450 = vrot.slane %v1372, %v1449
          %1452 = vbcast.lane.b32.xlu0 %v1450, 256
          %v1453 = vpop.permute.xlu0 %1452
          %s1455 = sor.u32 256, 8
          %1456 = vbcast.lane.b32.xlu0 %v1450, %s1455
          %v1457 = vpop.permute.xlu0 %1456
          %s1459 = sor.u32 256, 16
          %1460 = vbcast.lane.b32.xlu0 %v1450, %s1459
          %v1461 = vpop.permute.xlu0 %1460
          %s1463 = sor.u32 256, 24
          %1464 = vbcast.lane.b32.xlu0 %v1450, %s1463
          %v1465 = vpop.permute.xlu0 %1464
          %s1467 = sor.u32 256, 32
          %1468 = vbcast.lane.b32.xlu0 %v1450, %s1467
          %v1469 = vpop.permute.xlu0 %1468
          %s1471 = sor.u32 256, 40
          %1472 = vbcast.lane.b32.xlu0 %v1450, %s1471
          %v1473 = vpop.permute.xlu0 %1472
          %s1475 = sor.u32 256, 48
          %1476 = vbcast.lane.b32.xlu0 %v1450, %s1475
          %v1477 = vpop.permute.xlu0 %1476
          %s1479 = sor.u32 256, 56
          %1480 = vbcast.lane.b32.xlu0 %v1450, %s1479
          %v1481 = vpop.permute.xlu0 %1480
          %s1483 = sor.u32 256, 64
          %1484 = vbcast.lane.b32.xlu0 %v1450, %s1483
          %v1485 = vpop.permute.xlu0 %1484
          %s1487 = sor.u32 256, 72
          %1488 = vbcast.lane.b32.xlu0 %v1450, %s1487
          %v1489 = vpop.permute.xlu0 %1488
          %s1491 = sor.u32 256, 80
          %1492 = vbcast.lane.b32.xlu0 %v1450, %s1491
          %v1493 = vpop.permute.xlu0 %1492
          %s1495 = sor.u32 256, 88
          %1496 = vbcast.lane.b32.xlu0 %v1450, %s1495
          %v1497 = vpop.permute.xlu0 %1496
          %s1499 = sor.u32 256, 96
          %1500 = vbcast.lane.b32.xlu0 %v1450, %s1499
          %v1501 = vpop.permute.xlu0 %1500
          %s1503 = sor.u32 256, 104
          %1504 = vbcast.lane.b32.xlu0 %v1450, %s1503
          %v1505 = vpop.permute.xlu0 %1504
          %s1507 = sor.u32 256, 112
          %1508 = vbcast.lane.b32.xlu0 %v1450, %s1507
          %v1509 = vpop.permute.xlu0 %1508
          %s1511 = sor.u32 256, 120
          %1512 = vbcast.lane.b32.xlu0 %v1450, %s1511
          %v1513 = vpop.permute.xlu0 %1512
          %v1514 = vlaneseq
          %v1515 = vshrl.u32 %v1514, 7
          %v1516 = vsub.s32 1, %v1515
          %v1517 = vrot.slane %v1372, %v1516
          %1519 = vbcast.lane.b32.xlu0 %v1517, 256
          %v1520 = vpop.permute.xlu0 %1519
          %s1522 = sor.u32 256, 8
          %1523 = vbcast.lane.b32.xlu0 %v1517, %s1522
          %v1524 = vpop.permute.xlu0 %1523
          %s1526 = sor.u32 256, 16
          %1527 = vbcast.lane.b32.xlu0 %v1517, %s1526
          %v1528 = vpop.permute.xlu0 %1527
          %s1530 = sor.u32 256, 24
          %1531 = vbcast.lane.b32.xlu0 %v1517, %s1530
          %v1532 = vpop.permute.xlu0 %1531
          %s1534 = sor.u32 256, 32
          %1535 = vbcast.lane.b32.xlu0 %v1517, %s1534
          %v1536 = vpop.permute.xlu0 %1535
          %s1538 = sor.u32 256, 40
          %1539 = vbcast.lane.b32.xlu0 %v1517, %s1538
          %v1540 = vpop.permute.xlu0 %1539
          %s1542 = sor.u32 256, 48
          %1543 = vbcast.lane.b32.xlu0 %v1517, %s1542
          %v1544 = vpop.permute.xlu0 %1543
          %s1546 = sor.u32 256, 56
          %1547 = vbcast.lane.b32.xlu0 %v1517, %s1546
          %v1548 = vpop.permute.xlu0 %1547
          %s1550 = sor.u32 256, 64
          %1551 = vbcast.lane.b32.xlu0 %v1517, %s1550
          %v1552 = vpop.permute.xlu0 %1551
          %s1554 = sor.u32 256, 72
          %1555 = vbcast.lane.b32.xlu0 %v1517, %s1554
          %v1556 = vpop.permute.xlu0 %1555
          %s1558 = sor.u32 256, 80
          %1559 = vbcast.lane.b32.xlu0 %v1517, %s1558
          %v1560 = vpop.permute.xlu0 %1559
          %s1562 = sor.u32 256, 88
          %1563 = vbcast.lane.b32.xlu0 %v1517, %s1562
          %v1564 = vpop.permute.xlu0 %1563
          %s1566 = sor.u32 256, 96
          %1567 = vbcast.lane.b32.xlu0 %v1517, %s1566
          %v1568 = vpop.permute.xlu0 %1567
          %s1570 = sor.u32 256, 104
          %1571 = vbcast.lane.b32.xlu0 %v1517, %s1570
          %v1572 = vpop.permute.xlu0 %1571
          %s1574 = sor.u32 256, 112
          %1575 = vbcast.lane.b32.xlu0 %v1517, %s1574
          %v1576 = vpop.permute.xlu0 %1575
          %s1578 = sor.u32 256, 120
          %1579 = vbcast.lane.b32.xlu0 %v1517, %s1578
          %v1580 = vpop.permute.xlu0 %1579
          %vm1581 = vcmp.gt.f32.partialorder %v1453, 0.5
          %vm1582 = vcmp.gt.f32.partialorder %v1457, 0.5
          %vm1583 = vcmp.gt.f32.partialorder %v1461, 0.5
          %vm1584 = vcmp.gt.f32.partialorder %v1465, 0.5
          %vm1585 = vcmp.gt.f32.partialorder %v1469, 0.5
          %vm1586 = vcmp.gt.f32.partialorder %v1473, 0.5
          %vm1587 = vcmp.gt.f32.partialorder %v1477, 0.5
          %vm1588 = vcmp.gt.f32.partialorder %v1481, 0.5
          %vm1589 = vcmp.gt.f32.partialorder %v1485, 0.5
          %vm1590 = vcmp.gt.f32.partialorder %v1489, 0.5
          %vm1591 = vcmp.gt.f32.partialorder %v1493, 0.5
          %vm1592 = vcmp.gt.f32.partialorder %v1497, 0.5
          %vm1593 = vcmp.gt.f32.partialorder %v1501, 0.5
          %vm1594 = vcmp.gt.f32.partialorder %v1505, 0.5
          %vm1595 = vcmp.gt.f32.partialorder %v1509, 0.5
          %vm1596 = vcmp.gt.f32.partialorder %v1513, 0.5
          %vm1597 = vcmp.gt.f32.partialorder %v1520, 0.5
          %vm1598 = vcmp.gt.f32.partialorder %v1524, 0.5
          %vm1599 = vcmp.gt.f32.partialorder %v1528, 0.5
          %vm1600 = vcmp.gt.f32.partialorder %v1532, 0.5
          %vm1601 = vcmp.gt.f32.partialorder %v1536, 0.5
          %vm1602 = vcmp.gt.f32.partialorder %v1540, 0.5
          %vm1603 = vcmp.gt.f32.partialorder %v1544, 0.5
          %vm1604 = vcmp.gt.f32.partialorder %v1548, 0.5
          %vm1605 = vcmp.gt.f32.partialorder %v1552, 0.5
          %vm1606 = vcmp.gt.f32.partialorder %v1556, 0.5
          %vm1607 = vcmp.gt.f32.partialorder %v1560, 0.5
          %vm1608 = vcmp.gt.f32.partialorder %v1564, 0.5
          %vm1609 = vcmp.gt.f32.partialorder %v1568, 0.5
          %vm1610 = vcmp.gt.f32.partialorder %v1572, 0.5
          %vm1611 = vcmp.gt.f32.partialorder %v1576, 0.5
          %vm1612 = vcmp.gt.f32.partialorder %v1580, 0.5
          %v1613 = vsel %vm1581, 1, 0
          %v1614 = vsel %vm1582, 1, 0
          %v1615 = vsel %vm1583, 1, 0
          %v1616 = vsel %vm1584, 1, 0
          %v1617 = vsel %vm1585, 1, 0
          %v1618 = vsel %vm1586, 1, 0
          %v1619 = vsel %vm1587, 1, 0
          %v1620 = vsel %vm1588, 1, 0
          %v1621 = vsel %vm1589, 1, 0
          %v1622 = vsel %vm1590, 1, 0
          %v1623 = vsel %vm1591, 1, 0
          %v1624 = vsel %vm1592, 1, 0
          %v1625 = vsel %vm1593, 1, 0
          %v1626 = vsel %vm1594, 1, 0
          %v1627 = vsel %vm1595, 1, 0
          %v1628 = vsel %vm1596, 1, 0
          %v1629 = vsel %vm1597, 1, 0
          %v1630 = vsel %vm1598, 1, 0
          %v1631 = vsel %vm1599, 1, 0
          %v1632 = vsel %vm1600, 1, 0
          %v1633 = vsel %vm1601, 1, 0
          %v1634 = vsel %vm1602, 1, 0
          %v1635 = vsel %vm1603, 1, 0
          %v1636 = vsel %vm1604, 1, 0
          %v1637 = vsel %vm1605, 1, 0
          %v1638 = vsel %vm1606, 1, 0
          %v1639 = vsel %vm1607, 1, 0
          %v1640 = vsel %vm1608, 1, 0
          %v1641 = vsel %vm1609, 1, 0
          %v1642 = vsel %vm1610, 1, 0
          %v1643 = vsel %vm1611, 1, 0
          %v1644 = vsel %vm1612, 1, 0
          %vm1645 = vcmp.eq.s32.totalorder %v1613, 1
          %vm1646 = vcmp.eq.s32.totalorder %v1614, 1
          %vm1647 = vcmp.eq.s32.totalorder %v1615, 1
          %vm1648 = vcmp.eq.s32.totalorder %v1616, 1
          %vm1649 = vcmp.eq.s32.totalorder %v1617, 1
          %vm1650 = vcmp.eq.s32.totalorder %v1618, 1
          %vm1651 = vcmp.eq.s32.totalorder %v1619, 1
          %vm1652 = vcmp.eq.s32.totalorder %v1620, 1
          %vm1653 = vcmp.eq.s32.totalorder %v1621, 1
          %vm1654 = vcmp.eq.s32.totalorder %v1622, 1
          %vm1655 = vcmp.eq.s32.totalorder %v1623, 1
          %vm1656 = vcmp.eq.s32.totalorder %v1624, 1
          %vm1657 = vcmp.eq.s32.totalorder %v1625, 1
          %vm1658 = vcmp.eq.s32.totalorder %v1626, 1
          %vm1659 = vcmp.eq.s32.totalorder %v1627, 1
          %vm1660 = vcmp.eq.s32.totalorder %v1628, 1
          %vm1661 = vcmp.eq.s32.totalorder %v1629, 1
          %vm1662 = vcmp.eq.s32.totalorder %v1630, 1
          %vm1663 = vcmp.eq.s32.totalorder %v1631, 1
          %vm1664 = vcmp.eq.s32.totalorder %v1632, 1
          %vm1665 = vcmp.eq.s32.totalorder %v1633, 1
          %vm1666 = vcmp.eq.s32.totalorder %v1634, 1
          %vm1667 = vcmp.eq.s32.totalorder %v1635, 1
          %vm1668 = vcmp.eq.s32.totalorder %v1636, 1
          %vm1669 = vcmp.eq.s32.totalorder %v1637, 1
          %vm1670 = vcmp.eq.s32.totalorder %v1638, 1
          %vm1671 = vcmp.eq.s32.totalorder %v1639, 1
          %vm1672 = vcmp.eq.s32.totalorder %v1640, 1
          %vm1673 = vcmp.eq.s32.totalorder %v1641, 1
          %vm1674 = vcmp.eq.s32.totalorder %v1642, 1
          %vm1675 = vcmp.eq.s32.totalorder %v1643, 1
          %vm1676 = vcmp.eq.s32.totalorder %v1644, 1
          %v1677 = vsel %vm1645, %v1356, -1e+30
          %v1678 = vsel %vm1646, %v1357, -1e+30
          %v1679 = vsel %vm1647, %v1358, -1e+30
          %v1680 = vsel %vm1648, %v1359, -1e+30
          %v1681 = vsel %vm1649, %v1360, -1e+30
          %v1682 = vsel %vm1650, %v1361, -1e+30
          %v1683 = vsel %vm1651, %v1362, -1e+30
          %v1684 = vsel %vm1652, %v1363, -1e+30
          %v1685 = vsel %vm1653, %v1364, -1e+30
          %v1686 = vsel %vm1654, %v1365, -1e+30
          %v1687 = vsel %vm1655, %v1366, -1e+30
          %v1688 = vsel %vm1656, %v1367, -1e+30
          %v1689 = vsel %vm1657, %v1368, -1e+30
          %v1690 = vsel %vm1658, %v1369, -1e+30
          %v1691 = vsel %vm1659, %v1370, -1e+30
          %v1692 = vsel %vm1660, %v1371, -1e+30
          %v1693 = vsel %vm1661, %v1356, -1e+30
          %v1694 = vsel %vm1662, %v1357, -1e+30
          %v1695 = vsel %vm1663, %v1358, -1e+30
          %v1696 = vsel %vm1664, %v1359, -1e+30
          %v1697 = vsel %vm1665, %v1360, -1e+30
          %v1698 = vsel %vm1666, %v1361, -1e+30
          %v1699 = vsel %vm1667, %v1362, -1e+30
          %v1700 = vsel %vm1668, %v1363, -1e+30
          %v1701 = vsel %vm1669, %v1364, -1e+30
          %v1702 = vsel %vm1670, %v1365, -1e+30
          %v1703 = vsel %vm1671, %v1366, -1e+30
          %v1704 = vsel %vm1672, %v1367, -1e+30
          %v1705 = vsel %vm1673, %v1368, -1e+30
          %v1706 = vsel %vm1674, %v1369, -1e+30
          %v1707 = vsel %vm1675, %v1370, -1e+30
          %v1708 = vsel %vm1676, %v1371, -1e+30
          %v1709 = vld [vmem:[#allocation5] sm:$0x3]
          %vm1710 = vcmask 261120
          %v1711 = vsel %vm1710, %v1677, -inf
          %v1712 = vsel %vm1710, %v1678, -inf
          %v1713 = vsel %vm1710, %v1679, -inf
          %v1714 = vmax.f32 %v1711, %v1713
          %v1715 = vsel %vm1710, %v1680, -inf
          %v1716 = vmax.f32 %v1712, %v1715
          %v1717 = vsel %vm1710, %v1681, -inf
          %v1718 = vmax.f32 %v1714, %v1717
          %v1719 = vsel %vm1710, %v1682, -inf
          %v1720 = vmax.f32 %v1716, %v1719
          %v1721 = vsel %vm1710, %v1683, -inf
          %v1722 = vmax.f32 %v1718, %v1721
          %v1723 = vsel %vm1710, %v1684, -inf
          %v1724 = vmax.f32 %v1720, %v1723
          %v1725 = vsel %vm1710, %v1685, -inf
          %v1726 = vmax.f32 %v1722, %v1725
          %v1727 = vsel %vm1710, %v1686, -inf
          %v1728 = vmax.f32 %v1724, %v1727
          %v1729 = vsel %vm1710, %v1687, -inf
          %v1730 = vmax.f32 %v1726, %v1729
          %v1731 = vsel %vm1710, %v1688, -inf
          %v1732 = vmax.f32 %v1728, %v1731
          %v1733 = vsel %vm1710, %v1689, -inf
          %v1734 = vmax.f32 %v1730, %v1733
          %v1735 = vsel %vm1710, %v1690, -inf
          %v1736 = vmax.f32 %v1732, %v1735
          %v1737 = vsel %vm1710, %v1691, -inf
          %v1738 = vmax.f32 %v1734, %v1737
          %v1739 = vsel %vm1710, %v1692, -inf
          %v1740 = vmax.f32 %v1736, %v1739
          %v1741 = vmax.f32 %v1738, %v1740
          %v1742 = vrot.slane %v1741, 4
          %v1743 = vmax.f32 %v1741, %v1742
          %v1744 = vrot.slane %v1743, 2
          %v1745 = vmax.f32 %v1743, %v1744
          %v1746 = vrot.slane %v1745, 1
          %v1747 = vmax.f32 %v1745, %v1746
          %v1748 = vsel %vm1710, %v1693, -inf
          %v1749 = vsel %vm1710, %v1694, -inf
          %v1750 = vsel %vm1710, %v1695, -inf
          %v1751 = vmax.f32 %v1748, %v1750
          %v1752 = vsel %vm1710, %v1696, -inf
          %v1753 = vmax.f32 %v1749, %v1752
          %v1754 = vsel %vm1710, %v1697, -inf
          %v1755 = vmax.f32 %v1751, %v1754
          %v1756 = vsel %vm1710, %v1698, -inf
          %v1757 = vmax.f32 %v1753, %v1756
          %v1758 = vsel %vm1710, %v1699, -inf
          %v1759 = vmax.f32 %v1755, %v1758
          %v1760 = vsel %vm1710, %v1700, -inf
          %v1761 = vmax.f32 %v1757, %v1760
          %v1762 = vsel %vm1710, %v1701, -inf
          %v1763 = vmax.f32 %v1759, %v1762
          %v1764 = vsel %vm1710, %v1702, -inf
          %v1765 = vmax.f32 %v1761, %v1764
          %v1766 = vsel %vm1710, %v1703, -inf
          %v1767 = vmax.f32 %v1763, %v1766
          %v1768 = vsel %vm1710, %v1704, -inf
          %v1769 = vmax.f32 %v1765, %v1768
          %v1770 = vsel %vm1710, %v1705, -inf
          %v1771 = vmax.f32 %v1767, %v1770
          %v1772 = vsel %vm1710, %v1706, -inf
          %v1773 = vmax.f32 %v1769, %v1772
          %v1774 = vsel %vm1710, %v1707, -inf
          %v1775 = vmax.f32 %v1771, %v1774
          %v1776 = vsel %vm1710, %v1708, -inf
          %v1777 = vmax.f32 %v1773, %v1776
          %v1778 = vmax.f32 %v1775, %v1777
          %v1779 = vrot.slane %v1778, 4
          %v1780 = vmax.f32 %v1778, %v1779
          %v1781 = vrot.slane %v1780, 2
          %v1782 = vmax.f32 %v1780, %v1781
          %v1783 = vrot.slane %v1782, 1
          %v1784 = vmax.f32 %v1782, %v1783
          %vm1787 = vcmask 1041409
          %v1788 = vsel %vm1787, %v1784, %v1747
          %v1790 = vmax.f32 %v1709, %v1788
          %1791 = vst.msk [vmem:[#allocation5] sm:$0x3] %vm1445, %v1790
        $region104: #{tpu_custom_call.1} parent=71 // pred_fallthru
          _
        %p1792 = pnand %p840, %p532
        %p1793 = pneg %p1792
        %p1794 = pnand %p1793, %p535
        %p1795 = pneg %p1794
        // Predicated region
        $region105: #{tpu_custom_call.1} parent=71 // pred_check
          _
        $region106: #{tpu_custom_call.1} parent=71 // pred_check_branch
          %1797 = sbr.rel (%p1794) target = $region108
        $region107: #{tpu_custom_call.1} parent=71 // pred_region
          %v1798 = vld [vmem:[#allocation4] sm:$0x3]
          %v1799 = vld [vmem:[%s6] sm:$0x3]
          %1801 = vset.pattern.permute.xlu0 0
          %1802 = vperm.xlu0 %1801, %v1799
          %v1803 = vpop.permute.xlu0 %1802
          %v1805 = vrcp.pop %v1803
          %v1806 = vmul.f32 %v1798, %v1805
          %v1807 = vld [vmem:[#allocation5] sm:$0x3]
          %1809 = vrot.lane.b32.xlu0 %v1807, 32
          %v1810 = vpop.permute.xlu0 %1809
          %vm1812 = vcmask 261120
          %v1813 = vsel %vm1812, %v1806, %v1810
          %v1814 = vmul.f32 %v1813, 1000.0
          %v1815 = vround.ne.pseudo %v1814
          %v1816 = vrcp.pop 1000.0
          %v1817 = vmul.f32 %v1815, %v1816
          %v1818 = vld [vmem:[#allocation7] sm:$0xff]
          %v1819 = vld [vmem:[#allocation7 + $0x8] sm:$0xff]
          %v1820 = vld [vmem:[#allocation7 + $0x10] sm:$0xff]
          %v1821 = vld [vmem:[#allocation7 + $0x18] sm:$0xff]
          %v1822 = vld [vmem:[#allocation7 + $0x20] sm:$0xff]
          %v1823 = vld [vmem:[#allocation7 + $0x28] sm:$0xff]
          %v1824 = vld [vmem:[#allocation7 + $0x30] sm:$0xff]
          %v1825 = vld [vmem:[#allocation7 + $0x38] sm:$0xff]
          %v1826 = vld [vmem:[#allocation7 + $0x40] sm:$0xff]
          %v1827 = vld [vmem:[#allocation7 + $0x48] sm:$0xff]
          %v1828 = vld [vmem:[#allocation7 + $0x50] sm:$0xff]
          %v1829 = vld [vmem:[#allocation7 + $0x58] sm:$0xff]
          %v1830 = vld [vmem:[#allocation7 + $0x60] sm:$0xff]
          %v1831 = vld [vmem:[#allocation7 + $0x68] sm:$0xff]
          %v1832 = vld [vmem:[#allocation7 + $0x70] sm:$0xff]
          %v1833 = vld [vmem:[#allocation7 + $0x78] sm:$0xff]
          %v1834 = vld [vmem:[#allocation7 + $0x80] sm:$0xff]
          %v1835 = vld [vmem:[#allocation7 + $0x88] sm:$0xff]
          %v1836 = vld [vmem:[#allocation7 + $0x90] sm:$0xff]
          %v1837 = vld [vmem:[#allocation7 + $0x98] sm:$0xff]
          %v1838 = vld [vmem:[#allocation7 + $0xa0] sm:$0xff]
          %v1839 = vld [vmem:[#allocation7 + $0xa8] sm:$0xff]
          %v1840 = vld [vmem:[#allocation7 + $0xb0] sm:$0xff]
          %v1841 = vld [vmem:[#allocation7 + $0xb8] sm:$0xff]
          %v1842 = vld [vmem:[#allocation7 + $0xc0] sm:$0xff]
          %v1843 = vld [vmem:[#allocation7 + $0xc8] sm:$0xff]
          %v1844 = vld [vmem:[#allocation7 + $0xd0] sm:$0xff]
          %v1845 = vld [vmem:[#allocation7 + $0xd8] sm:$0xff]
          %v1846 = vld [vmem:[#allocation7 + $0xe0] sm:$0xff]
          %v1847 = vld [vmem:[#allocation7 + $0xe8] sm:$0xff]
          %v1848 = vld [vmem:[#allocation7 + $0xf0] sm:$0xff]
          %v1849 = vld [vmem:[#allocation7 + $0xf8] sm:$0xff]
          %v1850 = vld [vmem:[#allocation7 + $0x100] sm:$0xff]
          %v1851 = vld [vmem:[#allocation7 + $0x108] sm:$0xff]
          %v1852 = vld [vmem:[#allocation7 + $0x110] sm:$0xff]
          %v1853 = vld [vmem:[#allocation7 + $0x118] sm:$0xff]
          %v1854 = vld [vmem:[#allocation7 + $0x120] sm:$0xff]
          %v1855 = vld [vmem:[#allocation7 + $0x128] sm:$0xff]
          %v1856 = vld [vmem:[#allocation7 + $0x130] sm:$0xff]
          %v1857 = vld [vmem:[#allocation7 + $0x138] sm:$0xff]
          %v1858 = vld [vmem:[#allocation7 + $0x140] sm:$0xff]
          %v1859 = vld [vmem:[#allocation7 + $0x148] sm:$0xff]
          %v1860 = vld [vmem:[#allocation7 + $0x150] sm:$0xff]
          %v1861 = vld [vmem:[#allocation7 + $0x158] sm:$0xff]
          %v1862 = vld [vmem:[#allocation7 + $0x160] sm:$0xff]
          %v1863 = vld [vmem:[#allocation7 + $0x168] sm:$0xff]
          %v1864 = vld [vmem:[#allocation7 + $0x170] sm:$0xff]
          %v1865 = vld [vmem:[#allocation7 + $0x178] sm:$0xff]
          %v1866 = vld [vmem:[#allocation7 + $0x180] sm:$0xff]
          %v1867 = vld [vmem:[#allocation7 + $0x188] sm:$0xff]
          %v1868 = vld [vmem:[#allocation7 + $0x190] sm:$0xff]
          %v1869 = vld [vmem:[#allocation7 + $0x198] sm:$0xff]
          %v1870 = vld [vmem:[#allocation7 + $0x1a0] sm:$0xff]
          %v1871 = vld [vmem:[#allocation7 + $0x1a8] sm:$0xff]
          %v1872 = vld [vmem:[#allocation7 + $0x1b0] sm:$0xff]
          %v1873 = vld [vmem:[#allocation7 + $0x1b8] sm:$0xff]
          %v1874 = vld [vmem:[#allocation7 + $0x1c0] sm:$0xff]
          %v1875 = vld [vmem:[#allocation7 + $0x1c8] sm:$0xff]
          %v1876 = vld [vmem:[#allocation7 + $0x1d0] sm:$0xff]
          %v1877 = vld [vmem:[#allocation7 + $0x1d8] sm:$0xff]
          %v1878 = vld [vmem:[#allocation7 + $0x1e0] sm:$0xff]
          %v1879 = vld [vmem:[#allocation7 + $0x1e8] sm:$0xff]
          %v1880 = vld [vmem:[#allocation7 + $0x1f0] sm:$0xff]
          %v1881 = vld [vmem:[#allocation7 + $0x1f8] sm:$0xff]
          %v1882 = vld [vmem:[%s8] sm:$0xff]
          %v1884 = vlaneseq
          %v1885 = vshrl.u32 %v1884, 7
          %v1886 = vsub.s32 0, %v1885
          %v1887 = vrot.slane %v1882, %v1886
          %v1888 = vlaneseq
          %v1889 = vshrl.u32 %v1888, 7
          %v1890 = vsub.s32 1, %v1889
          %v1891 = vrot.slane %v1882, %v1890
          %v1892 = vlaneseq
          %v1893 = vshrl.u32 %v1892, 7
          %v1894 = vsub.s32 2, %v1893
          %v1895 = vrot.slane %v1882, %v1894
          %v1896 = vlaneseq
          %v1897 = vshrl.u32 %v1896, 7
          %v1898 = vsub.s32 3, %v1897
          %v1899 = vrot.slane %v1882, %v1898
          %v1900 = vlaneseq
          %v1901 = vshrl.u32 %v1900, 7
          %v1902 = vsub.s32 4, %v1901
          %v1903 = vrot.slane %v1882, %v1902
          %v1904 = vlaneseq
          %v1905 = vshrl.u32 %v1904, 7
          %v1906 = vsub.s32 5, %v1905
          %v1907 = vrot.slane %v1882, %v1906
          %v1908 = vlaneseq
          %v1909 = vshrl.u32 %v1908, 7
          %v1910 = vsub.s32 6, %v1909
          %v1911 = vrot.slane %v1882, %v1910
          %v1912 = vlaneseq
          %v1913 = vshrl.u32 %v1912, 7
          %v1914 = vsub.s32 7, %v1913
          %v1915 = vrot.slane %v1882, %v1914
          %vm1924 = vcmask 523264
          %v1926 = vsel %vm1924, %v1817, 0
          %1928 = vmatprep.subr.mxu0 %v1819
          %1929 = vmatpush1.msra.mxu0 %v1818
          %1930 = vmatprep.subr.mxu0 %v1827
          %1931 = vmatpush1.msra.mxu0 %v1826
          %1932 = vmatprep.subr.mxu0 %v1835
          %1933 = vmatpush1.msra.mxu0 %v1834
          %1934 = vmatprep.subr.mxu0 %v1843
          %1935 = vmatpush1.msra.mxu0 %v1842
          %1936 = vmatprep.subr.mxu0 %v1851
          %1937 = vmatpush1.msra.mxu0 %v1850
          %1938 = vmatprep.subr.mxu0 %v1859
          %1939 = vmatpush1.msra.mxu0 %v1858
          %1940 = vmatprep.subr.mxu0 %v1867
          %1941 = vmatpush1.msra.mxu0 %v1866
          %1942 = vmatprep.subr.mxu0 %v1875
          %1943 = vmatpush1.msra.mxu0 %v1874
          %1944 = vmatprep.subr.mxu0 0.0
          %1945 = vmatpush1.msra.mxu0 0.0
          %1946 = vmatprep.subr.mxu0 0.0
          %1947 = vmatpush1.msra.mxu0 0.0
          %1948 = vmatprep.subr.mxu0 0.0
          %1949 = vmatpush1.msra.mxu0 0.0
          %1950 = vmatprep.subr.mxu0 0.0
          %1951 = vmatpush1.msra.mxu0 0.0
          %1952 = vmatprep.subr.mxu0 0.0
          %1953 = vmatpush1.msra.mxu0 0.0
          %1954 = vmatprep.subr.mxu0 0.0
          %1955 = vmatpush1.msra.mxu0 0.0
          %1956 = vmatprep.subr.mxu0 0.0
          %1957 = vmatpush1.msra.mxu0 0.0
          %1958 = vmatprep.subr.mxu0 0.0
          %1959 = vmatpush1.msra.mxu0 0.0
          %1960 = vmatprep.subr.mxu0 0.0
          %1961 = vmatpush1.msra.mxu0 0.0
          %1962 = vmatprep.subr.mxu0 0.0
          %1963 = vmatpush1.msra.mxu0 0.0
          %1964 = vmatprep.subr.mxu0 0.0
          %1965 = vmatpush1.msra.mxu0 0.0
          %1966 = vmatprep.subr.mxu0 0.0
          %1967 = vmatpush1.msra.mxu0 0.0
          %1968 = vmatprep.subr.mxu0 0.0
          %1969 = vmatpush1.msra.mxu0 0.0
          %1970 = vmatprep.subr.mxu0 0.0
          %1971 = vmatpush1.msra.mxu0 0.0
          %1972 = vmatprep.subr.mxu0 0.0
          %1973 = vmatpush1.msra.mxu0 0.0
          %1974 = vmatprep.subr.mxu0 0.0
          %1975 = vmatpush1.msra.mxu0 0.0
          %1976 = vmatprep.subr.mxu0 0.0
          %1977 = vmatpush1.msra.mxu0 0.0
          %1978 = vmatprep.subr.mxu0 0.0
          %1979 = vmatpush1.msra.mxu0 0.0
          %1980 = vmatprep.subr.mxu0 0.0
          %1981 = vmatpush1.msra.mxu0 0.0
          %1982 = vmatprep.subr.mxu0 0.0
          %1983 = vmatpush1.msra.mxu0 0.0
          %1984 = vmatprep.subr.mxu0 0.0
          %1985 = vmatpush1.msra.mxu0 0.0
          %1986 = vmatprep.subr.mxu0 0.0
          %1987 = vmatpush1.msra.mxu0 0.0
          %1988 = vmatprep.subr.mxu0 0.0
          %1989 = vmatpush1.msra.mxu0 0.0
          %1990 = vmatprep.subr.mxu0 0.0
          %1991 = vmatpush1.msra.mxu0 0.0
          %1992 = vmatprep.mubr.f32.mxu0 0.0
          %1993 = vmatmul.mubr.f32.gmra.mrb[0].mxu0 %v1926
          %v1994 = vpop.f32.mrb[0].mxu0
          %v1995 = vadd.f32 %v1887, %v1994
          %v1996 = vpop.f32.mrb[0].mxu0
          %v1997 = vadd.f32 %v1891, %v1996
          %1998 = vdwg.mxu0
          %1999 = vmatprep.subr.mxu0 %v1821
          %2000 = vmatpush1.msra.mxu0 %v1820
          %2001 = vmatprep.subr.mxu0 %v1829
          %2002 = vmatpush1.msra.mxu0 %v1828
          %2003 = vmatprep.subr.mxu0 %v1837
          %2004 = vmatpush1.msra.mxu0 %v1836
          %2005 = vmatprep.subr.mxu0 %v1845
          %2006 = vmatpush1.msra.mxu0 %v1844
          %2007 = vmatprep.subr.mxu0 %v1853
          %2008 = vmatpush1.msra.mxu0 %v1852
          %2009 = vmatprep.subr.mxu0 %v1861
          %2010 = vmatpush1.msra.mxu0 %v1860
          %2011 = vmatprep.subr.mxu0 %v1869
          %2012 = vmatpush1.msra.mxu0 %v1868
          %2013 = vmatprep.subr.mxu0 %v1877
          %2014 = vmatpush1.msra.mxu0 %v1876
          %2015 = vmatprep.subr.mxu0 0.0
          %2016 = vmatpush1.msra.mxu0 0.0
          %2017 = vmatprep.subr.mxu0 0.0
          %2018 = vmatpush1.msra.mxu0 0.0
          %2019 = vmatprep.subr.mxu0 0.0
          %2020 = vmatpush1.msra.mxu0 0.0
          %2021 = vmatprep.subr.mxu0 0.0
          %2022 = vmatpush1.msra.mxu0 0.0
          %2023 = vmatprep.subr.mxu0 0.0
          %2024 = vmatpush1.msra.mxu0 0.0
          %2025 = vmatprep.subr.mxu0 0.0
          %2026 = vmatpush1.msra.mxu0 0.0
          %2027 = vmatprep.subr.mxu0 0.0
          %2028 = vmatpush1.msra.mxu0 0.0
          %2029 = vmatprep.subr.mxu0 0.0
          %2030 = vmatpush1.msra.mxu0 0.0
          %2031 = vmatprep.subr.mxu0 0.0
          %2032 = vmatpush1.msra.mxu0 0.0
          %2033 = vmatprep.subr.mxu0 0.0
          %2034 = vmatpush1.msra.mxu0 0.0
          %2035 = vmatprep.subr.mxu0 0.0
          %2036 = vmatpush1.msra.mxu0 0.0
          %2037 = vmatprep.subr.mxu0 0.0
          %2038 = vmatpush1.msra.mxu0 0.0
          %2039 = vmatprep.subr.mxu0 0.0
          %2040 = vmatpush1.msra.mxu0 0.0
          %2041 = vmatprep.subr.mxu0 0.0
          %2042 = vmatpush1.msra.mxu0 0.0
          %2043 = vmatprep.subr.mxu0 0.0
          %2044 = vmatpush1.msra.mxu0 0.0
          %2045 = vmatprep.subr.mxu0 0.0
          %2046 = vmatpush1.msra.mxu0 0.0
          %2047 = vmatprep.subr.mxu0 0.0
          %2048 = vmatpush1.msra.mxu0 0.0
          %2049 = vmatprep.subr.mxu0 0.0
          %2050 = vmatpush1.msra.mxu0 0.0
          %2051 = vmatprep.subr.mxu0 0.0
          %2052 = vmatpush1.msra.mxu0 0.0
          %2053 = vmatprep.subr.mxu0 0.0
          %2054 = vmatpush1.msra.mxu0 0.0
          %2055 = vmatprep.subr.mxu0 0.0
          %2056 = vmatpush1.msra.mxu0 0.0
          %2057 = vmatprep.subr.mxu0 0.0
          %2058 = vmatpush1.msra.mxu0 0.0
          %2059 = vmatprep.subr.mxu0 0.0
          %2060 = vmatpush1.msra.mxu0 0.0
          %2061 = vmatprep.subr.mxu0 0.0
          %2062 = vmatpush1.msra.mxu0 0.0
          %2063 = vmatprep.mubr.f32.mxu0 0.0
          %2064 = vmatmul.mubr.f32.gmra.mrb[0].mxu0 %v1926
          %v2065 = vpop.f32.mrb[0].mxu0
          %v2066 = vadd.f32 %v1895, %v2065
          %v2067 = vpop.f32.mrb[0].mxu0
          %v2068 = vadd.f32 %v1899, %v2067
          %2069 = vdwg.mxu0
          %2070 = vmatprep.subr.mxu0 %v1823
          %2071 = vmatpush1.msra.mxu0 %v1822
          %2072 = vmatprep.subr.mxu0 %v1831
          %2073 = vmatpush1.msra.mxu0 %v1830
          %2074 = vmatprep.subr.mxu0 %v1839
          %2075 = vmatpush1.msra.mxu0 %v1838
          %2076 = vmatprep.subr.mxu0 %v1847
          %2077 = vmatpush1.msra.mxu0 %v1846
          %2078 = vmatprep.subr.mxu0 %v1855
          %2079 = vmatpush1.msra.mxu0 %v1854
          %2080 = vmatprep.subr.mxu0 %v1863
          %2081 = vmatpush1.msra.mxu0 %v1862
          %2082 = vmatprep.subr.mxu0 %v1871
          %2083 = vmatpush1.msra.mxu0 %v1870
          %2084 = vmatprep.subr.mxu0 %v1879
          %2085 = vmatpush1.msra.mxu0 %v1878
          %2086 = vmatprep.subr.mxu0 0.0
          %2087 = vmatpush1.msra.mxu0 0.0
          %2088 = vmatprep.subr.mxu0 0.0
          %2089 = vmatpush1.msra.mxu0 0.0
          %2090 = vmatprep.subr.mxu0 0.0
          %2091 = vmatpush1.msra.mxu0 0.0
          %2092 = vmatprep.subr.mxu0 0.0
          %2093 = vmatpush1.msra.mxu0 0.0
          %2094 = vmatprep.subr.mxu0 0.0
          %2095 = vmatpush1.msra.mxu0 0.0
          %2096 = vmatprep.subr.mxu0 0.0
          %2097 = vmatpush1.msra.mxu0 0.0
          %2098 = vmatprep.subr.mxu0 0.0
          %2099 = vmatpush1.msra.mxu0 0.0
          %2100 = vmatprep.subr.mxu0 0.0
          %2101 = vmatpush1.msra.mxu0 0.0
          %2102 = vmatprep.subr.mxu0 0.0
          %2103 = vmatpush1.msra.mxu0 0.0
          %2104 = vmatprep.subr.mxu0 0.0
          %2105 = vmatpush1.msra.mxu0 0.0
          %2106 = vmatprep.subr.mxu0 0.0
          %2107 = vmatpush1.msra.mxu0 0.0
          %2108 = vmatprep.subr.mxu0 0.0
          %2109 = vmatpush1.msra.mxu0 0.0
          %2110 = vmatprep.subr.mxu0 0.0
          %2111 = vmatpush1.msra.mxu0 0.0
          %2112 = vmatprep.subr.mxu0 0.0
          %2113 = vmatpush1.msra.mxu0 0.0
          %2114 = vmatprep.subr.mxu0 0.0
          %2115 = vmatpush1.msra.mxu0 0.0
          %2116 = vmatprep.subr.mxu0 0.0
          %2117 = vmatpush1.msra.mxu0 0.0
          %2118 = vmatprep.subr.mxu0 0.0
          %2119 = vmatpush1.msra.mxu0 0.0
          %2120 = vmatprep.subr.mxu0 0.0
          %2121 = vmatpush1.msra.mxu0 0.0
          %2122 = vmatprep.subr.mxu0 0.0
          %2123 = vmatpush1.msra.mxu0 0.0
          %2124 = vmatprep.subr.mxu0 0.0
          %2125 = vmatpush1.msra.mxu0 0.0
          %2126 = vmatprep.subr.mxu0 0.0
          %2127 = vmatpush1.msra.mxu0 0.0
          %2128 = vmatprep.subr.mxu0 0.0
          %2129 = vmatpush1.msra.mxu0 0.0
          %2130 = vmatprep.subr.mxu0 0.0
          %2131 = vmatpush1.msra.mxu0 0.0
          %2132 = vmatprep.subr.mxu0 0.0
          %2133 = vmatpush1.msra.mxu0 0.0
          %2134 = vmatprep.mubr.f32.mxu0 0.0
          %2135 = vmatmul.mubr.f32.gmra.mrb[0].mxu0 %v1926
          %v2136 = vpop.f32.mrb[0].mxu0
          %v2137 = vadd.f32 %v1903, %v2136
          %v2138 = vpop.f32.mrb[0].mxu0
          %v2139 = vadd.f32 %v1907, %v2138
          %2140 = vdwg.mxu0
          %2141 = vmatprep.subr.mxu0 %v1825
          %2142 = vmatpush1.msra.mxu0 %v1824
          %2143 = vmatprep.subr.mxu0 %v1833
          %2144 = vmatpush1.msra.mxu0 %v1832
          %2145 = vmatprep.subr.mxu0 %v1841
          %2146 = vmatpush1.msra.mxu0 %v1840
          %2147 = vmatprep.subr.mxu0 %v1849
          %2148 = vmatpush1.msra.mxu0 %v1848
          %2149 = vmatprep.subr.mxu0 %v1857
          %2150 = vmatpush1.msra.mxu0 %v1856
          %2151 = vmatprep.subr.mxu0 %v1865
          %2152 = vmatpush1.msra.mxu0 %v1864
          %2153 = vmatprep.subr.mxu0 %v1873
          %2154 = vmatpush1.msra.mxu0 %v1872
          %2155 = vmatprep.subr.mxu0 %v1881
          %2156 = vmatpush1.msra.mxu0 %v1880
          %2157 = vmatprep.subr.mxu0 0.0
          %2158 = vmatpush1.msra.mxu0 0.0
          %2159 = vmatprep.subr.mxu0 0.0
          %2160 = vmatpush1.msra.mxu0 0.0
          %2161 = vmatprep.subr.mxu0 0.0
          %2162 = vmatpush1.msra.mxu0 0.0
          %2163 = vmatprep.subr.mxu0 0.0
          %2164 = vmatpush1.msra.mxu0 0.0
          %2165 = vmatprep.subr.mxu0 0.0
          %2166 = vmatpush1.msra.mxu0 0.0
          %2167 = vmatprep.subr.mxu0 0.0
          %2168 = vmatpush1.msra.mxu0 0.0
          %2169 = vmatprep.subr.mxu0 0.0
          %2170 = vmatpush1.msra.mxu0 0.0
          %2171 = vmatprep.subr.mxu0 0.0
          %2172 = vmatpush1.msra.mxu0 0.0
          %2173 = vmatprep.subr.mxu0 0.0
          %2174 = vmatpush1.msra.mxu0 0.0
          %2175 = vmatprep.subr.mxu0 0.0
          %2176 = vmatpush1.msra.mxu0 0.0
          %2177 = vmatprep.subr.mxu0 0.0
          %2178 = vmatpush1.msra.mxu0 0.0
          %2179 = vmatprep.subr.mxu0 0.0
          %2180 = vmatpush1.msra.mxu0 0.0
          %2181 = vmatprep.subr.mxu0 0.0
          %2182 = vmatpush1.msra.mxu0 0.0
          %2183 = vmatprep.subr.mxu0 0.0
          %2184 = vmatpush1.msra.mxu0 0.0
          %2185 = vmatprep.subr.mxu0 0.0
          %2186 = vmatpush1.msra.mxu0 0.0
          %2187 = vmatprep.subr.mxu0 0.0
          %2188 = vmatpush1.msra.mxu0 0.0
          %2189 = vmatprep.subr.mxu0 0.0
          %2190 = vmatpush1.msra.mxu0 0.0
          %2191 = vmatprep.subr.mxu0 0.0
          %2192 = vmatpush1.msra.mxu0 0.0
          %2193 = vmatprep.subr.mxu0 0.0
          %2194 = vmatpush1.msra.mxu0 0.0
          %2195 = vmatprep.subr.mxu0 0.0
          %2196 = vmatpush1.msra.mxu0 0.0
          %2197 = vmatprep.subr.mxu0 0.0
          %2198 = vmatpush1.msra.mxu0 0.0
          %2199 = vmatprep.subr.mxu0 0.0
          %2200 = vmatpush1.msra.mxu0 0.0
          %2201 = vmatprep.subr.mxu0 0.0
          %2202 = vmatpush1.msra.mxu0 0.0
          %2203 = vmatprep.subr.mxu0 0.0
          %2204 = vmatpush1.msra.mxu0 0.0
          %2205 = vmatprep.mubr.f32.mxu0 0.0
          %2206 = vmatmul.mubr.f32.gmra.mrb[0].mxu0 %v1926
          %v2207 = vpop.f32.mrb[0].mxu0
          %v2208 = vadd.f32 %v1911, %v2207
          %v2209 = vpop.f32.mrb[0].mxu0
          %v2210 = vadd.f32 %v1915, %v2209
          %2211 = vdwg.mxu0
          %v2212 = vmax.f32 %v1995, 0.0
          %v2213 = vmax.f32 %v1997, 0.0
          %v2214 = vmax.f32 %v2066, 0.0
          %v2215 = vmax.f32 %v2068, 0.0
          %v2216 = vmax.f32 %v2137, 0.0
          %v2217 = vmax.f32 %v2139, 0.0
          %v2218 = vmax.f32 %v2208, 0.0
          %v2219 = vmax.f32 %v2210, 0.0
          %v2220 = vld [vmem:[#allocation10] sm:$0xff]
          %v2221 = vld [vmem:[#allocation10 + $0x8] sm:$0xff]
          %v2222 = vld [vmem:[#allocation10 + $0x10] sm:$0xff]
          %v2223 = vld [vmem:[#allocation10 + $0x18] sm:$0xff]
          %v2224 = vld [vmem:[#allocation10 + $0x20] sm:$0xff]
          %v2225 = vld [vmem:[#allocation10 + $0x28] sm:$0xff]
          %v2226 = vld [vmem:[#allocation10 + $0x30] sm:$0xff]
          %v2227 = vld [vmem:[#allocation10 + $0x38] sm:$0xff]
          %v2228 = vld [vmem:[#allocation10 + $0x40] sm:$0xff]
          %v2229 = vld [vmem:[#allocation10 + $0x48] sm:$0xff]
          %v2230 = vld [vmem:[#allocation10 + $0x50] sm:$0xff]
          %v2231 = vld [vmem:[#allocation10 + $0x58] sm:$0xff]
          %v2232 = vld [vmem:[#allocation10 + $0x60] sm:$0xff]
          %v2233 = vld [vmem:[#allocation10 + $0x68] sm:$0xff]
          %v2234 = vld [vmem:[#allocation10 + $0x70] sm:$0xff]
          %v2235 = vld [vmem:[#allocation10 + $0x78] sm:$0xff]
          %v2236 = vld [vmem:[#allocation10 + $0x80] sm:$0xff]
          %v2237 = vld [vmem:[#allocation10 + $0x88] sm:$0xff]
          %v2238 = vld [vmem:[#allocation10 + $0x90] sm:$0xff]
          %v2239 = vld [vmem:[#allocation10 + $0x98] sm:$0xff]
          %v2240 = vld [vmem:[#allocation10 + $0xa0] sm:$0xff]
          %v2241 = vld [vmem:[#allocation10 + $0xa8] sm:$0xff]
          %v2242 = vld [vmem:[#allocation10 + $0xb0] sm:$0xff]
          %v2243 = vld [vmem:[#allocation10 + $0xb8] sm:$0xff]
          %v2244 = vld [vmem:[#allocation10 + $0xc0] sm:$0xff]
          %v2245 = vld [vmem:[#allocation10 + $0xc8] sm:$0xff]
          %v2246 = vld [vmem:[#allocation10 + $0xd0] sm:$0xff]
          %v2247 = vld [vmem:[#allocation10 + $0xd8] sm:$0xff]
          %v2248 = vld [vmem:[#allocation10 + $0xe0] sm:$0xff]
          %v2249 = vld [vmem:[#allocation10 + $0xe8] sm:$0xff]
          %v2250 = vld [vmem:[#allocation10 + $0xf0] sm:$0xff]
          %v2251 = vld [vmem:[#allocation10 + $0xf8] sm:$0xff]
          %v2252 = vld [vmem:[#allocation10 + $0x100] sm:$0xff]
          %v2253 = vld [vmem:[#allocation10 + $0x108] sm:$0xff]
          %v2254 = vld [vmem:[#allocation10 + $0x110] sm:$0xff]
          %v2255 = vld [vmem:[#allocation10 + $0x118] sm:$0xff]
          %v2256 = vld [vmem:[#allocation10 + $0x120] sm:$0xff]
          %v2257 = vld [vmem:[#allocation10 + $0x128] sm:$0xff]
          %v2258 = vld [vmem:[#allocation10 + $0x130] sm:$0xff]
          %v2259 = vld [vmem:[#allocation10 + $0x138] sm:$0xff]
          %v2260 = vld [vmem:[#allocation10 + $0x140] sm:$0xff]
          %v2261 = vld [vmem:[#allocation10 + $0x148] sm:$0xff]
          %v2262 = vld [vmem:[#allocation10 + $0x150] sm:$0xff]
          %v2263 = vld [vmem:[#allocation10 + $0x158] sm:$0xff]
          %v2264 = vld [vmem:[#allocation10 + $0x160] sm:$0xff]
          %v2265 = vld [vmem:[#allocation10 + $0x168] sm:$0xff]
          %v2266 = vld [vmem:[#allocation10 + $0x170] sm:$0xff]
          %v2267 = vld [vmem:[#allocation10 + $0x178] sm:$0xff]
          %v2268 = vld [vmem:[#allocation10 + $0x180] sm:$0xff]
          %v2269 = vld [vmem:[#allocation10 + $0x188] sm:$0xff]
          %v2270 = vld [vmem:[#allocation10 + $0x190] sm:$0xff]
          %v2271 = vld [vmem:[#allocation10 + $0x198] sm:$0xff]
          %v2272 = vld [vmem:[#allocation10 + $0x1a0] sm:$0xff]
          %v2273 = vld [vmem:[#allocation10 + $0x1a8] sm:$0xff]
          %v2274 = vld [vmem:[#allocation10 + $0x1b0] sm:$0xff]
          %v2275 = vld [vmem:[#allocation10 + $0x1b8] sm:$0xff]
          %v2276 = vld [vmem:[#allocation10 + $0x1c0] sm:$0xff]
          %v2277 = vld [vmem:[#allocation10 + $0x1c8] sm:$0xff]
          %v2278 = vld [vmem:[#allocation10 + $0x1d0] sm:$0xff]
          %v2279 = vld [vmem:[#allocation10 + $0x1d8] sm:$0xff]
          %v2280 = vld [vmem:[#allocation10 + $0x1e0] sm:$0xff]
          %v2281 = vld [vmem:[#allocation10 + $0x1e8] sm:$0xff]
          %v2282 = vld [vmem:[#allocation10 + $0x1f0] sm:$0xff]
          %v2283 = vld [vmem:[#allocation10 + $0x1f8] sm:$0xff]
          %v2284 = vld [vmem:[#allocation10 + $0x200] sm:$0xff]
          %v2285 = vld [vmem:[#allocation10 + $0x208] sm:$0xff]
          %v2286 = vld [vmem:[#allocation10 + $0x210] sm:$0xff]
          %v2287 = vld [vmem:[#allocation10 + $0x218] sm:$0xff]
          %v2288 = vld [vmem:[#allocation10 + $0x220] sm:$0xff]
          %v2289 = vld [vmem:[#allocation10 + $0x228] sm:$0xff]
          %v2290 = vld [vmem:[#allocation10 + $0x230] sm:$0xff]
          %v2291 = vld [vmem:[#allocation10 + $0x238] sm:$0xff]
          %v2292 = vld [vmem:[#allocation10 + $0x240] sm:$0xff]
          %v2293 = vld [vmem:[#allocation10 + $0x248] sm:$0xff]
          %v2294 = vld [vmem:[#allocation10 + $0x250] sm:$0xff]
          %v2295 = vld [vmem:[#allocation10 + $0x258] sm:$0xff]
          %v2296 = vld [vmem:[#allocation10 + $0x260] sm:$0xff]
          %v2297 = vld [vmem:[#allocation10 + $0x268] sm:$0xff]
          %v2298 = vld [vmem:[#allocation10 + $0x270] sm:$0xff]
          %v2299 = vld [vmem:[#allocation10 + $0x278] sm:$0xff]
          %v2300 = vld [vmem:[#allocation10 + $0x280] sm:$0xff]
          %v2301 = vld [vmem:[#allocation10 + $0x288] sm:$0xff]
          %v2302 = vld [vmem:[#allocation10 + $0x290] sm:$0xff]
          %v2303 = vld [vmem:[#allocation10 + $0x298] sm:$0xff]
          %v2304 = vld [vmem:[#allocation10 + $0x2a0] sm:$0xff]
          %v2305 = vld [vmem:[#allocation10 + $0x2a8] sm:$0xff]
          %v2306 = vld [vmem:[#allocation10 + $0x2b0] sm:$0xff]
          %v2307 = vld [vmem:[#allocation10 + $0x2b8] sm:$0xff]
          %v2308 = vld [vmem:[#allocation10 + $0x2c0] sm:$0xff]
          %v2309 = vld [vmem:[#allocation10 + $0x2c8] sm:$0xff]
          %v2310 = vld [vmem:[#allocation10 + $0x2d0] sm:$0xff]
          %v2311 = vld [vmem:[#allocation10 + $0x2d8] sm:$0xff]
          %v2312 = vld [vmem:[#allocation10 + $0x2e0] sm:$0xff]
          %v2313 = vld [vmem:[#allocation10 + $0x2e8] sm:$0xff]
          %v2314 = vld [vmem:[#allocation10 + $0x2f0] sm:$0xff]
          %v2315 = vld [vmem:[#allocation10 + $0x2f8] sm:$0xff]
          %v2316 = vld [vmem:[#allocation10 + $0x300] sm:$0xff]
          %v2317 = vld [vmem:[#allocation10 + $0x308] sm:$0xff]
          %v2318 = vld [vmem:[#allocation10 + $0x310] sm:$0xff]
          %v2319 = vld [vmem:[#allocation10 + $0x318] sm:$0xff]
          %v2320 = vld [vmem:[#allocation10 + $0x320] sm:$0xff]
          %v2321 = vld [vmem:[#allocation10 + $0x328] sm:$0xff]
          %v2322 = vld [vmem:[#allocation10 + $0x330] sm:$0xff]
          %v2323 = vld [vmem:[#allocation10 + $0x338] sm:$0xff]
          %v2324 = vld [vmem:[#allocation10 + $0x340] sm:$0xff]
          %v2325 = vld [vmem:[#allocation10 + $0x348] sm:$0xff]
          %v2326 = vld [vmem:[#allocation10 + $0x350] sm:$0xff]
          %v2327 = vld [vmem:[#allocation10 + $0x358] sm:$0xff]
          %v2328 = vld [vmem:[#allocation10 + $0x360] sm:$0xff]
          %v2329 = vld [vmem:[#allocation10 + $0x368] sm:$0xff]
          %v2330 = vld [vmem:[#allocation10 + $0x370] sm:$0xff]
          %v2331 = vld [vmem:[#allocation10 + $0x378] sm:$0xff]
          %v2332 = vld [vmem:[#allocation10 + $0x380] sm:$0xff]
          %v2333 = vld [vmem:[#allocation10 + $0x388] sm:$0xff]
          %v2334 = vld [vmem:[#allocation10 + $0x390] sm:$0xff]
          %v2335 = vld [vmem:[#allocation10 + $0x398] sm:$0xff]
          %v2336 = vld [vmem:[#allocation10 + $0x3a0] sm:$0xff]
          %v2337 = vld [vmem:[#allocation10 + $0x3a8] sm:$0xff]
          %v2338 = vld [vmem:[#allocation10 + $0x3b0] sm:$0xff]
          %v2339 = vld [vmem:[#allocation10 + $0x3b8] sm:$0xff]
          %v2340 = vld [vmem:[#allocation10 + $0x3c0] sm:$0xff]
          %v2341 = vld [vmem:[#allocation10 + $0x3c8] sm:$0xff]
          %v2342 = vld [vmem:[#allocation10 + $0x3d0] sm:$0xff]
          %v2343 = vld [vmem:[#allocation10 + $0x3d8] sm:$0xff]
          %v2344 = vld [vmem:[#allocation10 + $0x3e0] sm:$0xff]
          %v2345 = vld [vmem:[#allocation10 + $0x3e8] sm:$0xff]
          %v2346 = vld [vmem:[#allocation10 + $0x3f0] sm:$0xff]
          %v2347 = vld [vmem:[#allocation10 + $0x3f8] sm:$0xff]
          %v2348 = vld [vmem:[#allocation10 + $0x400] sm:$0xff]
          %v2349 = vld [vmem:[#allocation10 + $0x408] sm:$0xff]
          %v2350 = vld [vmem:[#allocation10 + $0x410] sm:$0xff]
          %v2351 = vld [vmem:[#allocation10 + $0x418] sm:$0xff]
          %v2352 = vld [vmem:[#allocation10 + $0x420] sm:$0xff]
          %v2353 = vld [vmem:[#allocation10 + $0x428] sm:$0xff]
          %v2354 = vld [vmem:[#allocation10 + $0x430] sm:$0xff]
          %v2355 = vld [vmem:[#allocation10 + $0x438] sm:$0xff]
          %v2356 = vld [vmem:[#allocation10 + $0x440] sm:$0xff]
          %v2357 = vld [vmem:[#allocation10 + $0x448] sm:$0xff]
          %v2358 = vld [vmem:[#allocation10 + $0x450] sm:$0xff]
          %v2359 = vld [vmem:[#allocation10 + $0x458] sm:$0xff]
          %v2360 = vld [vmem:[#allocation10 + $0x460] sm:$0xff]
          %v2361 = vld [vmem:[#allocation10 + $0x468] sm:$0xff]
          %v2362 = vld [vmem:[#allocation10 + $0x470] sm:$0xff]
          %v2363 = vld [vmem:[#allocation10 + $0x478] sm:$0xff]
          %v2364 = vld [vmem:[#allocation10 + $0x480] sm:$0xff]
          %v2365 = vld [vmem:[#allocation10 + $0x488] sm:$0xff]
          %v2366 = vld [vmem:[#allocation10 + $0x490] sm:$0xff]
          %v2367 = vld [vmem:[#allocation10 + $0x498] sm:$0xff]
          %v2368 = vld [vmem:[#allocation10 + $0x4a0] sm:$0xff]
          %v2369 = vld [vmem:[#allocation10 + $0x4a8] sm:$0xff]
          %v2370 = vld [vmem:[#allocation10 + $0x4b0] sm:$0xff]
          %v2371 = vld [vmem:[#allocation10 + $0x4b8] sm:$0xff]
          %v2372 = vld [vmem:[#allocation10 + $0x4c0] sm:$0xff]
          %v2373 = vld [vmem:[#allocation10 + $0x4c8] sm:$0xff]
          %v2374 = vld [vmem:[#allocation10 + $0x4d0] sm:$0xff]
          %v2375 = vld [vmem:[#allocation10 + $0x4d8] sm:$0xff]
          %v2376 = vld [vmem:[#allocation10 + $0x4e0] sm:$0xff]
          %v2377 = vld [vmem:[#allocation10 + $0x4e8] sm:$0xff]
          %v2378 = vld [vmem:[#allocation10 + $0x4f0] sm:$0xff]
          %v2379 = vld [vmem:[#allocation10 + $0x4f8] sm:$0xff]
          %v2380 = vld [vmem:[#allocation10 + $0x500] sm:$0xff]
          %v2381 = vld [vmem:[#allocation10 + $0x508] sm:$0xff]
          %v2382 = vld [vmem:[#allocation10 + $0x510] sm:$0xff]
          %v2383 = vld [vmem:[#allocation10 + $0x518] sm:$0xff]
          %v2384 = vld [vmem:[#allocation10 + $0x520] sm:$0xff]
          %v2385 = vld [vmem:[#allocation10 + $0x528] sm:$0xff]
          %v2386 = vld [vmem:[#allocation10 + $0x530] sm:$0xff]
          %v2387 = vld [vmem:[#allocation10 + $0x538] sm:$0xff]
          %v2388 = vld [vmem:[#allocation10 + $0x540] sm:$0xff]
          %v2389 = vld [vmem:[#allocation10 + $0x548] sm:$0xff]
          %v2390 = vld [vmem:[#allocation10 + $0x550] sm:$0xff]
          %v2391 = vld [vmem:[#allocation10 + $0x558] sm:$0xff]
          %v2392 = vld [vmem:[#allocation10 + $0x560] sm:$0xff]
          %v2393 = vld [vmem:[#allocation10 + $0x568] sm:$0xff]
          %v2394 = vld [vmem:[#allocation10 + $0x570] sm:$0xff]
          %v2395 = vld [vmem:[#allocation10 + $0x578] sm:$0xff]
          %v2396 = vld [vmem:[#allocation10 + $0x580] sm:$0xff]
          %v2397 = vld [vmem:[#allocation10 + $0x588] sm:$0xff]
          %v2398 = vld [vmem:[#allocation10 + $0x590] sm:$0xff]
          %v2399 = vld [vmem:[#allocation10 + $0x598] sm:$0xff]
          %v2400 = vld [vmem:[#allocation10 + $0x5a0] sm:$0xff]
          %v2401 = vld [vmem:[#allocation10 + $0x5a8] sm:$0xff]
          %v2402 = vld [vmem:[#allocation10 + $0x5b0] sm:$0xff]
          %v2403 = vld [vmem:[#allocation10 + $0x5b8] sm:$0xff]
          %v2404 = vld [vmem:[#allocation10 + $0x5c0] sm:$0xff]
          %v2405 = vld [vmem:[#allocation10 + $0x5c8] sm:$0xff]
          %v2406 = vld [vmem:[#allocation10 + $0x5d0] sm:$0xff]
          %v2407 = vld [vmem:[#allocation10 + $0x5d8] sm:$0xff]
          %v2408 = vld [vmem:[#allocation10 + $0x5e0] sm:$0xff]
          %v2409 = vld [vmem:[#allocation10 + $0x5e8] sm:$0xff]
          %v2410 = vld [vmem:[#allocation10 + $0x5f0] sm:$0xff]
          %v2411 = vld [vmem:[#allocation10 + $0x5f8] sm:$0xff]
          %v2412 = vld [vmem:[#allocation10 + $0x600] sm:$0xff]
          %v2413 = vld [vmem:[#allocation10 + $0x608] sm:$0xff]
          %v2414 = vld [vmem:[#allocation10 + $0x610] sm:$0xff]
          %v2415 = vld [vmem:[#allocation10 + $0x618] sm:$0xff]
          %v2416 = vld [vmem:[#allocation10 + $0x620] sm:$0xff]
          %v2417 = vld [vmem:[#allocation10 + $0x628] sm:$0xff]
          %v2418 = vld [vmem:[#allocation10 + $0x630] sm:$0xff]
          %v2419 = vld [vmem:[#allocation10 + $0x638] sm:$0xff]
          %v2420 = vld [vmem:[#allocation10 + $0x640] sm:$0xff]
          %v2421 = vld [vmem:[#allocation10 + $0x648] sm:$0xff]
          %v2422 = vld [vmem:[#allocation10 + $0x650] sm:$0xff]
          %v2423 = vld [vmem:[#allocation10 + $0x658] sm:$0xff]
          %v2424 = vld [vmem:[#allocation10 + $0x660] sm:$0xff]
          %v2425 = vld [vmem:[#allocation10 + $0x668] sm:$0xff]
          %v2426 = vld [vmem:[#allocation10 + $0x670] sm:$0xff]
          %v2427 = vld [vmem:[#allocation10 + $0x678] sm:$0xff]
          %v2428 = vld [vmem:[#allocation10 + $0x680] sm:$0xff]
          %v2429 = vld [vmem:[#allocation10 + $0x688] sm:$0xff]
          %v2430 = vld [vmem:[#allocation10 + $0x690] sm:$0xff]
          %v2431 = vld [vmem:[#allocation10 + $0x698] sm:$0xff]
          %v2432 = vld [vmem:[#allocation10 + $0x6a0] sm:$0xff]
          %v2433 = vld [vmem:[#allocation10 + $0x6a8] sm:$0xff]
          %v2434 = vld [vmem:[#allocation10 + $0x6b0] sm:$0xff]
          %v2435 = vld [vmem:[#allocation10 + $0x6b8] sm:$0xff]
          %v2436 = vld [vmem:[#allocation10 + $0x6c0] sm:$0xff]
          %v2437 = vld [vmem:[#allocation10 + $0x6c8] sm:$0xff]
          %v2438 = vld [vmem:[#allocation10 + $0x6d0] sm:$0xff]
          %v2439 = vld [vmem:[#allocation10 + $0x6d8] sm:$0xff]
          %v2440 = vld [vmem:[#allocation10 + $0x6e0] sm:$0xff]
          %v2441 = vld [vmem:[#allocation10 + $0x6e8] sm:$0xff]
          %v2442 = vld [vmem:[#allocation10 + $0x6f0] sm:$0xff]
          %v2443 = vld [vmem:[#allocation10 + $0x6f8] sm:$0xff]
          %v2444 = vld [vmem:[#allocation10 + $0x700] sm:$0xff]
          %v2445 = vld [vmem:[#allocation10 + $0x708] sm:$0xff]
          %v2446 = vld [vmem:[#allocation10 + $0x710] sm:$0xff]
          %v2447 = vld [vmem:[#allocation10 + $0x718] sm:$0xff]
          %v2448 = vld [vmem:[#allocation10 + $0x720] sm:$0xff]
          %v2449 = vld [vmem:[#allocation10 + $0x728] sm:$0xff]
          %v2450 = vld [vmem:[#allocation10 + $0x730] sm:$0xff]
          %v2451 = vld [vmem:[#allocation10 + $0x738] sm:$0xff]
          %v2452 = vld [vmem:[#allocation10 + $0x740] sm:$0xff]
          %v2453 = vld [vmem:[#allocation10 + $0x748] sm:$0xff]
          %v2454 = vld [vmem:[#allocation10 + $0x750] sm:$0xff]
          %v2455 = vld [vmem:[#allocation10 + $0x758] sm:$0xff]
          %v2456 = vld [vmem:[#allocation10 + $0x760] sm:$0xff]
          %v2457 = vld [vmem:[#allocation10 + $0x768] sm:$0xff]
          %v2458 = vld [vmem:[#allocation10 + $0x770] sm:$0xff]
          %v2459 = vld [vmem:[#allocation10 + $0x778] sm:$0xff]
          %v2460 = vld [vmem:[#allocation10 + $0x780] sm:$0xff]
          %v2461 = vld [vmem:[#allocation10 + $0x788] sm:$0xff]
          %v2462 = vld [vmem:[#allocation10 + $0x790] sm:$0xff]
          %v2463 = vld [vmem:[#allocation10 + $0x798] sm:$0xff]
          %v2464 = vld [vmem:[#allocation10 + $0x7a0] sm:$0xff]
          %v2465 = vld [vmem:[#allocation10 + $0x7a8] sm:$0xff]
          %v2466 = vld [vmem:[#allocation10 + $0x7b0] sm:$0xff]
          %v2467 = vld [vmem:[#allocation10 + $0x7b8] sm:$0xff]
          %v2468 = vld [vmem:[#allocation10 + $0x7c0] sm:$0xff]
          %v2469 = vld [vmem:[#allocation10 + $0x7c8] sm:$0xff]
          %v2470 = vld [vmem:[#allocation10 + $0x7d0] sm:$0xff]
          %v2471 = vld [vmem:[#allocation10 + $0x7d8] sm:$0xff]
          %v2472 = vld [vmem:[#allocation10 + $0x7e0] sm:$0xff]
          %v2473 = vld [vmem:[#allocation10 + $0x7e8] sm:$0xff]
          %v2474 = vld [vmem:[#allocation10 + $0x7f0] sm:$0xff]
          %v2475 = vld [vmem:[#allocation10 + $0x7f8] sm:$0xff]
          %v2476 = vld [vmem:[%s10] sm:$0x3]
          %v2478 = vlaneseq
          %v2479 = vshrl.u32 %v2478, 7
          %v2480 = vsub.s32 0, %v2479
          %v2481 = vrot.slane %v2476, %v2480
          %v2482 = vlaneseq
          %v2483 = vshrl.u32 %v2482, 7
          %v2484 = vsub.s32 1, %v2483
          %v2485 = vrot.slane %v2476, %v2484
          %2488 = vmatprep.subr.mxu0 %v2221
          %2489 = vmatpush1.msra.mxu0 %v2220
          %2490 = vmatprep.subr.mxu0 %v2223
          %2491 = vmatpush1.msra.mxu0 %v2222
          %2492 = vmatprep.subr.mxu0 %v2225
          %2493 = vmatpush1.msra.mxu0 %v2224
          %2494 = vmatprep.subr.mxu0 %v2227
          %2495 = vmatpush1.msra.mxu0 %v2226
          %2496 = vmatprep.subr.mxu0 %v2229
          %2497 = vmatpush1.msra.mxu0 %v2228
          %2498 = vmatprep.subr.mxu0 %v2231
          %2499 = vmatpush1.msra.mxu0 %v2230
          %2500 = vmatprep.subr.mxu0 %v2233
          %2501 = vmatpush1.msra.mxu0 %v2232
          %2502 = vmatprep.subr.mxu0 %v2235
          %2503 = vmatpush1.msra.mxu0 %v2234
          %2504 = vmatprep.subr.mxu0 %v2237
          %2505 = vmatpush1.msra.mxu0 %v2236
          %2506 = vmatprep.subr.mxu0 %v2239
          %2507 = vmatpush1.msra.mxu0 %v2238
          %2508 = vmatprep.subr.mxu0 %v2241
          %2509 = vmatpush1.msra.mxu0 %v2240
          %2510 = vmatprep.subr.mxu0 %v2243
          %2511 = vmatpush1.msra.mxu0 %v2242
          %2512 = vmatprep.subr.mxu0 %v2245
          %2513 = vmatpush1.msra.mxu0 %v2244
          %2514 = vmatprep.subr.mxu0 %v2247
          %2515 = vmatpush1.msra.mxu0 %v2246
          %2516 = vmatprep.subr.mxu0 %v2249
          %2517 = vmatpush1.msra.mxu0 %v2248
          %2518 = vmatprep.subr.mxu0 %v2251
          %2519 = vmatpush1.msra.mxu0 %v2250
          %2520 = vmatprep.subr.mxu0 %v2253
          %2521 = vmatpush1.msra.mxu0 %v2252
          %2522 = vmatprep.subr.mxu0 %v2255
          %2523 = vmatpush1.msra.mxu0 %v2254
          %2524 = vmatprep.subr.mxu0 %v2257
          %2525 = vmatpush1.msra.mxu0 %v2256
          %2526 = vmatprep.subr.mxu0 %v2259
          %2527 = vmatpush1.msra.mxu0 %v2258
          %2528 = vmatprep.subr.mxu0 %v2261
          %2529 = vmatpush1.msra.mxu0 %v2260
          %2530 = vmatprep.subr.mxu0 %v2263
          %2531 = vmatpush1.msra.mxu0 %v2262
          %2532 = vmatprep.subr.mxu0 %v2265
          %2533 = vmatpush1.msra.mxu0 %v2264
          %2534 = vmatprep.subr.mxu0 %v2267
          %2535 = vmatpush1.msra.mxu0 %v2266
          %2536 = vmatprep.subr.mxu0 %v2269
          %2537 = vmatpush1.msra.mxu0 %v2268
          %2538 = vmatprep.subr.mxu0 %v2271
          %2539 = vmatpush1.msra.mxu0 %v2270
          %2540 = vmatprep.subr.mxu0 %v2273
          %2541 = vmatpush1.msra.mxu0 %v2272
          %2542 = vmatprep.subr.mxu0 %v2275
          %2543 = vmatpush1.msra.mxu0 %v2274
          %2544 = vmatprep.subr.mxu0 %v2277
          %2545 = vmatpush1.msra.mxu0 %v2276
          %2546 = vmatprep.subr.mxu0 %v2279
          %2547 = vmatpush1.msra.mxu0 %v2278
          %2548 = vmatprep.subr.mxu0 %v2281
          %2549 = vmatpush1.msra.mxu0 %v2280
          %2550 = vmatprep.subr.mxu0 %v2283
          %2551 = vmatpush1.msra.mxu0 %v2282
          %2552 = vmatprep.mubr.f32.mxu0 %v2213
          %2553 = vmatmul.mubr.f32.gmra.mrb[0].mxu0 %v2212
          %v2554 = vpop.f32.mrb[0].mxu0
          %v2555 = vadd.f32 %v2481, %v2554
          %v2556 = vpop.f32.mrb[0].mxu0
          %v2557 = vadd.f32 %v2485, %v2556
          %2558 = vdwg.mxu0
          %2559 = vmatprep.subr.mxu0 %v2285
          %2560 = vmatpush1.msra.mxu0 %v2284
          %2561 = vmatprep.subr.mxu0 %v2287
          %2562 = vmatpush1.msra.mxu0 %v2286
          %2563 = vmatprep.subr.mxu0 %v2289
          %2564 = vmatpush1.msra.mxu0 %v2288
          %2565 = vmatprep.subr.mxu0 %v2291
          %2566 = vmatpush1.msra.mxu0 %v2290
          %2567 = vmatprep.subr.mxu0 %v2293
          %2568 = vmatpush1.msra.mxu0 %v2292
          %2569 = vmatprep.subr.mxu0 %v2295
          %2570 = vmatpush1.msra.mxu0 %v2294
          %2571 = vmatprep.subr.mxu0 %v2297
          %2572 = vmatpush1.msra.mxu0 %v2296
          %2573 = vmatprep.subr.mxu0 %v2299
          %2574 = vmatpush1.msra.mxu0 %v2298
          %2575 = vmatprep.subr.mxu0 %v2301
          %2576 = vmatpush1.msra.mxu0 %v2300
          %2577 = vmatprep.subr.mxu0 %v2303
          %2578 = vmatpush1.msra.mxu0 %v2302
          %2579 = vmatprep.subr.mxu0 %v2305
          %2580 = vmatpush1.msra.mxu0 %v2304
          %2581 = vmatprep.subr.mxu0 %v2307
          %2582 = vmatpush1.msra.mxu0 %v2306
          %2583 = vmatprep.subr.mxu0 %v2309
          %2584 = vmatpush1.msra.mxu0 %v2308
          %2585 = vmatprep.subr.mxu0 %v2311
          %2586 = vmatpush1.msra.mxu0 %v2310
          %2587 = vmatprep.subr.mxu0 %v2313
          %2588 = vmatpush1.msra.mxu0 %v2312
          %2589 = vmatprep.subr.mxu0 %v2315
          %2590 = vmatpush1.msra.mxu0 %v2314
          %2591 = vmatprep.subr.mxu0 %v2317
          %2592 = vmatpush1.msra.mxu0 %v2316
          %2593 = vmatprep.subr.mxu0 %v2319
          %2594 = vmatpush1.msra.mxu0 %v2318
          %2595 = vmatprep.subr.mxu0 %v2321
          %2596 = vmatpush1.msra.mxu0 %v2320
          %2597 = vmatprep.subr.mxu0 %v2323
          %2598 = vmatpush1.msra.mxu0 %v2322
          %2599 = vmatprep.subr.mxu0 %v2325
          %2600 = vmatpush1.msra.mxu0 %v2324
          %2601 = vmatprep.subr.mxu0 %v2327
          %2602 = vmatpush1.msra.mxu0 %v2326
          %2603 = vmatprep.subr.mxu0 %v2329
          %2604 = vmatpush1.msra.mxu0 %v2328
          %2605 = vmatprep.subr.mxu0 %v2331
          %2606 = vmatpush1.msra.mxu0 %v2330
          %2607 = vmatprep.subr.mxu0 %v2333
          %2608 = vmatpush1.msra.mxu0 %v2332
          %2609 = vmatprep.subr.mxu0 %v2335
          %2610 = vmatpush1.msra.mxu0 %v2334
          %2611 = vmatprep.subr.mxu0 %v2337
          %2612 = vmatpush1.msra.mxu0 %v2336
          %2613 = vmatprep.subr.mxu0 %v2339
          %2614 = vmatpush1.msra.mxu0 %v2338
          %2615 = vmatprep.subr.mxu0 %v2341
          %2616 = vmatpush1.msra.mxu0 %v2340
          %2617 = vmatprep.subr.mxu0 %v2343
          %2618 = vmatpush1.msra.mxu0 %v2342
          %2619 = vmatprep.subr.mxu0 %v2345
          %2620 = vmatpush1.msra.mxu0 %v2344
          %2621 = vmatprep.subr.mxu0 %v2347
          %2622 = vmatpush1.msra.mxu0 %v2346
          %2623 = vmatprep.mubr.f32.mxu0 %v2215
          %2624 = vmatmul.mubr.f32.gmra.mrb[0].mxu0 %v2214
          %v2625 = vpop.f32.mrb[0].mxu0
          %v2626 = vadd.f32 %v2555, %v2625
          %v2627 = vpop.f32.mrb[0].mxu0
          %v2628 = vadd.f32 %v2557, %v2627
          %2629 = vdwg.mxu0
          %2630 = vmatprep.subr.mxu0 %v2349
          %2631 = vmatpush1.msra.mxu0 %v2348
          %2632 = vmatprep.subr.mxu0 %v2351
          %2633 = vmatpush1.msra.mxu0 %v2350
          %2634 = vmatprep.subr.mxu0 %v2353
          %2635 = vmatpush1.msra.mxu0 %v2352
          %2636 = vmatprep.subr.mxu0 %v2355
          %2637 = vmatpush1.msra.mxu0 %v2354
          %2638 = vmatprep.subr.mxu0 %v2357
          %2639 = vmatpush1.msra.mxu0 %v2356
          %2640 = vmatprep.subr.mxu0 %v2359
          %2641 = vmatpush1.msra.mxu0 %v2358
          %2642 = vmatprep.subr.mxu0 %v2361
          %2643 = vmatpush1.msra.mxu0 %v2360
          %2644 = vmatprep.subr.mxu0 %v2363
          %2645 = vmatpush1.msra.mxu0 %v2362
          %2646 = vmatprep.subr.mxu0 %v2365
          %2647 = vmatpush1.msra.mxu0 %v2364
          %2648 = vmatprep.subr.mxu0 %v2367
          %2649 = vmatpush1.msra.mxu0 %v2366
          %2650 = vmatprep.subr.mxu0 %v2369
          %2651 = vmatpush1.msra.mxu0 %v2368
          %2652 = vmatprep.subr.mxu0 %v2371
          %2653 = vmatpush1.msra.mxu0 %v2370
          %2654 = vmatprep.subr.mxu0 %v2373
          %2655 = vmatpush1.msra.mxu0 %v2372
          %2656 = vmatprep.subr.mxu0 %v2375
          %2657 = vmatpush1.msra.mxu0 %v2374
          %2658 = vmatprep.subr.mxu0 %v2377
          %2659 = vmatpush1.msra.mxu0 %v2376
          %2660 = vmatprep.subr.mxu0 %v2379
          %2661 = vmatpush1.msra.mxu0 %v2378
          %2662 = vmatprep.subr.mxu0 %v2381
          %2663 = vmatpush1.msra.mxu0 %v2380
          %2664 = vmatprep.subr.mxu0 %v2383
          %2665 = vmatpush1.msra.mxu0 %v2382
          %2666 = vmatprep.subr.mxu0 %v2385
          %2667 = vmatpush1.msra.mxu0 %v2384
          %2668 = vmatprep.subr.mxu0 %v2387
          %2669 = vmatpush1.msra.mxu0 %v2386
          %2670 = vmatprep.subr.mxu0 %v2389
          %2671 = vmatpush1.msra.mxu0 %v2388
          %2672 = vmatprep.subr.mxu0 %v2391
          %2673 = vmatpush1.msra.mxu0 %v2390
          %2674 = vmatprep.subr.mxu0 %v2393
          %2675 = vmatpush1.msra.mxu0 %v2392
          %2676 = vmatprep.subr.mxu0 %v2395
          %2677 = vmatpush1.msra.mxu0 %v2394
          %2678 = vmatprep.subr.mxu0 %v2397
          %2679 = vmatpush1.msra.mxu0 %v2396
          %2680 = vmatprep.subr.mxu0 %v2399
          %2681 = vmatpush1.msra.mxu0 %v2398
          %2682 = vmatprep.subr.mxu0 %v2401
          %2683 = vmatpush1.msra.mxu0 %v2400
          %2684 = vmatprep.subr.mxu0 %v2403
          %2685 = vmatpush1.msra.mxu0 %v2402
          %2686 = vmatprep.subr.mxu0 %v2405
          %2687 = vmatpush1.msra.mxu0 %v2404
          %2688 = vmatprep.subr.mxu0 %v2407
          %2689 = vmatpush1.msra.mxu0 %v2406
          %2690 = vmatprep.subr.mxu0 %v2409
          %2691 = vmatpush1.msra.mxu0 %v2408
          %2692 = vmatprep.subr.mxu0 %v2411
          %2693 = vmatpush1.msra.mxu0 %v2410
          %2694 = vmatprep.mubr.f32.mxu0 %v2217
          %2695 = vmatmul.mubr.f32.gmra.mrb[0].mxu0 %v2216
          %v2696 = vpop.f32.mrb[0].mxu0
          %v2697 = vadd.f32 %v2626, %v2696
          %v2698 = vpop.f32.mrb[0].mxu0
          %v2699 = vadd.f32 %v2628, %v2698
          %2700 = vdwg.mxu0
          %2701 = vmatprep.subr.mxu0 %v2413
          %2702 = vmatpush1.msra.mxu0 %v2412
          %2703 = vmatprep.subr.mxu0 %v2415
          %2704 = vmatpush1.msra.mxu0 %v2414
          %2705 = vmatprep.subr.mxu0 %v2417
          %2706 = vmatpush1.msra.mxu0 %v2416
          %2707 = vmatprep.subr.mxu0 %v2419
          %2708 = vmatpush1.msra.mxu0 %v2418
          %2709 = vmatprep.subr.mxu0 %v2421
          %2710 = vmatpush1.msra.mxu0 %v2420
          %2711 = vmatprep.subr.mxu0 %v2423
          %2712 = vmatpush1.msra.mxu0 %v2422
          %2713 = vmatprep.subr.mxu0 %v2425
          %2714 = vmatpush1.msra.mxu0 %v2424
          %2715 = vmatprep.subr.mxu0 %v2427
          %2716 = vmatpush1.msra.mxu0 %v2426
          %2717 = vmatprep.subr.mxu0 %v2429
          %2718 = vmatpush1.msra.mxu0 %v2428
          %2719 = vmatprep.subr.mxu0 %v2431
          %2720 = vmatpush1.msra.mxu0 %v2430
          %2721 = vmatprep.subr.mxu0 %v2433
          %2722 = vmatpush1.msra.mxu0 %v2432
          %2723 = vmatprep.subr.mxu0 %v2435
          %2724 = vmatpush1.msra.mxu0 %v2434
          %2725 = vmatprep.subr.mxu0 %v2437
          %2726 = vmatpush1.msra.mxu0 %v2436
          %2727 = vmatprep.subr.mxu0 %v2439
          %2728 = vmatpush1.msra.mxu0 %v2438
          %2729 = vmatprep.subr.mxu0 %v2441
          %2730 = vmatpush1.msra.mxu0 %v2440
          %2731 = vmatprep.subr.mxu0 %v2443
          %2732 = vmatpush1.msra.mxu0 %v2442
          %2733 = vmatprep.subr.mxu0 %v2445
          %2734 = vmatpush1.msra.mxu0 %v2444
          %2735 = vmatprep.subr.mxu0 %v2447
          %2736 = vmatpush1.msra.mxu0 %v2446
          %2737 = vmatprep.subr.mxu0 %v2449
          %2738 = vmatpush1.msra.mxu0 %v2448
          %2739 = vmatprep.subr.mxu0 %v2451
          %2740 = vmatpush1.msra.mxu0 %v2450
          %2741 = vmatprep.subr.mxu0 %v2453
          %2742 = vmatpush1.msra.mxu0 %v2452
          %2743 = vmatprep.subr.mxu0 %v2455
          %2744 = vmatpush1.msra.mxu0 %v2454
          %2745 = vmatprep.subr.mxu0 %v2457
          %2746 = vmatpush1.msra.mxu0 %v2456
          %2747 = vmatprep.subr.mxu0 %v2459
          %2748 = vmatpush1.msra.mxu0 %v2458
          %2749 = vmatprep.subr.mxu0 %v2461
          %2750 = vmatpush1.msra.mxu0 %v2460
          %2751 = vmatprep.subr.mxu0 %v2463
          %2752 = vmatpush1.msra.mxu0 %v2462
          %2753 = vmatprep.subr.mxu0 %v2465
          %2754 = vmatpush1.msra.mxu0 %v2464
          %2755 = vmatprep.subr.mxu0 %v2467
          %2756 = vmatpush1.msra.mxu0 %v2466
          %2757 = vmatprep.subr.mxu0 %v2469
          %2758 = vmatpush1.msra.mxu0 %v2468
          %2759 = vmatprep.subr.mxu0 %v2471
          %2760 = vmatpush1.msra.mxu0 %v2470
          %2761 = vmatprep.subr.mxu0 %v2473
          %2762 = vmatpush1.msra.mxu0 %v2472
          %2763 = vmatprep.subr.mxu0 %v2475
          %2764 = vmatpush1.msra.mxu0 %v2474
          %2765 = vmatprep.mubr.f32.mxu0 %v2219
          %2766 = vmatmul.mubr.f32.gmra.mrb[0].mxu0 %v2218
          %v2767 = vpop.f32.mrb[0].mxu0
          %v2768 = vadd.f32 %v2697, %v2767
          %v2769 = vpop.f32.mrb[0].mxu0
          %v2770 = vadd.f32 %v2699, %v2769
          %2771 = vdwg.mxu0
          %v2772 = vmax.f32 %v2768, 0.0
          %v2773 = vmax.f32 %v2770, 0.0
          %v2774 = vld [vmem:[%s11] sm:$0xff]
          %v2775 = vld [vmem:[%s11 + $0x8] sm:$0xff]
          %v2776 = vld [vmem:[%s11 + $0x10] sm:$0xff]
          %v2777 = vld [vmem:[%s11 + $0x18] sm:$0xff]
          %v2778 = vld [vmem:[%s11 + $0x20] sm:$0xff]
          %v2779 = vld [vmem:[%s11 + $0x28] sm:$0xff]
          %v2780 = vld [vmem:[%s11 + $0x30] sm:$0xff]
          %v2781 = vld [vmem:[%s11 + $0x38] sm:$0xff]
          %v2782 = vld [vmem:[%s11 + $0x40] sm:$0xff]
          %v2783 = vld [vmem:[%s11 + $0x48] sm:$0xff]
          %v2784 = vld [vmem:[%s11 + $0x50] sm:$0xff]
          %v2785 = vld [vmem:[%s11 + $0x58] sm:$0xff]
          %v2786 = vld [vmem:[%s11 + $0x60] sm:$0xff]
          %v2787 = vld [vmem:[%s11 + $0x68] sm:$0xff]
          %v2788 = vld [vmem:[%s11 + $0x70] sm:$0xff]
          %v2789 = vld [vmem:[%s11 + $0x78] sm:$0xff]
          %v2790 = vld [vmem:[%s11 + $0x80] sm:$0xff]
          %v2791 = vld [vmem:[%s11 + $0x88] sm:$0xff]
          %v2792 = vld [vmem:[%s11 + $0x90] sm:$0xff]
          %v2793 = vld [vmem:[%s11 + $0x98] sm:$0xff]
          %v2794 = vld [vmem:[%s11 + $0xa0] sm:$0xff]
          %v2795 = vld [vmem:[%s11 + $0xa8] sm:$0xff]
          %v2796 = vld [vmem:[%s11 + $0xb0] sm:$0xff]
          %v2797 = vld [vmem:[%s11 + $0xb8] sm:$0xff]
          %v2798 = vld [vmem:[%s11 + $0xc0] sm:$0xff]
          %v2799 = vld [vmem:[%s11 + $0xc8] sm:$0xff]
          %v2800 = vld [vmem:[%s11 + $0xd0] sm:$0xff]
          %v2801 = vld [vmem:[%s11 + $0xd8] sm:$0xff]
          %v2802 = vld [vmem:[%s11 + $0xe0] sm:$0xff]
          %v2803 = vld [vmem:[%s11 + $0xe8] sm:$0xff]
          %v2804 = vld [vmem:[%s11 + $0xf0] sm:$0xff]
          %v2805 = vld [vmem:[%s11 + $0xf8] sm:$0xff]
          %v2806 = vld [vmem:[#allocation6] sm:$0x1]
          %v2808 = vlaneseq
          %v2809 = vshrl.u32 %v2808, 7
          %v2810 = vsub.s32 0, %v2809
          %v2811 = vrot.slane %v2806, %v2810
          %2813 = vmatprep.subr.mxu0 0.0
          %2814 = vmatpush1.msra.mxu0 %v2774
          %2815 = vmatprep.subr.mxu0 0.0
          %2816 = vmatpush1.msra.mxu0 %v2775
          %2817 = vmatprep.subr.mxu0 0.0
          %2818 = vmatpush1.msra.mxu0 %v2776
          %2819 = vmatprep.subr.mxu0 0.0
          %2820 = vmatpush1.msra.mxu0 %v2777
          %2821 = vmatprep.subr.mxu0 0.0
          %2822 = vmatpush1.msra.mxu0 %v2778
          %2823 = vmatprep.subr.mxu0 0.0
          %2824 = vmatpush1.msra.mxu0 %v2779
          %2825 = vmatprep.subr.mxu0 0.0
          %2826 = vmatpush1.msra.mxu0 %v2780
          %2827 = vmatprep.subr.mxu0 0.0
          %2828 = vmatpush1.msra.mxu0 %v2781
          %2829 = vmatprep.subr.mxu0 0.0
          %2830 = vmatpush1.msra.mxu0 %v2782
          %2831 = vmatprep.subr.mxu0 0.0
          %2832 = vmatpush1.msra.mxu0 %v2783
          %2833 = vmatprep.subr.mxu0 0.0
          %2834 = vmatpush1.msra.mxu0 %v2784
          %2835 = vmatprep.subr.mxu0 0.0
          %2836 = vmatpush1.msra.mxu0 %v2785
          %2837 = vmatprep.subr.mxu0 0.0
          %2838 = vmatpush1.msra.mxu0 %v2786
          %2839 = vmatprep.subr.mxu0 0.0
          %2840 = vmatpush1.msra.mxu0 %v2787
          %2841 = vmatprep.subr.mxu0 0.0
          %2842 = vmatpush1.msra.mxu0 %v2788
          %2843 = vmatprep.subr.mxu0 0.0
          %2844 = vmatpush1.msra.mxu0 %v2789
          %2845 = vmatprep.subr.mxu0 0.0
          %2846 = vmatpush1.msra.mxu0 %v2790
          %2847 = vmatprep.subr.mxu0 0.0
          %2848 = vmatpush1.msra.mxu0 %v2791
          %2849 = vmatprep.subr.mxu0 0.0
          %2850 = vmatpush1.msra.mxu0 %v2792
          %2851 = vmatprep.subr.mxu0 0.0
          %2852 = vmatpush1.msra.mxu0 %v2793
          %2853 = vmatprep.subr.mxu0 0.0
          %2854 = vmatpush1.msra.mxu0 %v2794
          %2855 = vmatprep.subr.mxu0 0.0
          %2856 = vmatpush1.msra.mxu0 %v2795
          %2857 = vmatprep.subr.mxu0 0.0
          %2858 = vmatpush1.msra.mxu0 %v2796
          %2859 = vmatprep.subr.mxu0 0.0
          %2860 = vmatpush1.msra.mxu0 %v2797
          %2861 = vmatprep.subr.mxu0 0.0
          %2862 = vmatpush1.msra.mxu0 %v2798
          %2863 = vmatprep.subr.mxu0 0.0
          %2864 = vmatpush1.msra.mxu0 %v2799
          %2865 = vmatprep.subr.mxu0 0.0
          %2866 = vmatpush1.msra.mxu0 %v2800
          %2867 = vmatprep.subr.mxu0 0.0
          %2868 = vmatpush1.msra.mxu0 %v2801
          %2869 = vmatprep.subr.mxu0 0.0
          %2870 = vmatpush1.msra.mxu0 %v2802
          %2871 = vmatprep.subr.mxu0 0.0
          %2872 = vmatpush1.msra.mxu0 %v2803
          %2873 = vmatprep.subr.mxu0 0.0
          %2874 = vmatpush1.msra.mxu0 %v2804
          %2875 = vmatprep.subr.mxu0 0.0
          %2876 = vmatpush1.msra.mxu0 %v2805
          %2877 = vmatprep.mubr.f32.mxu0 %v2773
          %2878 = vmatmul.mubr.f32.gmra.mrb[0].mxu0 %v2772
          %v2879 = vpop.f32.mrb[0].mxu0
          %v2880 = vadd.f32 %v2811, %v2879
          %v2881 = vpop.f32.mrb[0].mxu0
          %2882 = vdwg.mxu0
          %2884 = vset.pattern.permute.xlu0 0
          %2885 = vperm.xlu0 %2884, %v2880
          %v2886 = vpop.permute.xlu0 %2885
          %2888 = vst [vmem:[#allocation12] sm:$0x3] %v2886
        $region108: #{tpu_custom_call.1} parent=71 // pred_fallthru
          _
        // Predicated region
        $region109: #{tpu_custom_call.1} parent=71 // pred_check
          %p2889 = pneg %p351
        $region110: #{tpu_custom_call.1} parent=71 // pred_check_branch
          %2891 = sbr.rel (%p2889) target = $region112
        $region111: #{tpu_custom_call.1} parent=71 // pred_region
          %s2893 = ssub.s32 32, 32
          %2894 = vsyncadd [#allocation9], %s2893
          %s2896 = sshll.u32 [#allocation12], 4
          %s2897 = int_to_ptr.vmem [resolvable:$true] %s2896
          %2899 = dma.vmem_to_hbm [thread:$0]  %s2897, 32, %s13, [#allocation9]
        $region112: #{tpu_custom_call.1} parent=71 // pred_fallthru
          _
        // Predicated region
        $region113: #{tpu_custom_call.1} parent=71 // pred_check
          %p2900 = pneg %p351
        $region114: #{tpu_custom_call.1} parent=71 // pred_check_branch
          %2902 = sbr.rel (%p2900) target = $region116
        $region115: #{tpu_custom_call.1} parent=71 // pred_region
          %2903 = dma.done [#allocation9], 32
        $region116: #{tpu_custom_call.1} parent=71 // pred_fallthru
          _
      $region72: #{tpu_custom_call.1} parent=5 // pred_fallthru
        _
      %p2904 = scmp.le.s32.totalorder 2, %s24
      // Predicated region
      $region117: #{tpu_custom_call.1} parent=5 // pred_check
        %p2905 = pneg %p2904
      $region118: #{tpu_custom_call.1} parent=5 // pred_check_branch
        %2907 = sbr.rel (%p2905) target = $region120
      $region119: #{tpu_custom_call.1} parent=5 // pred_region
        %s2908 = ssub.s32 %s24, 2
      $region120: #{tpu_custom_call.1} parent=5 // pred_fallthru
        _
    $region6: #{tpu_custom_call.1} parent=1 // loop_footer
      %s28 = sadd.s32 1, %s24
    $region7: #{tpu_custom_call.1} parent=1 // loop_footer_branch
      %23 = sbr.rel target = $region3
    $region8: #{tpu_custom_call.1} parent=1 // loop_exit
      _
    %2909 = vsyncpa [#allocation8], 1
    %s2910 = scalar_lea.sflag [#allocation8], 1
    %2911 = vsyncpa %s2910, 1
    %2912 = vsyncpa [#allocation11], 1
    %2913 = vsyncpa [#allocation9], 1
    %s2914 = scalar_lea.sflag [#allocation9], 1
    %2915 = vsyncpa %s2914, 1

</llo_original>
